<compile_context>
chip_gen: v6e
topology: v6e:2x2x1
jax: 0.10.0
libtpu: 0.0.40
codegen_flags: <defaults>
</compile_context>

<pallas_src>
import functools

import jax
import jax.numpy as jnp
import numpy as np
from jax import lax
from jax.experimental import pallas as pl
from jax.experimental.pallas import tpu as pltpu


def _predictor_sm_kernel(tt_ref, att_ops_ref, att_self_ref, mdb_ref,
                         out_ref, mem_ref, *rest, rb, e_pad, eb, jc,
                         thr, no_norm, assume_nonneg, resident):
    """Grid = (num_step - 1, E_pad // eb, num_operator); operators innermost.

    out_ref : [rb, e_pad] VMEM-resident output block (constant index map) that
              doubles as the per-step max-accumulator over operators.
    mem_ref : [rb, e_pad] scratch holding the previous step's memory_read.
    rest    : (mdb_vmem_ref,) when `resident` (mdb pinned in VMEM), else empty.
    """
    if resident:
        (mdb_vmem_ref,) = rest

    t = pl.program_id(0)
    e = pl.program_id(1)
    r = pl.program_id(2)
    nt = pl.num_programs(0)
    ne = pl.num_programs(1)
    nr = pl.num_programs(2)

    e0 = pl.multiple_of(e * eb, eb)
    nj = e_pad // jc

    def _l1_normalize(v):
        if no_norm:
            return v
        # F.normalize(x, p=1, dim=1, eps=thr) == x / max(||x||_1, thr)
        l1 = jnp.sum(jnp.abs(v), axis=-1, keepdims=True)
        return v * pl.reciprocal(jnp.maximum(l1, thr), approx=False)

    # ---- one-time: pin mdb in VMEM (resident path) ---------------------------
    if resident:
        @pl.when(jnp.logical_and(t == 0, jnp.logical_and(e == 0, r == 0)))
        def _pin_mdb():
            pltpu.sync_copy(mdb_ref, mdb_vmem_ref)

    # ---- step prologue: first e tile, first operator -------------------------
    @pl.when(jnp.logical_and(e == 0, r == 0))
    def _step_begin():
        @pl.when(t == 0)
        def _init_memory():
            # memory_read <- one_hot(tails), built in-kernel from indices.
            col = lax.broadcasted_iota(jnp.int32, (rb, e_pad), 1)
            mem_ref[...] = (col == tt_ref[...]).astype(jnp.float32)

        @pl.when(t > 0)
        def _advance_memory():
            # Previous step's max over operators (already complete in out_ref),
            # L1-normalized, becomes the new memory_read.
            mem_ref[...] = _l1_normalize(out_ref[...])

    # ---- seed this (step, e tile) with the "self" path: mem * attention[-1] --
    @pl.when(r == 0)
    def _seed():
        out_ref[:, pl.ds(e0, eb)] = (mem_ref[:, pl.ds(e0, eb)]
                                     * att_self_ref[...])

    # ---- operator r's max-product for this e tile -----------------------------
    # torch.sparse.mm(mdb[r], mem.T, 'max') transposed back:
    #   prod[b, e] = max_{j : mdb[r][e, j] stored} mdb[r][e, j] * mem[b, j]
    # Processed one batch row at a time so the running-max temporary is
    # [1, eb, jc] (bounded, no VMEM spill); the cross-lane reduce happens once
    # per (row, tile) after the j loop (hoisted off the XLU hot path).
    if resident:
        mrow0 = pl.multiple_of(r * e_pad + e0, eb)   # rows of mdb[r] in 2-D view
    neg = jnp.float32(0.0) if assume_nonneg else -jnp.inf

    for b0 in range(rb):
        def j_body(jj, run, _b0=b0):
            j0 = pl.multiple_of(jj * jc, jc)
            if resident:
                m_c = mdb_vmem_ref[pl.ds(mrow0, eb), pl.ds(j0, jc)]   # [eb, jc]
            else:
                m_c = mdb_ref[:, pl.ds(j0, jc)]                        # [eb, jc]
            x_c = mem_ref[pl.ds(_b0, 1), pl.ds(j0, jc)]                # [1, jc]
            if assume_nonneg:
                # mdb >= 0 and mem >= 0 => zero ("not stored") entries can never
                # win the max, so the compare/select mask is dropped entirely.
                cand = m_c[None, :, :] * x_c[:, None, :]               # [1, eb, jc]
            else:
                cand = jnp.where(m_c[None, :, :] != 0.0,
                                 m_c[None, :, :] * x_c[:, None, :],
                                 -jnp.inf)
            return jnp.maximum(run, cand)

        run0 = jnp.full((1, eb, jc), neg, jnp.float32)
        run = lax.fori_loop(0, nj, j_body, run0,
                            unroll=(True if nj <= 8 else 8))
        prod = jnp.max(run, axis=-1)                                   # [1, eb]
        if not assume_nonneg:
            # Rows with no stored elements reduce to 0 (matches torch's
            # zero-initialized output rows for empty sparse rows).
            prod = jnp.where(prod == -jnp.inf, 0.0, prod)
        scaled = prod * att_ops_ref[pl.ds(b0, 1), :]                   # [1, eb]
        cur = out_ref[pl.ds(b0, 1), pl.ds(e0, eb)]
        out_ref[pl.ds(b0, 1), pl.ds(e0, eb)] = jnp.maximum(cur, scaled)

    # ---- epilogue: normalize the last step's accumulated maximum -------------
    @pl.when(jnp.logical_and(t == nt - 1,
                             jnp.logical_and(e == ne - 1, r == nr - 1)))
    def _finalize():
        out_ref[...] = _l1_normalize(out_ref[...])


def _round_to_multiple(x, m):
    return ((x + m - 1) // m) * m


def _pick_tile(total, want, mult):
    """Largest multiple of `mult` that is <= want and divides `total`."""
    want = max(mult, (want // mult) * mult)
    tile = min(want, total)
    while total % tile:
        tile -= mult
    return tile


def _vmem_capacity_bytes():
    try:
        cap = int(pltpu.get_tpu_info().vmem_capacity_bytes)
        if cap > 0:
            return cap
    except Exception:
        pass
    return 64 << 20   # conservative fallback (v7x per-TensorCore VMEM)


def predictor_sm(attention, tt, mdb, *, num_entity, num_step, num_operator,
                 rank, thr=1e-6, no_norm=False, assume_nonneg=True,
                 eb_size=128, resident_mdb=None):
    """attention: [rank, num_step, B, num_operator+1] float32 (softmax weights)
       tt:        [B] int tail indices
       mdb:       [num_operator, E, E] float32 dense (0 == "not stored")
       returns    [B, E] float32 prediction (sum over ranks of final memory)."""
    B = int(tt.shape[0])
    E = int(num_entity)

    if num_step <= 1:
        # memory_read is never updated; prediction = rank * one_hot(tt)
        return jnp.float32(rank) * jax.nn.one_hot(jnp.asarray(tt), E,
                                                  dtype=jnp.float32)

    if num_operator == 0:
        # Self-path-only recursion (degenerate grid otherwise); trivial in XLA.
        att = jnp.asarray(attention, jnp.float32)
        tails = jax.nn.one_hot(jnp.asarray(tt), E, dtype=jnp.float32)
        pred = jnp.zeros((B, E), jnp.float32)
        for i in range(rank):
            mem = tails
            for t in range(num_step - 1):
                mem = mem * att[i, t, :, 0:1]
                if not no_norm:
                    mem = mem / jnp.maximum(
                        jnp.sum(jnp.abs(mem), -1, keepdims=True), thr)
            pred = pred + mem
        return pred

    T = num_step - 1
    RB = rank * B
    RB_pad = _round_to_multiple(max(RB, 8), 8)      # sublane fill
    E_pad = _round_to_multiple(max(E, 128), 128)
    eb = _pick_tile(E_pad, min(max(int(eb_size), 128), 256), 128)
    jc = 128                                        # one lane tile per j chunk
    ne_tiles = E_pad // eb

    # --- operand preparation (cheap XLA-side layout plumbing) -----------------
    tt_rb = jnp.tile(jnp.asarray(tt, jnp.int32), rank)
    tt_rb = jnp.pad(tt_rb, (0, RB_pad - RB)).reshape(RB_pad, 1)

    att = jnp.asarray(attention, jnp.float32)               # [rank, S, B, R+1]
    att = jnp.transpose(att, (1, 3, 0, 2))                  # [S, R+1, rank, B]
    att = att.reshape(num_step, num_operator + 1, RB)
    att = jnp.pad(att, ((0, 0), (0, 0), (0, RB_pad - RB)))[..., None]
    att = att[:T]                                           # [T, R+1, RB_pad, 1]
    att_ops = att[:, :num_operator]                         # [T, R, RB_pad, 1]
    att_self = att[:, num_operator]                         # [T, RB_pad, 1]

    mdb_p = jnp.asarray(mdb, jnp.float32)
    if E_pad != E:
        mdb_p = jnp.pad(mdb_p, ((0, 0), (0, E_pad - E), (0, E_pad - E)))
    mdb_2d = mdb_p.reshape(num_operator * E_pad, E_pad)     # contiguous reshape

    # --- VMEM budgeting (generation aware) -------------------------------------
    phys = _vmem_capacity_bytes()
    mdb_bytes = num_operator * E_pad * E_pad * 4
    base_bytes = (2 * RB_pad * E_pad * 4      # output block (allow 2 buffers)
                  + RB_pad * E_pad * 4        # memory scratch
                  + 4 * RB_pad * (num_operator + 2) * 4 * max(T, 1))
    headroom = 8 << 20
    if resident_mdb is None:
        resident = (mdb_bytes + base_bytes + headroom) <= int(phys * 0.72)
    else:
        resident = bool(resident_mdb)
    if resident:
        need = mdb_bytes + base_bytes + headroom
    else:
        need = 2 * eb * E_pad * 4 + base_bytes + headroom
    cap = int(phys * 0.85)
    vmem_limit = max(min(need, cap), 16 << 20)

    kernel = functools.partial(
        _predictor_sm_kernel, rb=RB_pad, e_pad=E_pad, eb=eb, jc=jc,
        thr=float(thr), no_norm=bool(no_norm),
        assume_nonneg=bool(assume_nonneg), resident=resident)

    grid = (T, ne_tiles, num_operator)

    in_specs = [
        # tail indices, [RB_pad, 1] int32, loaded once
        pl.BlockSpec((RB_pad, 1), lambda t, e, r: (0, 0)),
        # attention column for (step t, operator r): [RB_pad, 1]
        pl.BlockSpec((None, None, RB_pad, 1), lambda t, e, r: (t, r, 0, 0)),
        # attention "self" column for step t: [RB_pad, 1]
        pl.BlockSpec((None, RB_pad, 1), lambda t, e, r: (t, 0, 0)),
    ]
    scratch_shapes = [pltpu.VMEM((RB_pad, E_pad), jnp.float32)]   # memory_read
    if resident:
        # full mdb stays in HBM; pinned once into a VMEM scratch at t==0.
        in_specs.append(pl.BlockSpec(memory_space=pl.ANY))
        scratch_shapes.append(
            pltpu.VMEM((num_operator * E_pad, E_pad), jnp.float32))
    else:
        # streamed [eb, E_pad] slab of mdb[r] rows for the current e tile.
        in_specs.append(
            pl.BlockSpec((eb, E_pad), lambda t, e, r: (r * ne_tiles + e, 0)))

    flops = int(2 * T * num_operator * RB_pad * E_pad * E_pad)
    bytes_accessed = int((mdb_bytes if resident else T * mdb_bytes)
                         + RB_pad * E_pad * 4 + att.size * 4 + RB_pad * 4)

    out = pl.pallas_call(
        kernel,
        out_shape=jax.ShapeDtypeStruct((RB_pad, E_pad), jnp.float32),
        grid_spec=pltpu.PrefetchScalarGridSpec(
            num_scalar_prefetch=0,
            grid=grid,
            in_specs=in_specs,
            out_specs=pl.BlockSpec((RB_pad, E_pad), lambda t, e, r: (0, 0)),
            scratch_shapes=scratch_shapes,
        ),
        compiler_params=pltpu.CompilerParams(
            dimension_semantics=("arbitrary", "arbitrary", "arbitrary"),
            vmem_limit_bytes=vmem_limit),
        cost_estimate=pl.CostEstimate(flops=flops, transcendentals=0,
                                      bytes_accessed=bytes_accessed),
    )(tt_rb, att_ops, att_self, mdb_2d)

    # prediction = sum over ranks of the final memory (trivial XLA epilogue)
    return out[:RB, :E].reshape(rank, B, E).sum(axis=0)


def predictor_sm_reference(attention, tt, mdb, *, num_entity, num_step,
                           num_operator, rank, thr, no_norm):
    """Pure-JAX reference with the exact PyTorch forward semantics
       (max over stored sparse entries; rows with no stored entries -> 0)."""
    tails = jax.nn.one_hot(tt, num_entity, dtype=jnp.float32)
    pred = jnp.zeros_like(tails)
    for i in range(rank):
        mem = tails
        for t in range(num_step - 1):
            cands = []
            for r in range(num_operator):
                M = mdb[r]
                c = jnp.where(M[None] != 0.0, M[None] * mem[:, None, :], -jnp.inf)
                p = jnp.max(c, axis=-1)
                p = jnp.where(jnp.any(M != 0.0, axis=-1)[None], p, 0.0)
                cands.append(p * attention[i, t, :, r:r + 1])
            cands.append(mem * attention[i, t, :, num_operator:num_operator + 1])
            new = jnp.max(jnp.stack(cands, axis=0), axis=0)
            if not no_norm:
                new = new / jnp.maximum(
                    jnp.sum(jnp.abs(new), axis=-1, keepdims=True), thr)
            mem = new
        pred = pred + mem
    return pred


if __name__ == "__main__":
    key = jax.random.PRNGKey(0)
    B, E = 2, 256               # batch, num_entity
    num_operator, num_step, rank = 3, 3, 2
    thr, no_norm = 1e-6, False

    k1, k2, k3, k4 = jax.random.split(key, 4)
    tt = jax.random.randint(k1, (B,), 0, E)
    # attentions over (num_operator + 1) choices, non-negative (softmax output)
    attention = jax.nn.softmax(
        jax.random.normal(k2, (rank, num_step, B, num_operator + 1),
                          dtype=jnp.float32), axis=-1)
    # synthetic sparse operator matrices (dense storage, ~5% nonzero, values >= 0)
    vals = jax.random.uniform(k3, (num_operator, E, E), dtype=jnp.float32,
                              minval=0.1, maxval=1.0)
    mask = (jax.random.uniform(k4, (num_operator, E, E)) < 0.05)
    mdb = vals * mask.astype(jnp.float32)

    ref = predictor_sm_reference(attention, tt, mdb, num_entity=E,
                                 num_step=num_step, num_operator=num_operator,
                                 rank=rank, thr=thr, no_norm=no_norm)

    # 1) Fast path (valid: mdb >= 0 and attention >= 0 here); mdb auto-resident.
    out = predictor_sm(attention, tt, mdb, num_entity=E, num_step=num_step,
                       num_operator=num_operator, rank=rank, thr=thr,
                       no_norm=no_norm, assume_nonneg=True)
    out = jax.block_until_ready(out)
    np.testing.assert_allclose(np.asarray(out), np.asarray(ref),
                               rtol=1e-5, atol=1e-5)

    # 2) Exact masked path (no non-negativity assumption), same structure.
    out_masked = predictor_sm(attention, tt, mdb, num_entity=E,
                              num_step=num_step, num_operator=num_operator,
                              rank=rank, thr=thr, no_norm=no_norm,
                              assume_nonneg=False)
    out_masked = jax.block_until_ready(out_masked)
    np.testing.assert_allclose(np.asarray(out_masked), np.asarray(ref),
                               rtol=1e-5, atol=1e-5)

    # 3) Streaming fallback path (mdb not pinned in VMEM) forced, for coverage.
    out_stream = predictor_sm(attention, tt, mdb, num_entity=E,
                              num_step=num_step, num_operator=num_operator,
                              rank=rank, thr=thr, no_norm=no_norm,
                              assume_nonneg=True, resident_mdb=False)
    out_stream = jax.block_until_ready(out_stream)
    np.testing.assert_allclose(np.asarray(out_stream), np.asarray(ref),
                               rtol=1e-5, atol=1e-5)

    print("KERNEL_OK")
</pallas_src>

<mosaic_0001>
module attributes {stable_mosaic.version = 11 : i64} {
  func.func @_predictor_sm_kernel(%arg0: i32, %arg1: i32, %arg2: i32, %arg3: memref<8x1xi32, #tpu.memory_space<vmem>>, %arg4: memref<1x1x8x1xf32, #tpu.memory_space<vmem>>, %arg5: memref<1x8x1xf32, #tpu.memory_space<vmem>>, %arg6: memref<768x256xf32, #tpu.memory_space<any>>, %arg7: memref<8x256xf32, #tpu.memory_space<vmem>>, %arg8: memref<8x256xf32, #tpu.memory_space<vmem>>, %arg9: memref<768x256xf32, #tpu.memory_space<vmem>>) attributes {dimension_semantics = [#tpu.dimension_semantics<arbitrary>, #tpu.dimension_semantics<arbitrary>, #tpu.dimension_semantics<arbitrary>], iteration_bounds = array<i64: 2, 2, 3>, scalar_prefetch = 0 : i64, scratch_operands = 2 : i64, tpu.core_type = #tpu.core_type<tc>, window_params = [{pipeline_mode = #tpu.pipeline_mode<synchronous>, transform_indices = @transform_0, window_bounds = array<i64: 8, 1>}, {transform_indices = @transform_1, window_bounds = array<i64: 1, 1, 8, 1>}, {transform_indices = @transform_2, window_bounds = array<i64: 1, 8, 1>}, {}, {pipeline_mode = #tpu.pipeline_mode<synchronous>, transform_indices = @transform_4, window_bounds = array<i64: 8, 256>}]} {
    %c128_i32 = arith.constant 128 : i32
    %0 = arith.muli %arg1, %c128_i32 : i32
    %1 = tpu.assume_multiple %0, 128 : i32
    %c0_i32 = arith.constant 0 : i32
    %2 = arith.cmpi eq, %arg0, %c0_i32 : i32
    %c0_i32_0 = arith.constant 0 : i32
    %3 = arith.cmpi eq, %arg1, %c0_i32_0 : i32
    %c0_i32_1 = arith.constant 0 : i32
    %4 = arith.cmpi eq, %arg2, %c0_i32_1 : i32
    %5 = arith.andi %3, %4 : i1
    %6 = arith.andi %2, %5 : i1
    %7 = arith.extui %6 : i1 to i32
    %c0_i32_2 = arith.constant 0 : i32
    %8 = arith.cmpi ne, %7, %c0_i32_2 : i32
    scf.if %8 {
      "tpu.region"() ({
        %307 = tpu.sem_alloc : memref<!tpu.dma_semaphore, #tpu.memory_space<semaphore_mem>>
        tpu.enqueue_dma source(%arg6 : memref<768x256xf32, #tpu.memory_space<any>>) target(%arg9 : memref<768x256xf32, #tpu.memory_space<vmem>>) target_semaphore(%307 : memref<!tpu.dma_semaphore, #tpu.memory_space<semaphore_mem>>)
        tpu.wait_dma2 semaphore(%307 : memref<!tpu.dma_semaphore, #tpu.memory_space<semaphore_mem>>) src(%arg6 : memref<768x256xf32, #tpu.memory_space<any>>) dst(%arg9 : memref<768x256xf32, #tpu.memory_space<vmem>>)
        tpu.yield
      }) : () -> ()
    } else {
    }
    %c0_i32_3 = arith.constant 0 : i32
    %9 = arith.cmpi eq, %arg1, %c0_i32_3 : i32
    %c0_i32_4 = arith.constant 0 : i32
    %10 = arith.cmpi eq, %arg2, %c0_i32_4 : i32
    %11 = arith.andi %9, %10 : i1
    %12 = arith.extui %11 : i1 to i32
    %c0_i32_5 = arith.constant 0 : i32
    %13 = arith.cmpi ne, %12, %c0_i32_5 : i32
    scf.if %13 {
      %c0_i32_121 = arith.constant 0 : i32
      %307 = arith.cmpi eq, %arg0, %c0_i32_121 : i32
      %308 = arith.extui %307 : i1 to i32
      %c0_i32_122 = arith.constant 0 : i32
      %309 = arith.cmpi ne, %308, %c0_i32_122 : i32
      scf.if %309 {
        %313 = tpu.iota {dimensions = array<i32: 1>} : vector<8x256xi32>
        %c0_125 = arith.constant 0 : index
        %c0_126 = arith.constant 0 : index
        %314 = vector.load %arg3[%c0_125, %c0_126] : memref<8x1xi32, #tpu.memory_space<vmem>>, vector<8x1xi32>
        %315 = vector.broadcast %314 : vector<8x1xi32> to vector<8x256xi32>
        %316 = arith.cmpi eq, %313, %315 : vector<8x256xi32>
        %317 = arith.extui %316 : vector<8x256xi1> to vector<8x256xi32>
        %318 = arith.sitofp %317 : vector<8x256xi32> to vector<8x256xf32>
        %c0_127 = arith.constant 0 : index
        %c0_128 = arith.constant 0 : index
        %319 = vector.load %arg8[%c0_127, %c0_128] : memref<8x256xf32, #tpu.memory_space<vmem>>, vector<8x256xf32>
        tpu.vector_store %arg8[%c0_127, %c0_128], %318 {strides = array<i32>} : memref<8x256xf32, #tpu.memory_space<vmem>>, vector<8x256xf32>,
      } else {
      }
      %c0_i32_123 = arith.constant 0 : i32
      %310 = arith.cmpi sgt, %arg0, %c0_i32_123 : i32
      %311 = arith.extui %310 : i1 to i32
      %c0_i32_124 = arith.constant 0 : i32
      %312 = arith.cmpi ne, %311, %c0_i32_124 : i32
      scf.if %312 {
        %c0_125 = arith.constant 0 : index
        %c0_126 = arith.constant 0 : index
        %313 = vector.load %arg7[%c0_125, %c0_126] : memref<8x256xf32, #tpu.memory_space<vmem>>, vector<8x256xf32>
        %314 = math.absf %313 : vector<8x256xf32>
        %cst_127 = arith.constant dense<0.000000e+00> : vector<8xf32>
        %315 = vector.multi_reduction <add>, %314, %cst_127 [1] : vector<8x256xf32> to vector<8xf32>
        %316 = vector.shape_cast %315 : vector<8xf32> to vector<8x1xf32>
        %cst_128 = arith.constant 9.99999997E-7 : f32
        %317 = vector.broadcast %cst_128 : f32 to vector<8x1xf32>
        %318 = arith.maximumf %316, %317 : vector<8x1xf32>
        %319 = tpu.reciprocal %318 : vector<8x1xf32> -> vector<8x1xf32>
        %320 = vector.broadcast %319 : vector<8x1xf32> to vector<8x256xf32>
        %321 = arith.mulf %313, %320 : vector<8x256xf32>
        %c0_129 = arith.constant 0 : index
        %c0_130 = arith.constant 0 : index
        %322 = vector.load %arg8[%c0_129, %c0_130] : memref<8x256xf32, #tpu.memory_space<vmem>>, vector<8x256xf32>
        tpu.vector_store %arg8[%c0_129, %c0_130], %321 {strides = array<i32>} : memref<8x256xf32, #tpu.memory_space<vmem>>, vector<8x256xf32>,
      } else {
      }
    } else {
    }
    %c0_i32_6 = arith.constant 0 : i32
    %14 = arith.cmpi eq, %arg2, %c0_i32_6 : i32
    %15 = arith.extui %14 : i1 to i32
    %c0_i32_7 = arith.constant 0 : i32
    %16 = arith.cmpi ne, %15, %c0_i32_7 : i32
    scf.if %16 {
      %c0_121 = arith.constant 0 : index
      %307 = arith.index_cast %1 : i32 to index
      %308 = vector.load %arg8[%c0_121, %307] : memref<8x256xf32, #tpu.memory_space<vmem>>, vector<8x128xf32>
      %c0_122 = arith.constant 0 : index
      %c0_123 = arith.constant 0 : index
      %c0_124 = arith.constant 0 : index
      %309 = vector.load %arg5[%c0_122, %c0_123, %c0_124] : memref<1x8x1xf32, #tpu.memory_space<vmem>>, vector<1x8x1xf32>
      %310 = vector.shape_cast %309 : vector<1x8x1xf32> to vector<8x1xf32>
      %311 = vector.broadcast %310 : vector<8x1xf32> to vector<8x128xf32>
      %312 = arith.mulf %308, %311 : vector<8x128xf32>
      %c0_125 = arith.constant 0 : index
      %313 = arith.index_cast %1 : i32 to index
      %314 = vector.load %arg7[%c0_125, %313] : memref<8x256xf32, #tpu.memory_space<vmem>>, vector<8x128xf32>
      tpu.vector_store %arg7[%c0_125, %313], %312 {strides = array<i32>} : memref<8x256xf32, #tpu.memory_space<vmem>>, vector<8x128xf32>,
    } else {
    }
    %c256_i32 = arith.constant 256 : i32
    %17 = arith.muli %arg2, %c256_i32 : i32
    %18 = arith.addi %17, %1 : i32
    %19 = tpu.assume_multiple %18, 128 : i32
    %cst = arith.constant 0.000000e+00 : f32
    %20 = vector.broadcast %cst : f32 to vector<1x128x128xf32>
    %c0_i32_8 = arith.constant 0 : i32
    %c128_i32_9 = arith.constant 128 : i32
    %21 = arith.muli %c0_i32_8, %c128_i32_9 : i32
    %22 = tpu.assume_multiple %21, 128 : i32
    %23 = arith.index_cast %19 : i32 to index
    %24 = arith.index_cast %22 : i32 to index
    %25 = vector.load %arg9[%23, %24] : memref<768x256xf32, #tpu.memory_space<vmem>>, vector<128x128xf32>
    %c0 = arith.constant 0 : index
    %26 = arith.index_cast %22 : i32 to index
    %27 = vector.load %arg8[%c0, %26] : memref<8x256xf32, #tpu.memory_space<vmem>>, vector<1x128xf32>
    %28 = vector.shape_cast %25 : vector<128x128xf32> to vector<1x128x128xf32>
    %29 = vector.shape_cast %27 : vector<1x128xf32> to vector<1x1x128xf32>
    %30 = vector.broadcast %29 : vector<1x1x128xf32> to vector<1x128x128xf32>
    %31 = arith.mulf %28, %30 : vector<1x128x128xf32>
    %32 = arith.maximumf %20, %31 : vector<1x128x128xf32>
    %c1_i32 = arith.constant 1 : i32
    %c128_i32_10 = arith.constant 128 : i32
    %33 = arith.muli %c1_i32, %c128_i32_10 : i32
    %34 = tpu.assume_multiple %33, 128 : i32
    %35 = arith.index_cast %19 : i32 to index
    %36 = arith.index_cast %34 : i32 to index
    %37 = vector.load %arg9[%35, %36] : memref<768x256xf32, #tpu.memory_space<vmem>>, vector<128x128xf32>
    %c0_11 = arith.constant 0 : index
    %38 = arith.index_cast %34 : i32 to index
    %39 = vector.load %arg8[%c0_11, %38] : memref<8x256xf32, #tpu.memory_space<vmem>>, vector<1x128xf32>
    %40 = vector.shape_cast %37 : vector<128x128xf32> to vector<1x128x128xf32>
    %41 = vector.shape_cast %39 : vector<1x128xf32> to vector<1x1x128xf32>
    %42 = vector.broadcast %41 : vector<1x1x128xf32> to vector<1x128x128xf32>
    %43 = arith.mulf %40, %42 : vector<1x128x128xf32>
    %44 = arith.maximumf %32, %43 : vector<1x128x128xf32>
    %c2_i32 = arith.constant 2 : i32
    %cst_12 = arith.constant dense<0xFF800000> : vector<1x128xf32>
    %45 = vector.multi_reduction <maximumf>, %44, %cst_12 [2] : vector<1x128x128xf32> to vector<1x128xf32>
    %c0_13 = arith.constant 0 : index
    %c0_14 = arith.constant 0 : index
    %c0_15 = arith.constant 0 : index
    %c0_16 = arith.constant 0 : index
    %46 = vector.load %arg4[%c0_13, %c0_14, %c0_15, %c0_16] : memref<1x1x8x1xf32, #tpu.memory_space<vmem>>, vector<1x1x1x1xf32>
    %47 = vector.shape_cast %46 : vector<1x1x1x1xf32> to vector<1x1xf32>
    %48 = vector.broadcast %47 : vector<1x1xf32> to vector<1x128xf32>
    %49 = arith.mulf %45, %48 : vector<1x128xf32>
    %c0_17 = arith.constant 0 : index
    %50 = arith.index_cast %1 : i32 to index
    %51 = vector.load %arg7[%c0_17, %50] : memref<8x256xf32, #tpu.memory_space<vmem>>, vector<1x128xf32>
    %52 = arith.maximumf %51, %49 : vector<1x128xf32>
    %c0_18 = arith.constant 0 : index
    %53 = arith.index_cast %1 : i32 to index
    %54 = vector.load %arg7[%c0_18, %53] : memref<8x256xf32, #tpu.memory_space<vmem>>, vector<1x128xf32>
    tpu.vector_store %arg7[%c0_18, %53], %52 {strides = array<i32>} : memref<8x256xf32, #tpu.memory_space<vmem>>, vector<1x128xf32>,
    %cst_19 = arith.constant 0.000000e+00 : f32
    %55 = vector.broadcast %cst_19 : f32 to vector<1x128x128xf32>
    %c0_i32_20 = arith.constant 0 : i32
    %c128_i32_21 = arith.constant 128 : i32
    %56 = arith.muli %c0_i32_20, %c128_i32_21 : i32
    %57 = tpu.assume_multiple %56, 128 : i32
    %58 = arith.index_cast %19 : i32 to index
    %59 = arith.index_cast %57 : i32 to index
    %60 = vector.load %arg9[%58, %59] : memref<768x256xf32, #tpu.memory_space<vmem>>, vector<128x128xf32>
    %c1 = arith.constant 1 : index
    %61 = arith.index_cast %57 : i32 to index
    %62 = vector.load %arg8[%c1, %61] : memref<8x256xf32, #tpu.memory_space<vmem>>, vector<1x128xf32>
    %63 = vector.shape_cast %60 : vector<128x128xf32> to vector<1x128x128xf32>
    %64 = vector.shape_cast %62 : vector<1x128xf32> to vector<1x1x128xf32>
    %65 = vector.broadcast %64 : vector<1x1x128xf32> to vector<1x128x128xf32>
    %66 = arith.mulf %63, %65 : vector<1x128x128xf32>
    %67 = arith.maximumf %55, %66 : vector<1x128x128xf32>
    %c1_i32_22 = arith.constant 1 : i32
    %c128_i32_23 = arith.constant 128 : i32
    %68 = arith.muli %c1_i32_22, %c128_i32_23 : i32
    %69 = tpu.assume_multiple %68, 128 : i32
    %70 = arith.index_cast %19 : i32 to index
    %71 = arith.index_cast %69 : i32 to index
    %72 = vector.load %arg9[%70, %71] : memref<768x256xf32, #tpu.memory_space<vmem>>, vector<128x128xf32>
    %c1_24 = arith.constant 1 : index
    %73 = arith.index_cast %69 : i32 to index
    %74 = vector.load %arg8[%c1_24, %73] : memref<8x256xf32, #tpu.memory_space<vmem>>, vector<1x128xf32>
    %75 = vector.shape_cast %72 : vector<128x128xf32> to vector<1x128x128xf32>
    %76 = vector.shape_cast %74 : vector<1x128xf32> to vector<1x1x128xf32>
    %77 = vector.broadcast %76 : vector<1x1x128xf32> to vector<1x128x128xf32>
    %78 = arith.mulf %75, %77 : vector<1x128x128xf32>
    %79 = arith.maximumf %67, %78 : vector<1x128x128xf32>
    %c2_i32_25 = arith.constant 2 : i32
    %cst_26 = arith.constant dense<0xFF800000> : vector<1x128xf32>
    %80 = vector.multi_reduction <maximumf>, %79, %cst_26 [2] : vector<1x128x128xf32> to vector<1x128xf32>
    %c0_27 = arith.constant 0 : index
    %c0_28 = arith.constant 0 : index
    %c1_29 = arith.constant 1 : index
    %c0_30 = arith.constant 0 : index
    %81 = vector.load %arg4[%c0_27, %c0_28, %c1_29, %c0_30] : memref<1x1x8x1xf32, #tpu.memory_space<vmem>>, vector<1x1x1x1xf32>
    %82 = vector.shape_cast %81 : vector<1x1x1x1xf32> to vector<1x1xf32>
    %83 = vector.broadcast %82 : vector<1x1xf32> to vector<1x128xf32>
    %84 = arith.mulf %80, %83 : vector<1x128xf32>
    %c1_31 = arith.constant 1 : index
    %85 = arith.index_cast %1 : i32 to index
    %86 = vector.load %arg7[%c1_31, %85] : memref<8x256xf32, #tpu.memory_space<vmem>>, vector<1x128xf32>
    %87 = arith.maximumf %86, %84 : vector<1x128xf32>
    %c1_32 = arith.constant 1 : index
    %88 = arith.index_cast %1 : i32 to index
    %89 = vector.load %arg7[%c1_32, %88] : memref<8x256xf32, #tpu.memory_space<vmem>>, vector<1x128xf32>
    tpu.vector_store %arg7[%c1_32, %88], %87 {strides = array<i32>} : memref<8x256xf32, #tpu.memory_space<vmem>>, vector<1x128xf32>,
    %cst_33 = arith.constant 0.000000e+00 : f32
    %90 = vector.broadcast %cst_33 : f32 to vector<1x128x128xf32>
    %c0_i32_34 = arith.constant 0 : i32
    %c128_i32_35 = arith.constant 128 : i32
    %91 = arith.muli %c0_i32_34, %c128_i32_35 : i32
    %92 = tpu.assume_multiple %91, 128 : i32
    %93 = arith.index_cast %19 : i32 to index
    %94 = arith.index_cast %92 : i32 to index
    %95 = vector.load %arg9[%93, %94] : memref<768x256xf32, #tpu.memory_space<vmem>>, vector<128x128xf32>
    %c2 = arith.constant 2 : index
    %96 = arith.index_cast %92 : i32 to index
    %97 = vector.load %arg8[%c2, %96] : memref<8x256xf32, #tpu.memory_space<vmem>>, vector<1x128xf32>
    %98 = vector.shape_cast %95 : vector<128x128xf32> to vector<1x128x128xf32>
    %99 = vector.shape_cast %97 : vector<1x128xf32> to vector<1x1x128xf32>
    %100 = vector.broadcast %99 : vector<1x1x128xf32> to vector<1x128x128xf32>
    %101 = arith.mulf %98, %100 : vector<1x128x128xf32>
    %102 = arith.maximumf %90, %101 : vector<1x128x128xf32>
    %c1_i32_36 = arith.constant 1 : i32
    %c128_i32_37 = arith.constant 128 : i32
    %103 = arith.muli %c1_i32_36, %c128_i32_37 : i32
    %104 = tpu.assume_multiple %103, 128 : i32
    %105 = arith.index_cast %19 : i32 to index
    %106 = arith.index_cast %104 : i32 to index
    %107 = vector.load %arg9[%105, %106] : memref<768x256xf32, #tpu.memory_space<vmem>>, vector<128x128xf32>
    %c2_38 = arith.constant 2 : index
    %108 = arith.index_cast %104 : i32 to index
    %109 = vector.load %arg8[%c2_38, %108] : memref<8x256xf32, #tpu.memory_space<vmem>>, vector<1x128xf32>
    %110 = vector.shape_cast %107 : vector<128x128xf32> to vector<1x128x128xf32>
    %111 = vector.shape_cast %109 : vector<1x128xf32> to vector<1x1x128xf32>
    %112 = vector.broadcast %111 : vector<1x1x128xf32> to vector<1x128x128xf32>
    %113 = arith.mulf %110, %112 : vector<1x128x128xf32>
    %114 = arith.maximumf %102, %113 : vector<1x128x128xf32>
    %c2_i32_39 = arith.constant 2 : i32
    %cst_40 = arith.constant dense<0xFF800000> : vector<1x128xf32>
    %115 = vector.multi_reduction <maximumf>, %114, %cst_40 [2] : vector<1x128x128xf32> to vector<1x128xf32>
    %c0_41 = arith.constant 0 : index
    %c0_42 = arith.constant 0 : index
    %c2_43 = arith.constant 2 : index
    %c0_44 = arith.constant 0 : index
    %116 = vector.load %arg4[%c0_41, %c0_42, %c2_43, %c0_44] : memref<1x1x8x1xf32, #tpu.memory_space<vmem>>, vector<1x1x1x1xf32>
    %117 = vector.shape_cast %116 : vector<1x1x1x1xf32> to vector<1x1xf32>
    %118 = vector.broadcast %117 : vector<1x1xf32> to vector<1x128xf32>
    %119 = arith.mulf %115, %118 : vector<1x128xf32>
    %c2_45 = arith.constant 2 : index
    %120 = arith.index_cast %1 : i32 to index
    %121 = vector.load %arg7[%c2_45, %120] : memref<8x256xf32, #tpu.memory_space<vmem>>, vector<1x128xf32>
    %122 = arith.maximumf %121, %119 : vector<1x128xf32>
    %c2_46 = arith.constant 2 : index
    %123 = arith.index_cast %1 : i32 to index
    %124 = vector.load %arg7[%c2_46, %123] : memref<8x256xf32, #tpu.memory_space<vmem>>, vector<1x128xf32>
    tpu.vector_store %arg7[%c2_46, %123], %122 {strides = array<i32>} : memref<8x256xf32, #tpu.memory_space<vmem>>, vector<1x128xf32>,
    %cst_47 = arith.constant 0.000000e+00 : f32
    %125 = vector.broadcast %cst_47 : f32 to vector<1x128x128xf32>
    %c0_i32_48 = arith.constant 0 : i32
    %c128_i32_49 = arith.constant 128 : i32
    %126 = arith.muli %c0_i32_48, %c128_i32_49 : i32
    %127 = tpu.assume_multiple %126, 128 : i32
    %128 = arith.index_cast %19 : i32 to index
    %129 = arith.index_cast %127 : i32 to index
    %130 = vector.load %arg9[%128, %129] : memref<768x256xf32, #tpu.memory_space<vmem>>, vector<128x128xf32>
    %c3 = arith.constant 3 : index
    %131 = arith.index_cast %127 : i32 to index
    %132 = vector.load %arg8[%c3, %131] : memref<8x256xf32, #tpu.memory_space<vmem>>, vector<1x128xf32>
    %133 = vector.shape_cast %130 : vector<128x128xf32> to vector<1x128x128xf32>
    %134 = vector.shape_cast %132 : vector<1x128xf32> to vector<1x1x128xf32>
    %135 = vector.broadcast %134 : vector<1x1x128xf32> to vector<1x128x128xf32>
    %136 = arith.mulf %133, %135 : vector<1x128x128xf32>
    %137 = arith.maximumf %125, %136 : vector<1x128x128xf32>
    %c1_i32_50 = arith.constant 1 : i32
    %c128_i32_51 = arith.constant 128 : i32
    %138 = arith.muli %c1_i32_50, %c128_i32_51 : i32
    %139 = tpu.assume_multiple %138, 128 : i32
    %140 = arith.index_cast %19 : i32 to index
    %141 = arith.index_cast %139 : i32 to index
    %142 = vector.load %arg9[%140, %141] : memref<768x256xf32, #tpu.memory_space<vmem>>, vector<128x128xf32>
    %c3_52 = arith.constant 3 : index
    %143 = arith.index_cast %139 : i32 to index
    %144 = vector.load %arg8[%c3_52, %143] : memref<8x256xf32, #tpu.memory_space<vmem>>, vector<1x128xf32>
    %145 = vector.shape_cast %142 : vector<128x128xf32> to vector<1x128x128xf32>
    %146 = vector.shape_cast %144 : vector<1x128xf32> to vector<1x1x128xf32>
    %147 = vector.broadcast %146 : vector<1x1x128xf32> to vector<1x128x128xf32>
    %148 = arith.mulf %145, %147 : vector<1x128x128xf32>
    %149 = arith.maximumf %137, %148 : vector<1x128x128xf32>
    %c2_i32_53 = arith.constant 2 : i32
    %cst_54 = arith.constant dense<0xFF800000> : vector<1x128xf32>
    %150 = vector.multi_reduction <maximumf>, %149, %cst_54 [2] : vector<1x128x128xf32> to vector<1x128xf32>
    %c0_55 = arith.constant 0 : index
    %c0_56 = arith.constant 0 : index
    %c3_57 = arith.constant 3 : index
    %c0_58 = arith.constant 0 : index
    %151 = vector.load %arg4[%c0_55, %c0_56, %c3_57, %c0_58] : memref<1x1x8x1xf32, #tpu.memory_space<vmem>>, vector<1x1x1x1xf32>
    %152 = vector.shape_cast %151 : vector<1x1x1x1xf32> to vector<1x1xf32>
    %153 = vector.broadcast %152 : vector<1x1xf32> to vector<1x128xf32>
    %154 = arith.mulf %150, %153 : vector<1x128xf32>
    %c3_59 = arith.constant 3 : index
    %155 = arith.index_cast %1 : i32 to index
    %156 = vector.load %arg7[%c3_59, %155] : memref<8x256xf32, #tpu.memory_space<vmem>>, vector<1x128xf32>
    %157 = arith.maximumf %156, %154 : vector<1x128xf32>
    %c3_60 = arith.constant 3 : index
    %158 = arith.index_cast %1 : i32 to index
    %159 = vector.load %arg7[%c3_60, %158] : memref<8x256xf32, #tpu.memory_space<vmem>>, vector<1x128xf32>
    tpu.vector_store %arg7[%c3_60, %158], %157 {strides = array<i32>} : memref<8x256xf32, #tpu.memory_space<vmem>>, vector<1x128xf32>,
    %cst_61 = arith.constant 0.000000e+00 : f32
    %160 = vector.broadcast %cst_61 : f32 to vector<1x128x128xf32>
    %c0_i32_62 = arith.constant 0 : i32
    %c128_i32_63 = arith.constant 128 : i32
    %161 = arith.muli %c0_i32_62, %c128_i32_63 : i32
    %162 = tpu.assume_multiple %161, 128 : i32
    %163 = arith.index_cast %19 : i32 to index
    %164 = arith.index_cast %162 : i32 to index
    %165 = vector.load %arg9[%163, %164] : memref<768x256xf32, #tpu.memory_space<vmem>>, vector<128x128xf32>
    %c4 = arith.constant 4 : index
    %166 = arith.index_cast %162 : i32 to index
    %167 = vector.load %arg8[%c4, %166] : memref<8x256xf32, #tpu.memory_space<vmem>>, vector<1x128xf32>
    %168 = vector.shape_cast %165 : vector<128x128xf32> to vector<1x128x128xf32>
    %169 = vector.shape_cast %167 : vector<1x128xf32> to vector<1x1x128xf32>
    %170 = vector.broadcast %169 : vector<1x1x128xf32> to vector<1x128x128xf32>
    %171 = arith.mulf %168, %170 : vector<1x128x128xf32>
    %172 = arith.maximumf %160, %171 : vector<1x128x128xf32>
    %c1_i32_64 = arith.constant 1 : i32
    %c128_i32_65 = arith.constant 128 : i32
    %173 = arith.muli %c1_i32_64, %c128_i32_65 : i32
    %174 = tpu.assume_multiple %173, 128 : i32
    %175 = arith.index_cast %19 : i32 to index
    %176 = arith.index_cast %174 : i32 to index
    %177 = vector.load %arg9[%175, %176] : memref<768x256xf32, #tpu.memory_space<vmem>>, vector<128x128xf32>
    %c4_66 = arith.constant 4 : index
    %178 = arith.index_cast %174 : i32 to index
    %179 = vector.load %arg8[%c4_66, %178] : memref<8x256xf32, #tpu.memory_space<vmem>>, vector<1x128xf32>
    %180 = vector.shape_cast %177 : vector<128x128xf32> to vector<1x128x128xf32>
    %181 = vector.shape_cast %179 : vector<1x128xf32> to vector<1x1x128xf32>
    %182 = vector.broadcast %181 : vector<1x1x128xf32> to vector<1x128x128xf32>
    %183 = arith.mulf %180, %182 : vector<1x128x128xf32>
    %184 = arith.maximumf %172, %183 : vector<1x128x128xf32>
    %c2_i32_67 = arith.constant 2 : i32
    %cst_68 = arith.constant dense<0xFF800000> : vector<1x128xf32>
    %185 = vector.multi_reduction <maximumf>, %184, %cst_68 [2] : vector<1x128x128xf32> to vector<1x128xf32>
    %c0_69 = arith.constant 0 : index
    %c0_70 = arith.constant 0 : index
    %c4_71 = arith.constant 4 : index
    %c0_72 = arith.constant 0 : index
    %186 = vector.load %arg4[%c0_69, %c0_70, %c4_71, %c0_72] : memref<1x1x8x1xf32, #tpu.memory_space<vmem>>, vector<1x1x1x1xf32>
    %187 = vector.shape_cast %186 : vector<1x1x1x1xf32> to vector<1x1xf32>
    %188 = vector.broadcast %187 : vector<1x1xf32> to vector<1x128xf32>
    %189 = arith.mulf %185, %188 : vector<1x128xf32>
    %c4_73 = arith.constant 4 : index
    %190 = arith.index_cast %1 : i32 to index
    %191 = vector.load %arg7[%c4_73, %190] : memref<8x256xf32, #tpu.memory_space<vmem>>, vector<1x128xf32>
    %192 = arith.maximumf %191, %189 : vector<1x128xf32>
    %c4_74 = arith.constant 4 : index
    %193 = arith.index_cast %1 : i32 to index
    %194 = vector.load %arg7[%c4_74, %193] : memref<8x256xf32, #tpu.memory_space<vmem>>, vector<1x128xf32>
    tpu.vector_store %arg7[%c4_74, %193], %192 {strides = array<i32>} : memref<8x256xf32, #tpu.memory_space<vmem>>, vector<1x128xf32>,
    %cst_75 = arith.constant 0.000000e+00 : f32
    %195 = vector.broadcast %cst_75 : f32 to vector<1x128x128xf32>
    %c0_i32_76 = arith.constant 0 : i32
    %c128_i32_77 = arith.constant 128 : i32
    %196 = arith.muli %c0_i32_76, %c128_i32_77 : i32
    %197 = tpu.assume_multiple %196, 128 : i32
    %198 = arith.index_cast %19 : i32 to index
    %199 = arith.index_cast %197 : i32 to index
    %200 = vector.load %arg9[%198, %199] : memref<768x256xf32, #tpu.memory_space<vmem>>, vector<128x128xf32>
    %c5 = arith.constant 5 : index
    %201 = arith.index_cast %197 : i32 to index
    %202 = vector.load %arg8[%c5, %201] : memref<8x256xf32, #tpu.memory_space<vmem>>, vector<1x128xf32>
    %203 = vector.shape_cast %200 : vector<128x128xf32> to vector<1x128x128xf32>
    %204 = vector.shape_cast %202 : vector<1x128xf32> to vector<1x1x128xf32>
    %205 = vector.broadcast %204 : vector<1x1x128xf32> to vector<1x128x128xf32>
    %206 = arith.mulf %203, %205 : vector<1x128x128xf32>
    %207 = arith.maximumf %195, %206 : vector<1x128x128xf32>
    %c1_i32_78 = arith.constant 1 : i32
    %c128_i32_79 = arith.constant 128 : i32
    %208 = arith.muli %c1_i32_78, %c128_i32_79 : i32
    %209 = tpu.assume_multiple %208, 128 : i32
    %210 = arith.index_cast %19 : i32 to index
    %211 = arith.index_cast %209 : i32 to index
    %212 = vector.load %arg9[%210, %211] : memref<768x256xf32, #tpu.memory_space<vmem>>, vector<128x128xf32>
    %c5_80 = arith.constant 5 : index
    %213 = arith.index_cast %209 : i32 to index
    %214 = vector.load %arg8[%c5_80, %213] : memref<8x256xf32, #tpu.memory_space<vmem>>, vector<1x128xf32>
    %215 = vector.shape_cast %212 : vector<128x128xf32> to vector<1x128x128xf32>
    %216 = vector.shape_cast %214 : vector<1x128xf32> to vector<1x1x128xf32>
    %217 = vector.broadcast %216 : vector<1x1x128xf32> to vector<1x128x128xf32>
    %218 = arith.mulf %215, %217 : vector<1x128x128xf32>
    %219 = arith.maximumf %207, %218 : vector<1x128x128xf32>
    %c2_i32_81 = arith.constant 2 : i32
    %cst_82 = arith.constant dense<0xFF800000> : vector<1x128xf32>
    %220 = vector.multi_reduction <maximumf>, %219, %cst_82 [2] : vector<1x128x128xf32> to vector<1x128xf32>
    %c0_83 = arith.constant 0 : index
    %c0_84 = arith.constant 0 : index
    %c5_85 = arith.constant 5 : index
    %c0_86 = arith.constant 0 : index
    %221 = vector.load %arg4[%c0_83, %c0_84, %c5_85, %c0_86] : memref<1x1x8x1xf32, #tpu.memory_space<vmem>>, vector<1x1x1x1xf32>
    %222 = vector.shape_cast %221 : vector<1x1x1x1xf32> to vector<1x1xf32>
    %223 = vector.broadcast %222 : vector<1x1xf32> to vector<1x128xf32>
    %224 = arith.mulf %220, %223 : vector<1x128xf32>
    %c5_87 = arith.constant 5 : index
    %225 = arith.index_cast %1 : i32 to index
    %226 = vector.load %arg7[%c5_87, %225] : memref<8x256xf32, #tpu.memory_space<vmem>>, vector<1x128xf32>
    %227 = arith.maximumf %226, %224 : vector<1x128xf32>
    %c5_88 = arith.constant 5 : index
    %228 = arith.index_cast %1 : i32 to index
    %229 = vector.load %arg7[%c5_88, %228] : memref<8x256xf32, #tpu.memory_space<vmem>>, vector<1x128xf32>
    tpu.vector_store %arg7[%c5_88, %228], %227 {strides = array<i32>} : memref<8x256xf32, #tpu.memory_space<vmem>>, vector<1x128xf32>,
    %cst_89 = arith.constant 0.000000e+00 : f32
    %230 = vector.broadcast %cst_89 : f32 to vector<1x128x128xf32>
    %c0_i32_90 = arith.constant 0 : i32
    %c128_i32_91 = arith.constant 128 : i32
    %231 = arith.muli %c0_i32_90, %c128_i32_91 : i32
    %232 = tpu.assume_multiple %231, 128 : i32
    %233 = arith.index_cast %19 : i32 to index
    %234 = arith.index_cast %232 : i32 to index
    %235 = vector.load %arg9[%233, %234] : memref<768x256xf32, #tpu.memory_space<vmem>>, vector<128x128xf32>
    %c6 = arith.constant 6 : index
    %236 = arith.index_cast %232 : i32 to index
    %237 = vector.load %arg8[%c6, %236] : memref<8x256xf32, #tpu.memory_space<vmem>>, vector<1x128xf32>
    %238 = vector.shape_cast %235 : vector<128x128xf32> to vector<1x128x128xf32>
    %239 = vector.shape_cast %237 : vector<1x128xf32> to vector<1x1x128xf32>
    %240 = vector.broadcast %239 : vector<1x1x128xf32> to vector<1x128x128xf32>
    %241 = arith.mulf %238, %240 : vector<1x128x128xf32>
    %242 = arith.maximumf %230, %241 : vector<1x128x128xf32>
    %c1_i32_92 = arith.constant 1 : i32
    %c128_i32_93 = arith.constant 128 : i32
    %243 = arith.muli %c1_i32_92, %c128_i32_93 : i32
    %244 = tpu.assume_multiple %243, 128 : i32
    %245 = arith.index_cast %19 : i32 to index
    %246 = arith.index_cast %244 : i32 to index
    %247 = vector.load %arg9[%245, %246] : memref<768x256xf32, #tpu.memory_space<vmem>>, vector<128x128xf32>
    %c6_94 = arith.constant 6 : index
    %248 = arith.index_cast %244 : i32 to index
    %249 = vector.load %arg8[%c6_94, %248] : memref<8x256xf32, #tpu.memory_space<vmem>>, vector<1x128xf32>
    %250 = vector.shape_cast %247 : vector<128x128xf32> to vector<1x128x128xf32>
    %251 = vector.shape_cast %249 : vector<1x128xf32> to vector<1x1x128xf32>
    %252 = vector.broadcast %251 : vector<1x1x128xf32> to vector<1x128x128xf32>
    %253 = arith.mulf %250, %252 : vector<1x128x128xf32>
    %254 = arith.maximumf %242, %253 : vector<1x128x128xf32>
    %c2_i32_95 = arith.constant 2 : i32
    %cst_96 = arith.constant dense<0xFF800000> : vector<1x128xf32>
    %255 = vector.multi_reduction <maximumf>, %254, %cst_96 [2] : vector<1x128x128xf32> to vector<1x128xf32>
    %c0_97 = arith.constant 0 : index
    %c0_98 = arith.constant 0 : index
    %c6_99 = arith.constant 6 : index
    %c0_100 = arith.constant 0 : index
    %256 = vector.load %arg4[%c0_97, %c0_98, %c6_99, %c0_100] : memref<1x1x8x1xf32, #tpu.memory_space<vmem>>, vector<1x1x1x1xf32>
    %257 = vector.shape_cast %256 : vector<1x1x1x1xf32> to vector<1x1xf32>
    %258 = vector.broadcast %257 : vector<1x1xf32> to vector<1x128xf32>
    %259 = arith.mulf %255, %258 : vector<1x128xf32>
    %c6_101 = arith.constant 6 : index
    %260 = arith.index_cast %1 : i32 to index
    %261 = vector.load %arg7[%c6_101, %260] : memref<8x256xf32, #tpu.memory_space<vmem>>, vector<1x128xf32>
    %262 = arith.maximumf %261, %259 : vector<1x128xf32>
    %c6_102 = arith.constant 6 : index
    %263 = arith.index_cast %1 : i32 to index
    %264 = vector.load %arg7[%c6_102, %263] : memref<8x256xf32, #tpu.memory_space<vmem>>, vector<1x128xf32>
    tpu.vector_store %arg7[%c6_102, %263], %262 {strides = array<i32>} : memref<8x256xf32, #tpu.memory_space<vmem>>, vector<1x128xf32>,
    %cst_103 = arith.constant 0.000000e+00 : f32
    %265 = vector.broadcast %cst_103 : f32 to vector<1x128x128xf32>
    %c0_i32_104 = arith.constant 0 : i32
    %c128_i32_105 = arith.constant 128 : i32
    %266 = arith.muli %c0_i32_104, %c128_i32_105 : i32
    %267 = tpu.assume_multiple %266, 128 : i32
    %268 = arith.index_cast %19 : i32 to index
    %269 = arith.index_cast %267 : i32 to index
    %270 = vector.load %arg9[%268, %269] : memref<768x256xf32, #tpu.memory_space<vmem>>, vector<128x128xf32>
    %c7 = arith.constant 7 : index
    %271 = arith.index_cast %267 : i32 to index
    %272 = vector.load %arg8[%c7, %271] : memref<8x256xf32, #tpu.memory_space<vmem>>, vector<1x128xf32>
    %273 = vector.shape_cast %270 : vector<128x128xf32> to vector<1x128x128xf32>
    %274 = vector.shape_cast %272 : vector<1x128xf32> to vector<1x1x128xf32>
    %275 = vector.broadcast %274 : vector<1x1x128xf32> to vector<1x128x128xf32>
    %276 = arith.mulf %273, %275 : vector<1x128x128xf32>
    %277 = arith.maximumf %265, %276 : vector<1x128x128xf32>
    %c1_i32_106 = arith.constant 1 : i32
    %c128_i32_107 = arith.constant 128 : i32
    %278 = arith.muli %c1_i32_106, %c128_i32_107 : i32
    %279 = tpu.assume_multiple %278, 128 : i32
    %280 = arith.index_cast %19 : i32 to index
    %281 = arith.index_cast %279 : i32 to index
    %282 = vector.load %arg9[%280, %281] : memref<768x256xf32, #tpu.memory_space<vmem>>, vector<128x128xf32>
    %c7_108 = arith.constant 7 : index
    %283 = arith.index_cast %279 : i32 to index
    %284 = vector.load %arg8[%c7_108, %283] : memref<8x256xf32, #tpu.memory_space<vmem>>, vector<1x128xf32>
    %285 = vector.shape_cast %282 : vector<128x128xf32> to vector<1x128x128xf32>
    %286 = vector.shape_cast %284 : vector<1x128xf32> to vector<1x1x128xf32>
    %287 = vector.broadcast %286 : vector<1x1x128xf32> to vector<1x128x128xf32>
    %288 = arith.mulf %285, %287 : vector<1x128x128xf32>
    %289 = arith.maximumf %277, %288 : vector<1x128x128xf32>
    %c2_i32_109 = arith.constant 2 : i32
    %cst_110 = arith.constant dense<0xFF800000> : vector<1x128xf32>
    %290 = vector.multi_reduction <maximumf>, %289, %cst_110 [2] : vector<1x128x128xf32> to vector<1x128xf32>
    %c0_111 = arith.constant 0 : index
    %c0_112 = arith.constant 0 : index
    %c7_113 = arith.constant 7 : index
    %c0_114 = arith.constant 0 : index
    %291 = vector.load %arg4[%c0_111, %c0_112, %c7_113, %c0_114] : memref<1x1x8x1xf32, #tpu.memory_space<vmem>>, vector<1x1x1x1xf32>
    %292 = vector.shape_cast %291 : vector<1x1x1x1xf32> to vector<1x1xf32>
    %293 = vector.broadcast %292 : vector<1x1xf32> to vector<1x128xf32>
    %294 = arith.mulf %290, %293 : vector<1x128xf32>
    %c7_115 = arith.constant 7 : index
    %295 = arith.index_cast %1 : i32 to index
    %296 = vector.load %arg7[%c7_115, %295] : memref<8x256xf32, #tpu.memory_space<vmem>>, vector<1x128xf32>
    %297 = arith.maximumf %296, %294 : vector<1x128xf32>
    %c7_116 = arith.constant 7 : index
    %298 = arith.index_cast %1 : i32 to index
    %299 = vector.load %arg7[%c7_116, %298] : memref<8x256xf32, #tpu.memory_space<vmem>>, vector<1x128xf32>
    tpu.vector_store %arg7[%c7_116, %298], %297 {strides = array<i32>} : memref<8x256xf32, #tpu.memory_space<vmem>>, vector<1x128xf32>,
    %c1_i32_117 = arith.constant 1 : i32
    %300 = arith.cmpi eq, %arg0, %c1_i32_117 : i32
    %c1_i32_118 = arith.constant 1 : i32
    %301 = arith.cmpi eq, %arg1, %c1_i32_118 : i32
    %c2_i32_119 = arith.constant 2 : i32
    %302 = arith.cmpi eq, %arg2, %c2_i32_119 : i32
    %303 = arith.andi %301, %302 : i1
    %304 = arith.andi %300, %303 : i1
    %305 = arith.extui %304 : i1 to i32
    %c0_i32_120 = arith.constant 0 : i32
    %306 = arith.cmpi ne, %305, %c0_i32_120 : i32
    scf.if %306 {
      %c0_121 = arith.constant 0 : index
      %c0_122 = arith.constant 0 : index
      %307 = vector.load %arg7[%c0_121, %c0_122] : memref<8x256xf32, #tpu.memory_space<vmem>>, vector<8x256xf32>
      %308 = math.absf %307 : vector<8x256xf32>
      %cst_123 = arith.constant dense<0.000000e+00> : vector<8xf32>
      %309 = vector.multi_reduction <add>, %308, %cst_123 [1] : vector<8x256xf32> to vector<8xf32>
      %310 = vector.shape_cast %309 : vector<8xf32> to vector<8x1xf32>
      %cst_124 = arith.constant 9.99999997E-7 : f32
      %311 = vector.broadcast %cst_124 : f32 to vector<8x1xf32>
      %312 = arith.maximumf %310, %311 : vector<8x1xf32>
      %313 = tpu.reciprocal %312 : vector<8x1xf32> -> vector<8x1xf32>
      %314 = vector.broadcast %313 : vector<8x1xf32> to vector<8x256xf32>
      %315 = arith.mulf %307, %314 : vector<8x256xf32>
      %c0_125 = arith.constant 0 : index
      %c0_126 = arith.constant 0 : index
      %316 = vector.load %arg7[%c0_125, %c0_126] : memref<8x256xf32, #tpu.memory_space<vmem>>, vector<8x256xf32>
      tpu.vector_store %arg7[%c0_125, %c0_126], %315 {strides = array<i32>} : memref<8x256xf32, #tpu.memory_space<vmem>>, vector<8x256xf32>,
    } else {
    }
    return
  }
  func.func @transform_0(%arg0: i32, %arg1: i32, %arg2: i32) -> (i32, i32) {
    %c0_i32 = arith.constant 0 : i32
    %c0_i32_0 = arith.constant 0 : i32
    %c0_i32_1 = arith.constant 0 : i32
    return %c0_i32, %c0_i32_0 : i32, i32
  }
  func.func @transform_1(%arg0: i32, %arg1: i32, %arg2: i32) -> (i32, i32, i32, i32) {
    %c0_i32 = arith.constant 0 : i32
    %c0_i32_0 = arith.constant 0 : i32
    %c0_i32_1 = arith.constant 0 : i32
    return %arg0, %arg2, %c0_i32, %c0_i32_0 : i32, i32, i32, i32
  }
  func.func @transform_2(%arg0: i32, %arg1: i32, %arg2: i32) -> (i32, i32, i32) {
    %c0_i32 = arith.constant 0 : i32
    %c0_i32_0 = arith.constant 0 : i32
    %c0_i32_1 = arith.constant 0 : i32
    return %arg0, %c0_i32, %c0_i32_0 : i32, i32, i32
  }
  func.func @transform_4(%arg0: i32, %arg1: i32, %arg2: i32) -> (i32, i32) {
    %c0_i32 = arith.constant 0 : i32
    %c0_i32_0 = arith.constant 0 : i32
    %c0_i32_1 = arith.constant 0 : i32
    return %c0_i32, %c0_i32_0 : i32, i32
  }
}

</mosaic_0001>

<llo_original>
// kernel: tpu_custom_call.1
$region0: #{tpu_custom_call.1}
  #allocation0 [shape = 'u32[]', space=smem, size = 0x4, offset = 0x4, fixed_abs, tag = 'smem constant byte address 0x4 - core index']
  #allocation1 [shape = 'u32[144,128]{1,0:T(1,128)}', space=vmem, size = 0x12000, scoped, tag = 'internal scratch']
  #allocation2 [shape = 'f32[8,256]{1,0:T(8,128)}', space=vmem, size = 0x2000, scoped, tag = 'scratch operand']
  #allocation3 [shape = 'f32[768,256]{1,0:T(8,128)}', space=vmem, size = 0xc0000, scoped, tag = 'scratch operand']
  #allocation7 [shape = 's32[]', space=sflag, size = 0x4, offset = 0, fixed_abs, tag = 'sflag constant byte address 0x0 - dummy sync flag']
  #allocation8 [shape = 's32[]', space=sflag, size = 0x4, offset = 0, fixed_abs, tag = 'sflag constant byte address 0x0 - dummy sync flag']
  #allocation9 [shape = 'u32[]', space=smem, size = 0x4, offset = 0x44, fixed_abs, tag = 'smem constant byte address 0x44 - assertion arg 0']
  #allocation10 [shape = 'u32[]', space=smem, size = 0x4, offset = 0x48, fixed_abs, tag = 'smem constant byte address 0x48 - assertion arg 1']
  %s0 = inlined_call_operand.vmem [shape: s32[8,1], index: 0, kind: input, shape index: {}]
  %s1 = inlined_call_operand.vmem [shape: f32[2,3,8,1], index: 1, kind: input, shape index: {}]
  %s2 = inlined_call_operand.vmem [shape: f32[2,8,1], index: 2, kind: input, shape index: {}]
  %s3 = inlined_call_operand.hbm [shape: f32[768,256], index: 3, kind: input, shape index: {}]
  %s4 = inlined_call_operand.hbm [shape: f32[8,256], index: 4, kind: output, shape index: {}]
  %s5 = sld [smem:[#allocation0]]
  $region74: #{tpu_custom_call.1} parent=0
    _
  %s7 = ssub.s32 1, %s5
  %s8 = scalar_select 0, %s7, %s5
  $region1: #{tpu_custom_call.1} parent=0
    #allocation4 [shape = 'u8[8192]{0}', space=vmem, size = 0x2000, scoped, tag = 'output window, operand 0, single buffered']
    #allocation5 [shape = 's32[2]{0}', space=sflag, size = 0x8, scoped, tag = 'scoped memory for tpu_custom_call.1']
    %9 = vsyncpa [#allocation5], 0
    loop: start=0, step=1, limit=14
    $region2: #{tpu_custom_call.1} parent=1 // loop_pre_header
      _
    $region3: #{tpu_custom_call.1} parent=1 // loop_header
      %s11 = sphi 0, %s15
      %p12 = scmp.ge.s32.totalorder %s11, 14
      %s18 = sphi 0, %s37
      %s19 = sphi 0, %s33
      %s20 = sphi 0, %s29
      %s21 = sphi 0, %s18
      %s22 = sphi 0, %s19
      %s23 = sphi 0, %s20
      %s24 = sphi 0, %s21
      %s25 = sphi 0, %s22
      %s26 = sphi 0, %s23
      %s38 = sphi 0, %s38
      %s40 = sphi 0, %s38
      %s41 = sphi 0, %s40
      %s55 = sphi 0, %s41
      %s63 = sphi 0, %s65
      %s66 = sphi 0, %s63
      %s67 = sphi 0, %s66
      %s83 = sphi 0, %s67
      %s89 = sphi 0, %s91
      %s92 = sphi 0, %s89
      %s93 = sphi 0, %s92
      %s109 = sphi 0, %s93
      %s113 = sphi 0, %s113
      %s115 = sphi 0, %s113
      %s116 = sphi 0, %s115
      %s130 = sphi 0, %s116
    $region4: #{tpu_custom_call.1} parent=1 // loop_header_branch
      %14 = sbr.rel (%p12) target = $region8
    $region5: #{tpu_custom_call.1} parent=1 // loop_body
      %s16 = ssub.s32 %s11, 1
      %s17 = ssub.s32 %s11, 2
      %s27 = sadd.s32 1, %s20
      %p28 = scmp.ge.s32.totalorder %s27, 3
      %s29 = scalar_select %p28, 0, %s27
      %s30 = sadd.s32 1, %s19
      %s31 = scalar_select %p28, %s30, %s19
      %p32 = scmp.ge.s32.totalorder %s31, 2
      %s33 = scalar_select %p32, 0, %s31
      %s34 = sadd.s32 1, %s18
      %s35 = scalar_select %p32, %s34, %s18
      %p36 = scmp.ge.s32.totalorder %s35, 2
      %s37 = scalar_select %p36, 0, %s35
      %s39 = sadd.s32 %s38, 1
      %p42 = scmp.eq.s32.totalorder %s11, 11
      %p43 = scmp.ne.s32.totalorder %s38, %s40
      %p44 = scmp.eq.s32.totalorder %s11, 0
      %p45 = por %p43, %p44
      %p46 = scmp.ne.s32.totalorder %s38, %s40
      %p47 = scmp.eq.s32.totalorder %s16, 11
      %p48 = por %p46, %p47
      %p49 = scmp.ne.s32.totalorder %s40, %s41
      %p50 = scmp.eq.s32.totalorder %s16, 0
      %p51 = por %p49, %p50
      %p52 = scmp.ne.s32.totalorder %s40, %s41
      %p53 = scmp.eq.s32.totalorder %s17, 11
      %p54 = por %p52, %p53
      %p56 = scmp.ne.s32.totalorder %s41, %s55
      %p57 = scmp.eq.s32.totalorder %s17, 0
      %p58 = por %p56, %p57
      %s59 = ssub.s32 %s18, %s37
      %s60 = ssub.s32 %s20, %s29
      %s61 = sor.u32 %s59, %s60
      %p62 = scmp.eq.s32.totalorder %s61, 0
      %s64 = sadd.s32 %s63, 1
      %s65 = scalar_select %p62, %s63, %s64
      %p68 = pneg %p62
      %p69 = scmp.eq.s32.totalorder %s11, 11
      %p70 = por %p68, %p69
      %p71 = scmp.ne.s32.totalorder %s63, %s66
      %p72 = scmp.eq.s32.totalorder %s11, 0
      %p73 = por %p71, %p72
      %p74 = scmp.ne.s32.totalorder %s63, %s66
      %p75 = scmp.eq.s32.totalorder %s16, 11
      %p76 = por %p74, %p75
      %p77 = scmp.ne.s32.totalorder %s66, %s67
      %p78 = scmp.eq.s32.totalorder %s16, 0
      %p79 = por %p77, %p78
      %p80 = scmp.ne.s32.totalorder %s66, %s67
      %p81 = scmp.eq.s32.totalorder %s17, 11
      %p82 = por %p80, %p81
      %p84 = scmp.ne.s32.totalorder %s67, %s83
      %p85 = scmp.eq.s32.totalorder %s17, 0
      %p86 = por %p84, %p85
      %s87 = ssub.s32 %s18, %s37
      %p88 = scmp.eq.s32.totalorder %s87, 0
      %s90 = sadd.s32 %s89, 1
      %s91 = scalar_select %p88, %s89, %s90
      %p94 = pneg %p88
      %p95 = scmp.eq.s32.totalorder %s11, 11
      %p96 = por %p94, %p95
      %p97 = scmp.ne.s32.totalorder %s89, %s92
      %p98 = scmp.eq.s32.totalorder %s11, 0
      %p99 = por %p97, %p98
      %p100 = scmp.ne.s32.totalorder %s89, %s92
      %p101 = scmp.eq.s32.totalorder %s16, 11
      %p102 = por %p100, %p101
      %p103 = scmp.ne.s32.totalorder %s92, %s93
      %p104 = scmp.eq.s32.totalorder %s16, 0
      %p105 = por %p103, %p104
      %p106 = scmp.ne.s32.totalorder %s92, %s93
      %p107 = scmp.eq.s32.totalorder %s17, 11
      %p108 = por %p106, %p107
      %p110 = scmp.ne.s32.totalorder %s93, %s109
      %p111 = scmp.eq.s32.totalorder %s17, 0
      %p112 = por %p110, %p111
      %s114 = sadd.s32 %s113, 1
      %p117 = scmp.eq.s32.totalorder %s11, 11
      %p118 = scmp.ne.s32.totalorder %s113, %s115
      %p119 = scmp.eq.s32.totalorder %s11, 0
      %p120 = por %p118, %p119
      %p121 = scmp.ne.s32.totalorder %s113, %s115
      %p122 = scmp.eq.s32.totalorder %s16, 11
      %p123 = por %p121, %p122
      %p124 = scmp.ne.s32.totalorder %s115, %s116
      %p125 = scmp.eq.s32.totalorder %s16, 0
      %p126 = por %p124, %p125
      %p127 = scmp.ne.s32.totalorder %s115, %s116
      %p128 = scmp.eq.s32.totalorder %s17, 11
      %p129 = por %p127, %p128
      %p131 = scmp.ne.s32.totalorder %s116, %s130
      %p132 = scmp.eq.s32.totalorder %s17, 0
      %p133 = por %p131, %p132
      %p134 = scmp.le.s32.totalorder 1, %s11
      %p135 = scmp.lt.s32.totalorder %s11, 13
      %p136 = pnand %p134, %p135
      %p137 = pneg %p136
      // Predicated region
      $region9: #{tpu_custom_call.1} parent=5 // pred_check
        _
      $region10: #{tpu_custom_call.1} parent=5 // pred_check_branch
        %139 = sbr.rel (%p136) target = $region12
      $region11: #{tpu_custom_call.1} parent=5 // pred_region
        %s140 = ssub.s32 %s11, 1
        // Predicated region
        $region13: #{tpu_custom_call.1} parent=11 // pred_check
          %p141 = pneg %p51
        $region14: #{tpu_custom_call.1} parent=11 // pred_check_branch
          %143 = sbr.rel (%p141) target = $region16
        $region15: #{tpu_custom_call.1} parent=11 // pred_region
          _
        $region16: #{tpu_custom_call.1} parent=11 // pred_fallthru
          _
      $region12: #{tpu_custom_call.1} parent=5 // pred_fallthru
        _
      %p144 = scmp.lt.s32.totalorder %s11, 12
      // Predicated region
      $region17: #{tpu_custom_call.1} parent=5 // pred_check
        %p145 = pneg %p144
      $region18: #{tpu_custom_call.1} parent=5 // pred_check_branch
        %147 = sbr.rel (%p145) target = $region20
      $region19: #{tpu_custom_call.1} parent=5 // pred_region
        // Predicated region
        $region21: #{tpu_custom_call.1} parent=19 // pred_check
          %p148 = pneg %p73
        $region22: #{tpu_custom_call.1} parent=19 // pred_check_branch
          %150 = sbr.rel (%p148) target = $region24
        $region23: #{tpu_custom_call.1} parent=19 // pred_region
          %p151 = scmp.lt.s32.totalorder %s18, 1
          %s152 = scalar_select %p151, %s18, 1
          %p153 = scmp.lt.s32.totalorder %s20, 2
          %s154 = scalar_select %p153, %s20, 2
          %s155 = smul.addr %s152, 3
          %s156 = sadd.s32 %s154, %s155
          %s157 = smul.addr %s156, 8
          %s158 = scalar_lea.vmem %s1, %s157
        $region24: #{tpu_custom_call.1} parent=19 // pred_fallthru
          _
        // Predicated region
        $region25: #{tpu_custom_call.1} parent=19 // pred_check
          %p159 = pneg %p99
        $region26: #{tpu_custom_call.1} parent=19 // pred_check_branch
          %161 = sbr.rel (%p159) target = $region28
        $region27: #{tpu_custom_call.1} parent=19 // pred_region
          %p162 = scmp.lt.s32.totalorder %s18, 1
          %s163 = scalar_select %p162, %s18, 1
          %s164 = smul.addr %s163, 8
          %s165 = scalar_lea.vmem %s2, %s164
        $region28: #{tpu_custom_call.1} parent=19 // pred_fallthru
          _
      $region20: #{tpu_custom_call.1} parent=5 // pred_fallthru
        _
      %p166 = scmp.le.s32.totalorder 1, %s11
      %p167 = scmp.lt.s32.totalorder %s11, 13
      %p168 = pnand %p166, %p167
      %p169 = pneg %p168
      // Predicated region
      $region29: #{tpu_custom_call.1} parent=5 // pred_check
        _
      $region30: #{tpu_custom_call.1} parent=5 // pred_check_branch
        %171 = sbr.rel (%p168) target = $region32
      $region31: #{tpu_custom_call.1} parent=5 // pred_region
        %s172 = ssub.s32 %s11, 1
        %p173 = pneg %p51
        %p174 = pneg %p48
        %p175 = scmp.lt.s32.totalorder %s21, 1
        %s176 = scalar_select %p175, %s21, 1
        %p177 = scmp.lt.s32.totalorder %s23, 2
        %s178 = scalar_select %p177, %s23, 2
        %s179 = smul.addr %s176, 3
        %s180 = sadd.s32 %s178, %s179
        %s181 = smul.addr %s180, 8
        %s182 = scalar_lea.vmem %s1, %s181
        %p183 = pneg %p79
        %p184 = pneg %p76
        %p185 = scmp.lt.s32.totalorder %s21, 1
        %s186 = scalar_select %p185, %s21, 1
        %s187 = smul.addr %s186, 8
        %s188 = scalar_lea.vmem %s2, %s187
        %p189 = pneg %p105
        %p190 = pneg %p102
        %p191 = pneg %p126
        %p192 = pneg %p123
        %p193 = scmp.lt.s32.totalorder %s21, 1
        %s194 = scalar_select %p193, %s21, 1
        %p195 = scmp.lt.s32.totalorder %s23, 2
        %s196 = scalar_select %p195, %s23, 2
        %s197 = smul.addr %s194, 3
        %s198 = sadd.s32 %s196, %s197
        %s199 = smul.addr %s198, 8
        %s200 = scalar_lea.vmem %s1, %s199
        %p201 = scmp.lt.s32.totalorder %s21, 1
        %s202 = scalar_select %p201, %s21, 1
        %s203 = smul.addr %s202, 8
        %s204 = scalar_lea.vmem %s2, %s203
        %s205 = smul.u32 %s22, 128
        %p206 = scmp.eq.s32.totalorder %s21, 0
        %p207 = scmp.eq.s32.totalorder %s22, 0
        %p208 = scmp.eq.s32.totalorder %s23, 0
        %p209 = pnand %p207, %p208
        %p210 = pneg %p209
        %p211 = pnand %p206, %p210
        %p212 = pneg %p211
        // Predicated region
        $region33: #{tpu_custom_call.1} parent=31 // pred_check
          _
        $region34: #{tpu_custom_call.1} parent=31 // pred_check_branch
          %214 = sbr.rel (%p211) target = $region36
        $region35: #{tpu_custom_call.1} parent=31 // pred_region
          $region37: #{tpu_custom_call.1} parent=35
            #allocation6 [shape = 's32[1]{0}', space=sflag, size = 0x4, scoped, tag = 'scoped memory for tpu_custom_call.1']
            // Predicated region
            $region38: #{tpu_custom_call.1} parent=37 // pred_check
              _
            $region39: #{tpu_custom_call.1} parent=37 // pred_check_branch
              %216 = sbr.rel target = $region41
            $region40: #{tpu_custom_call.1} parent=37 // pred_region
              %217 = sst [smem:[#allocation9]] [#allocation8]
              %218 = sst [smem:[#allocation10]] [#allocation7]
            $region41: #{tpu_custom_call.1} parent=37 // pred_fallthru
              _
            %220 = shalt.err (0)
            %s222 = sshll.u32 [#allocation3], 4
            %s223 = int_to_ptr.vmem [resolvable:$true] %s222
            %225 = dma.hbm_to_vmem [thread:$0]  %s3, 24576, %s223, [#allocation6]
            %s226 = smul.u32 8, 96
            %s227 = smul.u32 %s226, 2
            %s228 = sshll.u32 %s227, 4
            %229 = dma.done [#allocation6], %s228
        $region36: #{tpu_custom_call.1} parent=31 // pred_fallthru
          _
        // Predicated region
        $region42: #{tpu_custom_call.1} parent=31 // pred_check
          _
        $region43: #{tpu_custom_call.1} parent=31 // pred_check_branch
          %231 = sbr.rel (%p209) target = $region45
        $region44: #{tpu_custom_call.1} parent=31 // pred_region
          // Predicated region
          $region46: #{tpu_custom_call.1} parent=44 // pred_check
            %p232 = pneg %p206
          $region47: #{tpu_custom_call.1} parent=44 // pred_check_branch
            %234 = sbr.rel (%p232) target = $region49
          $region48: #{tpu_custom_call.1} parent=44 // pred_region
            %v235 = vlaneseq
            %v236 = vand.u32 %v235, 127
            %v237 = vadd.s32 %v236, 128
            %v238 = vld [vmem:[%s0] sm:$0xff]
            %239 = vset.pattern.permute.xlu0 0
            %240 = vperm.xlu0 %239, %v238
            %v241 = vpop.permute.xlu0 %240
            %vm242 = vcmp.eq.s32.totalorder %v236, %v241
            %vm243 = vcmp.eq.s32.totalorder %v237, %v241
            %v244 = vsel %vm242, 1, 0
            %v245 = vsel %vm243, 1, 0
            %v246 = vcvt.s32.f32 %v244
            %v247 = vcvt.s32.f32 %v245
            %248 = vst [vmem:[#allocation2] sm:$0xff] %v246
            %249 = vst [vmem:[#allocation2 + $0x8] sm:$0xff] %v247
          $region49: #{tpu_custom_call.1} parent=44 // pred_fallthru
            _
          %p250 = scmp.gt.s32.totalorder %s21, 0
          // Predicated region
          $region50: #{tpu_custom_call.1} parent=44 // pred_check
            %p251 = pneg %p250
          $region51: #{tpu_custom_call.1} parent=44 // pred_check_branch
            %253 = sbr.rel (%p251) target = $region53
          $region52: #{tpu_custom_call.1} parent=44 // pred_region
            %v254 = vld [vmem:[#allocation4] sm:$0xff]
            %v255 = vld [vmem:[#allocation4 + $0x8] sm:$0xff]
            %v256 = vand.u32 2147483647, %v254
            %v257 = vand.u32 2147483647, %v255
            %v258 = vadd.f32 %v256, %v257
            %259 = vadd.xlane.f32.xlu0 %v258
            %v260 = vpop.xlane.xlu0 %259
            %v261 = vmax.f32 %v260, 1e-06
            %v262 = vrcp.pop %v261
            %v263 = vmul.f32 %v254, %v262
            %v264 = vmul.f32 %v255, %v262
            %265 = vst [vmem:[#allocation2] sm:$0xff] %v263
            %266 = vst [vmem:[#allocation2 + $0x8] sm:$0xff] %v264
          $region53: #{tpu_custom_call.1} parent=44 // pred_fallthru
            _
        $region45: #{tpu_custom_call.1} parent=31 // pred_fallthru
          _
        // Predicated region
        $region54: #{tpu_custom_call.1} parent=31 // pred_check
          %p267 = pneg %p208
        $region55: #{tpu_custom_call.1} parent=31 // pred_check_branch
          %269 = sbr.rel (%p267) target = $region57
        $region56: #{tpu_custom_call.1} parent=31 // pred_region
          %s270 = sshra.s32 %s205, 7
          %s271 = sand.u32 %s205, 127
          %s272 = smul.addr %s270, 8
          %s273 = scalar_lea.vmem [#allocation2], %s272
          %v274 = vld [vmem:[%s273] sm:$0xff]
          %v275 = vld [vmem:[%s204] sm:$0xff]
          %277 = vset.pattern.permute.xlu0 0
          %278 = vperm.xlu0 %277, %v275
          %v279 = vpop.permute.xlu0 %278
          %v281 = vmul.f32 %v274, %v279
          %s282 = smul.addr %s270, 8
          %s283 = scalar_lea.vmem [#allocation4], %s282
          %284 = vst [vmem:[%s283] sm:$0xff] %v281
        $region57: #{tpu_custom_call.1} parent=31 // pred_fallthru
          _
        %s285 = smul.u32 %s23, 256
        %s286 = sadd.s32 %s285, %s205
        %s287 = sshra.s32 %s286, 3
        %s288 = sand.u32 %s286, 7
        %s289 = smul.u32 %s287, 2
        %s290 = sadd.s32 0, %s289
        %s291 = smul.addr %s290, 8
        %s292 = scalar_lea.vmem [#allocation3], %s291
        %v293 = vld [vmem:[%s292] sm:$0xff]
        %v294 = vld [vmem:[%s292 + $0x10] sm:$0xff]
        %v295 = vld [vmem:[%s292 + $0x20] sm:$0xff]
        %v296 = vld [vmem:[%s292 + $0x30] sm:$0xff]
        %v297 = vld [vmem:[%s292 + $0x40] sm:$0xff]
        %v298 = vld [vmem:[%s292 + $0x50] sm:$0xff]
        %v299 = vld [vmem:[%s292 + $0x60] sm:$0xff]
        %v300 = vld [vmem:[%s292 + $0x70] sm:$0xff]
        %v301 = vld [vmem:[%s292 + $0x80] sm:$0xff]
        %v302 = vld [vmem:[%s292 + $0x90] sm:$0xff]
        %v303 = vld [vmem:[%s292 + $0xa0] sm:$0xff]
        %v304 = vld [vmem:[%s292 + $0xb0] sm:$0xff]
        %v305 = vld [vmem:[%s292 + $0xc0] sm:$0xff]
        %v306 = vld [vmem:[%s292 + $0xd0] sm:$0xff]
        %v307 = vld [vmem:[%s292 + $0xe0] sm:$0xff]
        %v308 = vld [vmem:[%s292 + $0xf0] sm:$0xff]
        %v309 = vld [vmem:[#allocation2] ss:$0 sm:$0xff]
        %v310 = vmul.f32 %v293, %v309
        %v311 = vmul.f32 %v294, %v309
        %v312 = vmul.f32 %v295, %v309
        %v313 = vmul.f32 %v296, %v309
        %v314 = vmul.f32 %v297, %v309
        %v315 = vmul.f32 %v298, %v309
        %v316 = vmul.f32 %v299, %v309
        %v317 = vmul.f32 %v300, %v309
        %v318 = vmul.f32 %v301, %v309
        %v319 = vmul.f32 %v302, %v309
        %v320 = vmul.f32 %v303, %v309
        %v321 = vmul.f32 %v304, %v309
        %v322 = vmul.f32 %v305, %v309
        %v323 = vmul.f32 %v306, %v309
        %v324 = vmul.f32 %v307, %v309
        %v325 = vmul.f32 %v308, %v309
        %v326 = vmax.f32 %v310, 0.0
        %v327 = vmax.f32 %v311, 0.0
        %v328 = vmax.f32 %v312, 0.0
        %v329 = vmax.f32 %v313, 0.0
        %v330 = vmax.f32 %v314, 0.0
        %v331 = vmax.f32 %v315, 0.0
        %v332 = vmax.f32 %v316, 0.0
        %v333 = vmax.f32 %v317, 0.0
        %v334 = vmax.f32 %v318, 0.0
        %v335 = vmax.f32 %v319, 0.0
        %v336 = vmax.f32 %v320, 0.0
        %v337 = vmax.f32 %v321, 0.0
        %v338 = vmax.f32 %v322, 0.0
        %v339 = vmax.f32 %v323, 0.0
        %v340 = vmax.f32 %v324, 0.0
        %v341 = vmax.f32 %v325, 0.0
        %s342 = sadd.s32 1, %s289
        %s343 = smul.addr %s342, 8
        %s344 = scalar_lea.vmem [#allocation3], %s343
        %v345 = vld [vmem:[%s344] sm:$0xff]
        %v346 = vld [vmem:[%s344 + $0x10] sm:$0xff]
        %v347 = vld [vmem:[%s344 + $0x20] sm:$0xff]
        %v348 = vld [vmem:[%s344 + $0x30] sm:$0xff]
        %v349 = vld [vmem:[%s344 + $0x40] sm:$0xff]
        %v350 = vld [vmem:[%s344 + $0x50] sm:$0xff]
        %v351 = vld [vmem:[%s344 + $0x60] sm:$0xff]
        %v352 = vld [vmem:[%s344 + $0x70] sm:$0xff]
        %v353 = vld [vmem:[%s344 + $0x80] sm:$0xff]
        %v354 = vld [vmem:[%s344 + $0x90] sm:$0xff]
        %v355 = vld [vmem:[%s344 + $0xa0] sm:$0xff]
        %v356 = vld [vmem:[%s344 + $0xb0] sm:$0xff]
        %v357 = vld [vmem:[%s344 + $0xc0] sm:$0xff]
        %v358 = vld [vmem:[%s344 + $0xd0] sm:$0xff]
        %v359 = vld [vmem:[%s344 + $0xe0] sm:$0xff]
        %v360 = vld [vmem:[%s344 + $0xf0] sm:$0xff]
        %s361 = scalar_lea.vmem [#allocation2], 8
        %v362 = vld [vmem:[%s361] ss:$0 sm:$0xff]
        %v363 = vmul.f32 %v345, %v362
        %v364 = vmul.f32 %v346, %v362
        %v365 = vmul.f32 %v347, %v362
        %v366 = vmul.f32 %v348, %v362
        %v367 = vmul.f32 %v349, %v362
        %v368 = vmul.f32 %v350, %v362
        %v369 = vmul.f32 %v351, %v362
        %v370 = vmul.f32 %v352, %v362
        %v371 = vmul.f32 %v353, %v362
        %v372 = vmul.f32 %v354, %v362
        %v373 = vmul.f32 %v355, %v362
        %v374 = vmul.f32 %v356, %v362
        %v375 = vmul.f32 %v357, %v362
        %v376 = vmul.f32 %v358, %v362
        %v377 = vmul.f32 %v359, %v362
        %v378 = vmul.f32 %v360, %v362
        %v379 = vmax.f32 %v326, %v363
        %v380 = vmax.f32 %v327, %v364
        %v381 = vmax.f32 %v328, %v365
        %v382 = vmax.f32 %v329, %v366
        %v383 = vmax.f32 %v330, %v367
        %v384 = vmax.f32 %v331, %v368
        %v385 = vmax.f32 %v332, %v369
        %v386 = vmax.f32 %v333, %v370
        %v387 = vmax.f32 %v334, %v371
        %v388 = vmax.f32 %v335, %v372
        %v389 = vmax.f32 %v336, %v373
        %v390 = vmax.f32 %v337, %v374
        %v391 = vmax.f32 %v338, %v375
        %v392 = vmax.f32 %v339, %v376
        %v393 = vmax.f32 %v340, %v377
        %v394 = vmax.f32 %v341, %v378
        %395 = vmax.xlane.f32.xlu0 %v379
        %v396 = vpop.xlane.xlu0 %395
        %397 = vmax.xlane.f32.xlu0 %v380
        %v398 = vpop.xlane.xlu0 %397
        %399 = vmax.xlane.f32.xlu0 %v381
        %v400 = vpop.xlane.xlu0 %399
        %401 = vmax.xlane.f32.xlu0 %v382
        %v402 = vpop.xlane.xlu0 %401
        %403 = vmax.xlane.f32.xlu0 %v383
        %v404 = vpop.xlane.xlu0 %403
        %405 = vmax.xlane.f32.xlu0 %v384
        %v406 = vpop.xlane.xlu0 %405
        %407 = vmax.xlane.f32.xlu0 %v385
        %v408 = vpop.xlane.xlu0 %407
        %409 = vmax.xlane.f32.xlu0 %v386
        %v410 = vpop.xlane.xlu0 %409
        %411 = vmax.xlane.f32.xlu0 %v387
        %v412 = vpop.xlane.xlu0 %411
        %413 = vmax.xlane.f32.xlu0 %v388
        %v414 = vpop.xlane.xlu0 %413
        %415 = vmax.xlane.f32.xlu0 %v389
        %v416 = vpop.xlane.xlu0 %415
        %417 = vmax.xlane.f32.xlu0 %v390
        %v418 = vpop.xlane.xlu0 %417
        %419 = vmax.xlane.f32.xlu0 %v391
        %v420 = vpop.xlane.xlu0 %419
        %421 = vmax.xlane.f32.xlu0 %v392
        %v422 = vpop.xlane.xlu0 %421
        %423 = vmax.xlane.f32.xlu0 %v393
        %v424 = vpop.xlane.xlu0 %423
        %425 = vmax.xlane.f32.xlu0 %v394
        %v426 = vpop.xlane.xlu0 %425
        %v427 = vld [vmem:[%s200] sm:$0x1]
        %429 = vset.pattern.permute.xlu0 0
        %430 = vperm.xlu0 %429, %v427
        %v431 = vpop.permute.xlu0 %430
        %v432 = vlaneseq
        %v433 = vshrl.u32 %v432, 7
        %v434 = vsub.s32 0, %v433
        %v435 = vrot.slane %v431, %v434
        %v437 = vmul.f32 %v396, %v435
        %v438 = vmul.f32 %v398, %v435
        %v439 = vmul.f32 %v400, %v435
        %v440 = vmul.f32 %v402, %v435
        %v441 = vmul.f32 %v404, %v435
        %v442 = vmul.f32 %v406, %v435
        %v443 = vmul.f32 %v408, %v435
        %v444 = vmul.f32 %v410, %v435
        %v445 = vmul.f32 %v412, %v435
        %v446 = vmul.f32 %v414, %v435
        %v447 = vmul.f32 %v416, %v435
        %v448 = vmul.f32 %v418, %v435
        %v449 = vmul.f32 %v420, %v435
        %v450 = vmul.f32 %v422, %v435
        %v451 = vmul.f32 %v424, %v435
        %v452 = vmul.f32 %v426, %v435
        %s453 = sshra.s32 %s205, 7
        %s454 = sand.u32 %s205, 127
        %s455 = smul.addr %s453, 8
        %s456 = scalar_lea.vmem [#allocation4], %s455
        %v457 = vld [vmem:[%s456] ss:$0 sm:$0xff]
        %474 = vset.pattern.permute.xlu0 0
        %475 = vperm.xlu0 %474, %v437
        %v476 = vpop.permute.xlu0 %475
        %477 = vset.pattern.permute.xlu0 0
        %478 = vperm.xlu0 %477, %v438
        %v479 = vpop.permute.xlu0 %478
        %480 = vset.pattern.permute.xlu0 0
        %481 = vperm.xlu0 %480, %v439
        %v482 = vpop.permute.xlu0 %481
        %483 = vset.pattern.permute.xlu0 0
        %484 = vperm.xlu0 %483, %v440
        %v485 = vpop.permute.xlu0 %484
        %486 = vset.pattern.permute.xlu0 0
        %487 = vperm.xlu0 %486, %v441
        %v488 = vpop.permute.xlu0 %487
        %489 = vset.pattern.permute.xlu0 0
        %490 = vperm.xlu0 %489, %v442
        %v491 = vpop.permute.xlu0 %490
        %492 = vset.pattern.permute.xlu0 0
        %493 = vperm.xlu0 %492, %v443
        %v494 = vpop.permute.xlu0 %493
        %495 = vset.pattern.permute.xlu0 0
        %496 = vperm.xlu0 %495, %v444
        %v497 = vpop.permute.xlu0 %496
        %498 = vset.pattern.permute.xlu0 0
        %499 = vperm.xlu0 %498, %v445
        %v500 = vpop.permute.xlu0 %499
        %501 = vset.pattern.permute.xlu0 0
        %502 = vperm.xlu0 %501, %v446
        %v503 = vpop.permute.xlu0 %502
        %504 = vset.pattern.permute.xlu0 0
        %505 = vperm.xlu0 %504, %v447
        %v506 = vpop.permute.xlu0 %505
        %507 = vset.pattern.permute.xlu0 0
        %508 = vperm.xlu0 %507, %v448
        %v509 = vpop.permute.xlu0 %508
        %510 = vset.pattern.permute.xlu0 0
        %511 = vperm.xlu0 %510, %v449
        %v512 = vpop.permute.xlu0 %511
        %513 = vset.pattern.permute.xlu0 0
        %514 = vperm.xlu0 %513, %v450
        %v515 = vpop.permute.xlu0 %514
        %516 = vset.pattern.permute.xlu0 0
        %517 = vperm.xlu0 %516, %v451
        %v518 = vpop.permute.xlu0 %517
        %519 = vset.pattern.permute.xlu0 0
        %520 = vperm.xlu0 %519, %v452
        %v521 = vpop.permute.xlu0 %520
        %v522 = vlaneseq
        %v523 = vand.u32 %v522, 127
        %v524 = vlaneseq
        %v525 = vshrl.u32 %v524, 7
        %v526 = vsub.s32 %v523, %v525
        %v527 = vrot.slane %v476, %v526
        %v528 = vadd.s32 %v523, 4294967288
        %v529 = vlaneseq
        %v530 = vshrl.u32 %v529, 7
        %v531 = vsub.s32 %v528, %v530
        %v532 = vrot.slane %v479, %v531
        %vm533 = vcmask 130112
        %v534 = vsel %vm533, %v532, %v527
        %v535 = vadd.s32 %v523, 4294967280
        %v536 = vlaneseq
        %v537 = vshrl.u32 %v536, 7
        %v538 = vsub.s32 %v535, %v537
        %v539 = vrot.slane %v482, %v538
        %vm540 = vcmask 195712
        %v541 = vsel %vm540, %v539, %v534
        %v542 = vadd.s32 %v523, 4294967272
        %v543 = vlaneseq
        %v544 = vshrl.u32 %v543, 7
        %v545 = vsub.s32 %v542, %v544
        %v546 = vrot.slane %v485, %v545
        %vm547 = vcmask 261312
        %v548 = vsel %vm547, %v546, %v541
        %v549 = vadd.s32 %v523, 4294967264
        %v550 = vlaneseq
        %v551 = vshrl.u32 %v550, 7
        %v552 = vsub.s32 %v549, %v551
        %v553 = vrot.slane %v488, %v552
        %vm554 = vcmask 326912
        %v555 = vsel %vm554, %v553, %v548
        %v556 = vadd.s32 %v523, 4294967256
        %v557 = vlaneseq
        %v558 = vshrl.u32 %v557, 7
        %v559 = vsub.s32 %v556, %v558
        %v560 = vrot.slane %v491, %v559
        %vm561 = vcmask 392512
        %v562 = vsel %vm561, %v560, %v555
        %v563 = vadd.s32 %v523, 4294967248
        %v564 = vlaneseq
        %v565 = vshrl.u32 %v564, 7
        %v566 = vsub.s32 %v563, %v565
        %v567 = vrot.slane %v494, %v566
        %vm568 = vcmask 458112
        %v569 = vsel %vm568, %v567, %v562
        %v570 = vadd.s32 %v523, 4294967240
        %v571 = vlaneseq
        %v572 = vshrl.u32 %v571, 7
        %v573 = vsub.s32 %v570, %v572
        %v574 = vrot.slane %v497, %v573
        %vm575 = vcmask 523712
        %v576 = vsel %vm575, %v574, %v569
        %v577 = vadd.s32 %v523, 4294967232
        %v578 = vlaneseq
        %v579 = vshrl.u32 %v578, 7
        %v580 = vsub.s32 %v577, %v579
        %v581 = vrot.slane %v500, %v580
        %vm582 = vcmask 589312
        %v583 = vsel %vm582, %v581, %v576
        %v584 = vadd.s32 %v523, 4294967224
        %v585 = vlaneseq
        %v586 = vshrl.u32 %v585, 7
        %v587 = vsub.s32 %v584, %v586
        %v588 = vrot.slane %v503, %v587
        %vm589 = vcmask 654912
        %v590 = vsel %vm589, %v588, %v583
        %v591 = vadd.s32 %v523, 4294967216
        %v592 = vlaneseq
        %v593 = vshrl.u32 %v592, 7
        %v594 = vsub.s32 %v591, %v593
        %v595 = vrot.slane %v506, %v594
        %vm596 = vcmask 720512
        %v597 = vsel %vm596, %v595, %v590
        %v598 = vadd.s32 %v523, 4294967208
        %v599 = vlaneseq
        %v600 = vshrl.u32 %v599, 7
        %v601 = vsub.s32 %v598, %v600
        %v602 = vrot.slane %v509, %v601
        %vm603 = vcmask 786112
        %v604 = vsel %vm603, %v602, %v597
        %v605 = vadd.s32 %v523, 4294967200
        %v606 = vlaneseq
        %v607 = vshrl.u32 %v606, 7
        %v608 = vsub.s32 %v605, %v607
        %v609 = vrot.slane %v512, %v608
        %vm610 = vcmask 851712
        %v611 = vsel %vm610, %v609, %v604
        %v612 = vadd.s32 %v523, 4294967192
        %v613 = vlaneseq
        %v614 = vshrl.u32 %v613, 7
        %v615 = vsub.s32 %v612, %v614
        %v616 = vrot.slane %v515, %v615
        %vm617 = vcmask 917312
        %v618 = vsel %vm617, %v616, %v611
        %v619 = vadd.s32 %v523, 4294967184
        %v620 = vlaneseq
        %v621 = vshrl.u32 %v620, 7
        %v622 = vsub.s32 %v619, %v621
        %v623 = vrot.slane %v518, %v622
        %vm624 = vcmask 982912
        %v625 = vsel %vm624, %v623, %v618
        %v626 = vadd.s32 %v523, 4294967176
        %v627 = vlaneseq
        %v628 = vshrl.u32 %v627, 7
        %v629 = vsub.s32 %v626, %v628
        %v630 = vrot.slane %v521, %v629
        %vm631 = vcmask 1048512
        %v632 = vsel %vm631, %v630, %v625
        %v634 = vmax.f32 %v457, %v632
        %635 = vst [vmem:[%s456] sm:$0x1] %v634
        %v636 = vld [vmem:[%s292] sm:$0xff]
        %v637 = vld [vmem:[%s292 + $0x10] sm:$0xff]
        %v638 = vld [vmem:[%s292 + $0x20] sm:$0xff]
        %v639 = vld [vmem:[%s292 + $0x30] sm:$0xff]
        %v640 = vld [vmem:[%s292 + $0x40] sm:$0xff]
        %v641 = vld [vmem:[%s292 + $0x50] sm:$0xff]
        %v642 = vld [vmem:[%s292 + $0x60] sm:$0xff]
        %v643 = vld [vmem:[%s292 + $0x70] sm:$0xff]
        %v644 = vld [vmem:[%s292 + $0x80] sm:$0xff]
        %v645 = vld [vmem:[%s292 + $0x90] sm:$0xff]
        %v646 = vld [vmem:[%s292 + $0xa0] sm:$0xff]
        %v647 = vld [vmem:[%s292 + $0xb0] sm:$0xff]
        %v648 = vld [vmem:[%s292 + $0xc0] sm:$0xff]
        %v649 = vld [vmem:[%s292 + $0xd0] sm:$0xff]
        %v650 = vld [vmem:[%s292 + $0xe0] sm:$0xff]
        %v651 = vld [vmem:[%s292 + $0xf0] sm:$0xff]
        %v652 = vld [vmem:[#allocation2 + $0x1] ss:$0 sm:$0xff]
        %v653 = vmul.f32 %v636, %v652
        %v654 = vmul.f32 %v637, %v652
        %v655 = vmul.f32 %v638, %v652
        %v656 = vmul.f32 %v639, %v652
        %v657 = vmul.f32 %v640, %v652
        %v658 = vmul.f32 %v641, %v652
        %v659 = vmul.f32 %v642, %v652
        %v660 = vmul.f32 %v643, %v652
        %v661 = vmul.f32 %v644, %v652
        %v662 = vmul.f32 %v645, %v652
        %v663 = vmul.f32 %v646, %v652
        %v664 = vmul.f32 %v647, %v652
        %v665 = vmul.f32 %v648, %v652
        %v666 = vmul.f32 %v649, %v652
        %v667 = vmul.f32 %v650, %v652
        %v668 = vmul.f32 %v651, %v652
        %v669 = vmax.f32 %v653, 0.0
        %v670 = vmax.f32 %v654, 0.0
        %v671 = vmax.f32 %v655, 0.0
        %v672 = vmax.f32 %v656, 0.0
        %v673 = vmax.f32 %v657, 0.0
        %v674 = vmax.f32 %v658, 0.0
        %v675 = vmax.f32 %v659, 0.0
        %v676 = vmax.f32 %v660, 0.0
        %v677 = vmax.f32 %v661, 0.0
        %v678 = vmax.f32 %v662, 0.0
        %v679 = vmax.f32 %v663, 0.0
        %v680 = vmax.f32 %v664, 0.0
        %v681 = vmax.f32 %v665, 0.0
        %v682 = vmax.f32 %v666, 0.0
        %v683 = vmax.f32 %v667, 0.0
        %v684 = vmax.f32 %v668, 0.0
        %v685 = vld [vmem:[%s344] sm:$0xff]
        %v686 = vld [vmem:[%s344 + $0x10] sm:$0xff]
        %v687 = vld [vmem:[%s344 + $0x20] sm:$0xff]
        %v688 = vld [vmem:[%s344 + $0x30] sm:$0xff]
        %v689 = vld [vmem:[%s344 + $0x40] sm:$0xff]
        %v690 = vld [vmem:[%s344 + $0x50] sm:$0xff]
        %v691 = vld [vmem:[%s344 + $0x60] sm:$0xff]
        %v692 = vld [vmem:[%s344 + $0x70] sm:$0xff]
        %v693 = vld [vmem:[%s344 + $0x80] sm:$0xff]
        %v694 = vld [vmem:[%s344 + $0x90] sm:$0xff]
        %v695 = vld [vmem:[%s344 + $0xa0] sm:$0xff]
        %v696 = vld [vmem:[%s344 + $0xb0] sm:$0xff]
        %v697 = vld [vmem:[%s344 + $0xc0] sm:$0xff]
        %v698 = vld [vmem:[%s344 + $0xd0] sm:$0xff]
        %v699 = vld [vmem:[%s344 + $0xe0] sm:$0xff]
        %v700 = vld [vmem:[%s344 + $0xf0] sm:$0xff]
        %v701 = vld [vmem:[%s361 + $0x1] ss:$0 sm:$0xff]
        %v702 = vmul.f32 %v685, %v701
        %v703 = vmul.f32 %v686, %v701
        %v704 = vmul.f32 %v687, %v701
        %v705 = vmul.f32 %v688, %v701
        %v706 = vmul.f32 %v689, %v701
        %v707 = vmul.f32 %v690, %v701
        %v708 = vmul.f32 %v691, %v701
        %v709 = vmul.f32 %v692, %v701
        %v710 = vmul.f32 %v693, %v701
        %v711 = vmul.f32 %v694, %v701
        %v712 = vmul.f32 %v695, %v701
        %v713 = vmul.f32 %v696, %v701
        %v714 = vmul.f32 %v697, %v701
        %v715 = vmul.f32 %v698, %v701
        %v716 = vmul.f32 %v699, %v701
        %v717 = vmul.f32 %v700, %v701
        %v718 = vmax.f32 %v669, %v702
        %v719 = vmax.f32 %v670, %v703
        %v720 = vmax.f32 %v671, %v704
        %v721 = vmax.f32 %v672, %v705
        %v722 = vmax.f32 %v673, %v706
        %v723 = vmax.f32 %v674, %v707
        %v724 = vmax.f32 %v675, %v708
        %v725 = vmax.f32 %v676, %v709
        %v726 = vmax.f32 %v677, %v710
        %v727 = vmax.f32 %v678, %v711
        %v728 = vmax.f32 %v679, %v712
        %v729 = vmax.f32 %v680, %v713
        %v730 = vmax.f32 %v681, %v714
        %v731 = vmax.f32 %v682, %v715
        %v732 = vmax.f32 %v683, %v716
        %v733 = vmax.f32 %v684, %v717
        %734 = vmax.xlane.f32.xlu0 %v718
        %v735 = vpop.xlane.xlu0 %734
        %736 = vmax.xlane.f32.xlu0 %v719
        %v737 = vpop.xlane.xlu0 %736
        %738 = vmax.xlane.f32.xlu0 %v720
        %v739 = vpop.xlane.xlu0 %738
        %740 = vmax.xlane.f32.xlu0 %v721
        %v741 = vpop.xlane.xlu0 %740
        %742 = vmax.xlane.f32.xlu0 %v722
        %v743 = vpop.xlane.xlu0 %742
        %744 = vmax.xlane.f32.xlu0 %v723
        %v745 = vpop.xlane.xlu0 %744
        %746 = vmax.xlane.f32.xlu0 %v724
        %v747 = vpop.xlane.xlu0 %746
        %748 = vmax.xlane.f32.xlu0 %v725
        %v749 = vpop.xlane.xlu0 %748
        %750 = vmax.xlane.f32.xlu0 %v726
        %v751 = vpop.xlane.xlu0 %750
        %752 = vmax.xlane.f32.xlu0 %v727
        %v753 = vpop.xlane.xlu0 %752
        %754 = vmax.xlane.f32.xlu0 %v728
        %v755 = vpop.xlane.xlu0 %754
        %756 = vmax.xlane.f32.xlu0 %v729
        %v757 = vpop.xlane.xlu0 %756
        %758 = vmax.xlane.f32.xlu0 %v730
        %v759 = vpop.xlane.xlu0 %758
        %760 = vmax.xlane.f32.xlu0 %v731
        %v761 = vpop.xlane.xlu0 %760
        %762 = vmax.xlane.f32.xlu0 %v732
        %v763 = vpop.xlane.xlu0 %762
        %764 = vmax.xlane.f32.xlu0 %v733
        %v765 = vpop.xlane.xlu0 %764
        %v766 = vld [vmem:[%s200 + $0x1] sm:$0x1]
        %768 = vset.pattern.permute.xlu0 0
        %769 = vperm.xlu0 %768, %v766
        %v770 = vpop.permute.xlu0 %769
        %v771 = vlaneseq
        %v772 = vshrl.u32 %v771, 7
        %v773 = vsub.s32 0, %v772
        %v774 = vrot.slane %v770, %v773
        %v776 = vmul.f32 %v735, %v774
        %v777 = vmul.f32 %v737, %v774
        %v778 = vmul.f32 %v739, %v774
        %v779 = vmul.f32 %v741, %v774
        %v780 = vmul.f32 %v743, %v774
        %v781 = vmul.f32 %v745, %v774
        %v782 = vmul.f32 %v747, %v774
        %v783 = vmul.f32 %v749, %v774
        %v784 = vmul.f32 %v751, %v774
        %v785 = vmul.f32 %v753, %v774
        %v786 = vmul.f32 %v755, %v774
        %v787 = vmul.f32 %v757, %v774
        %v788 = vmul.f32 %v759, %v774
        %v789 = vmul.f32 %v761, %v774
        %v790 = vmul.f32 %v763, %v774
        %v791 = vmul.f32 %v765, %v774
        %v792 = vld [vmem:[%s456 + $0x1] ss:$0 sm:$0xff]
        %809 = vset.pattern.permute.xlu0 0
        %810 = vperm.xlu0 %809, %v776
        %v811 = vpop.permute.xlu0 %810
        %812 = vset.pattern.permute.xlu0 0
        %813 = vperm.xlu0 %812, %v777
        %v814 = vpop.permute.xlu0 %813
        %815 = vset.pattern.permute.xlu0 0
        %816 = vperm.xlu0 %815, %v778
        %v817 = vpop.permute.xlu0 %816
        %818 = vset.pattern.permute.xlu0 0
        %819 = vperm.xlu0 %818, %v779
        %v820 = vpop.permute.xlu0 %819
        %821 = vset.pattern.permute.xlu0 0
        %822 = vperm.xlu0 %821, %v780
        %v823 = vpop.permute.xlu0 %822
        %824 = vset.pattern.permute.xlu0 0
        %825 = vperm.xlu0 %824, %v781
        %v826 = vpop.permute.xlu0 %825
        %827 = vset.pattern.permute.xlu0 0
        %828 = vperm.xlu0 %827, %v782
        %v829 = vpop.permute.xlu0 %828
        %830 = vset.pattern.permute.xlu0 0
        %831 = vperm.xlu0 %830, %v783
        %v832 = vpop.permute.xlu0 %831
        %833 = vset.pattern.permute.xlu0 0
        %834 = vperm.xlu0 %833, %v784
        %v835 = vpop.permute.xlu0 %834
        %836 = vset.pattern.permute.xlu0 0
        %837 = vperm.xlu0 %836, %v785
        %v838 = vpop.permute.xlu0 %837
        %839 = vset.pattern.permute.xlu0 0
        %840 = vperm.xlu0 %839, %v786
        %v841 = vpop.permute.xlu0 %840
        %842 = vset.pattern.permute.xlu0 0
        %843 = vperm.xlu0 %842, %v787
        %v844 = vpop.permute.xlu0 %843
        %845 = vset.pattern.permute.xlu0 0
        %846 = vperm.xlu0 %845, %v788
        %v847 = vpop.permute.xlu0 %846
        %848 = vset.pattern.permute.xlu0 0
        %849 = vperm.xlu0 %848, %v789
        %v850 = vpop.permute.xlu0 %849
        %851 = vset.pattern.permute.xlu0 0
        %852 = vperm.xlu0 %851, %v790
        %v853 = vpop.permute.xlu0 %852
        %854 = vset.pattern.permute.xlu0 0
        %855 = vperm.xlu0 %854, %v791
        %v856 = vpop.permute.xlu0 %855
        %v857 = vlaneseq
        %v858 = vshrl.u32 %v857, 7
        %v859 = vsub.s32 %v523, %v858
        %v860 = vrot.slane %v811, %v859
        %v861 = vlaneseq
        %v862 = vshrl.u32 %v861, 7
        %v863 = vsub.s32 %v528, %v862
        %v864 = vrot.slane %v814, %v863
        %v865 = vsel %vm533, %v864, %v860
        %v866 = vlaneseq
        %v867 = vshrl.u32 %v866, 7
        %v868 = vsub.s32 %v535, %v867
        %v869 = vrot.slane %v817, %v868
        %v870 = vsel %vm540, %v869, %v865
        %v871 = vlaneseq
        %v872 = vshrl.u32 %v871, 7
        %v873 = vsub.s32 %v542, %v872
        %v874 = vrot.slane %v820, %v873
        %v875 = vsel %vm547, %v874, %v870
        %v876 = vlaneseq
        %v877 = vshrl.u32 %v876, 7
        %v878 = vsub.s32 %v549, %v877
        %v879 = vrot.slane %v823, %v878
        %v880 = vsel %vm554, %v879, %v875
        %v881 = vlaneseq
        %v882 = vshrl.u32 %v881, 7
        %v883 = vsub.s32 %v556, %v882
        %v884 = vrot.slane %v826, %v883
        %v885 = vsel %vm561, %v884, %v880
        %v886 = vlaneseq
        %v887 = vshrl.u32 %v886, 7
        %v888 = vsub.s32 %v563, %v887
        %v889 = vrot.slane %v829, %v888
        %v890 = vsel %vm568, %v889, %v885
        %v891 = vlaneseq
        %v892 = vshrl.u32 %v891, 7
        %v893 = vsub.s32 %v570, %v892
        %v894 = vrot.slane %v832, %v893
        %v895 = vsel %vm575, %v894, %v890
        %v896 = vlaneseq
        %v897 = vshrl.u32 %v896, 7
        %v898 = vsub.s32 %v577, %v897
        %v899 = vrot.slane %v835, %v898
        %v900 = vsel %vm582, %v899, %v895
        %v901 = vlaneseq
        %v902 = vshrl.u32 %v901, 7
        %v903 = vsub.s32 %v584, %v902
        %v904 = vrot.slane %v838, %v903
        %v905 = vsel %vm589, %v904, %v900
        %v906 = vlaneseq
        %v907 = vshrl.u32 %v906, 7
        %v908 = vsub.s32 %v591, %v907
        %v909 = vrot.slane %v841, %v908
        %v910 = vsel %vm596, %v909, %v905
        %v911 = vlaneseq
        %v912 = vshrl.u32 %v911, 7
        %v913 = vsub.s32 %v598, %v912
        %v914 = vrot.slane %v844, %v913
        %v915 = vsel %vm603, %v914, %v910
        %v916 = vlaneseq
        %v917 = vshrl.u32 %v916, 7
        %v918 = vsub.s32 %v605, %v917
        %v919 = vrot.slane %v847, %v918
        %v920 = vsel %vm610, %v919, %v915
        %v921 = vlaneseq
        %v922 = vshrl.u32 %v921, 7
        %v923 = vsub.s32 %v612, %v922
        %v924 = vrot.slane %v850, %v923
        %v925 = vsel %vm617, %v924, %v920
        %v926 = vlaneseq
        %v927 = vshrl.u32 %v926, 7
        %v928 = vsub.s32 %v619, %v927
        %v929 = vrot.slane %v853, %v928
        %v930 = vsel %vm624, %v929, %v925
        %v931 = vlaneseq
        %v932 = vshrl.u32 %v931, 7
        %v933 = vsub.s32 %v626, %v932
        %v934 = vrot.slane %v856, %v933
        %v935 = vsel %vm631, %v934, %v930
        %v937 = vmax.f32 %v792, %v935
        %938 = vst [vmem:[%s456 + $0x1] sm:$0x1] %v937
        %v939 = vld [vmem:[%s292] sm:$0xff]
        %v940 = vld [vmem:[%s292 + $0x10] sm:$0xff]
        %v941 = vld [vmem:[%s292 + $0x20] sm:$0xff]
        %v942 = vld [vmem:[%s292 + $0x30] sm:$0xff]
        %v943 = vld [vmem:[%s292 + $0x40] sm:$0xff]
        %v944 = vld [vmem:[%s292 + $0x50] sm:$0xff]
        %v945 = vld [vmem:[%s292 + $0x60] sm:$0xff]
        %v946 = vld [vmem:[%s292 + $0x70] sm:$0xff]
        %v947 = vld [vmem:[%s292 + $0x80] sm:$0xff]
        %v948 = vld [vmem:[%s292 + $0x90] sm:$0xff]
        %v949 = vld [vmem:[%s292 + $0xa0] sm:$0xff]
        %v950 = vld [vmem:[%s292 + $0xb0] sm:$0xff]
        %v951 = vld [vmem:[%s292 + $0xc0] sm:$0xff]
        %v952 = vld [vmem:[%s292 + $0xd0] sm:$0xff]
        %v953 = vld [vmem:[%s292 + $0xe0] sm:$0xff]
        %v954 = vld [vmem:[%s292 + $0xf0] sm:$0xff]
        %v955 = vld [vmem:[#allocation2 + $0x2] ss:$0 sm:$0xff]
        %v956 = vmul.f32 %v939, %v955
        %v957 = vmul.f32 %v940, %v955
        %v958 = vmul.f32 %v941, %v955
        %v959 = vmul.f32 %v942, %v955
        %v960 = vmul.f32 %v943, %v955
        %v961 = vmul.f32 %v944, %v955
        %v962 = vmul.f32 %v945, %v955
        %v963 = vmul.f32 %v946, %v955
        %v964 = vmul.f32 %v947, %v955
        %v965 = vmul.f32 %v948, %v955
        %v966 = vmul.f32 %v949, %v955
        %v967 = vmul.f32 %v950, %v955
        %v968 = vmul.f32 %v951, %v955
        %v969 = vmul.f32 %v952, %v955
        %v970 = vmul.f32 %v953, %v955
        %v971 = vmul.f32 %v954, %v955
        %v972 = vmax.f32 %v956, 0.0
        %v973 = vmax.f32 %v957, 0.0
        %v974 = vmax.f32 %v958, 0.0
        %v975 = vmax.f32 %v959, 0.0
        %v976 = vmax.f32 %v960, 0.0
        %v977 = vmax.f32 %v961, 0.0
        %v978 = vmax.f32 %v962, 0.0
        %v979 = vmax.f32 %v963, 0.0
        %v980 = vmax.f32 %v964, 0.0
        %v981 = vmax.f32 %v965, 0.0
        %v982 = vmax.f32 %v966, 0.0
        %v983 = vmax.f32 %v967, 0.0
        %v984 = vmax.f32 %v968, 0.0
        %v985 = vmax.f32 %v969, 0.0
        %v986 = vmax.f32 %v970, 0.0
        %v987 = vmax.f32 %v971, 0.0
        %v988 = vld [vmem:[%s344] sm:$0xff]
        %v989 = vld [vmem:[%s344 + $0x10] sm:$0xff]
        %v990 = vld [vmem:[%s344 + $0x20] sm:$0xff]
        %v991 = vld [vmem:[%s344 + $0x30] sm:$0xff]
        %v992 = vld [vmem:[%s344 + $0x40] sm:$0xff]
        %v993 = vld [vmem:[%s344 + $0x50] sm:$0xff]
        %v994 = vld [vmem:[%s344 + $0x60] sm:$0xff]
        %v995 = vld [vmem:[%s344 + $0x70] sm:$0xff]
        %v996 = vld [vmem:[%s344 + $0x80] sm:$0xff]
        %v997 = vld [vmem:[%s344 + $0x90] sm:$0xff]
        %v998 = vld [vmem:[%s344 + $0xa0] sm:$0xff]
        %v999 = vld [vmem:[%s344 + $0xb0] sm:$0xff]
        %v1000 = vld [vmem:[%s344 + $0xc0] sm:$0xff]
        %v1001 = vld [vmem:[%s344 + $0xd0] sm:$0xff]
        %v1002 = vld [vmem:[%s344 + $0xe0] sm:$0xff]
        %v1003 = vld [vmem:[%s344 + $0xf0] sm:$0xff]
        %v1004 = vld [vmem:[%s361 + $0x2] ss:$0 sm:$0xff]
        %v1005 = vmul.f32 %v988, %v1004
        %v1006 = vmul.f32 %v989, %v1004
        %v1007 = vmul.f32 %v990, %v1004
        %v1008 = vmul.f32 %v991, %v1004
        %v1009 = vmul.f32 %v992, %v1004
        %v1010 = vmul.f32 %v993, %v1004
        %v1011 = vmul.f32 %v994, %v1004
        %v1012 = vmul.f32 %v995, %v1004
        %v1013 = vmul.f32 %v996, %v1004
        %v1014 = vmul.f32 %v997, %v1004
        %v1015 = vmul.f32 %v998, %v1004
        %v1016 = vmul.f32 %v999, %v1004
        %v1017 = vmul.f32 %v1000, %v1004
        %v1018 = vmul.f32 %v1001, %v1004
        %v1019 = vmul.f32 %v1002, %v1004
        %v1020 = vmul.f32 %v1003, %v1004
        %v1021 = vmax.f32 %v972, %v1005
        %v1022 = vmax.f32 %v973, %v1006
        %v1023 = vmax.f32 %v974, %v1007
        %v1024 = vmax.f32 %v975, %v1008
        %v1025 = vmax.f32 %v976, %v1009
        %v1026 = vmax.f32 %v977, %v1010
        %v1027 = vmax.f32 %v978, %v1011
        %v1028 = vmax.f32 %v979, %v1012
        %v1029 = vmax.f32 %v980, %v1013
        %v1030 = vmax.f32 %v981, %v1014
        %v1031 = vmax.f32 %v982, %v1015
        %v1032 = vmax.f32 %v983, %v1016
        %v1033 = vmax.f32 %v984, %v1017
        %v1034 = vmax.f32 %v985, %v1018
        %v1035 = vmax.f32 %v986, %v1019
        %v1036 = vmax.f32 %v987, %v1020
        %1037 = vmax.xlane.f32.xlu0 %v1021
        %v1038 = vpop.xlane.xlu0 %1037
        %1039 = vmax.xlane.f32.xlu0 %v1022
        %v1040 = vpop.xlane.xlu0 %1039
        %1041 = vmax.xlane.f32.xlu0 %v1023
        %v1042 = vpop.xlane.xlu0 %1041
        %1043 = vmax.xlane.f32.xlu0 %v1024
        %v1044 = vpop.xlane.xlu0 %1043
        %1045 = vmax.xlane.f32.xlu0 %v1025
        %v1046 = vpop.xlane.xlu0 %1045
        %1047 = vmax.xlane.f32.xlu0 %v1026
        %v1048 = vpop.xlane.xlu0 %1047
        %1049 = vmax.xlane.f32.xlu0 %v1027
        %v1050 = vpop.xlane.xlu0 %1049
        %1051 = vmax.xlane.f32.xlu0 %v1028
        %v1052 = vpop.xlane.xlu0 %1051
        %1053 = vmax.xlane.f32.xlu0 %v1029
        %v1054 = vpop.xlane.xlu0 %1053
        %1055 = vmax.xlane.f32.xlu0 %v1030
        %v1056 = vpop.xlane.xlu0 %1055
        %1057 = vmax.xlane.f32.xlu0 %v1031
        %v1058 = vpop.xlane.xlu0 %1057
        %1059 = vmax.xlane.f32.xlu0 %v1032
        %v1060 = vpop.xlane.xlu0 %1059
        %1061 = vmax.xlane.f32.xlu0 %v1033
        %v1062 = vpop.xlane.xlu0 %1061
        %1063 = vmax.xlane.f32.xlu0 %v1034
        %v1064 = vpop.xlane.xlu0 %1063
        %1065 = vmax.xlane.f32.xlu0 %v1035
        %v1066 = vpop.xlane.xlu0 %1065
        %1067 = vmax.xlane.f32.xlu0 %v1036
        %v1068 = vpop.xlane.xlu0 %1067
        %v1069 = vld [vmem:[%s200 + $0x2] sm:$0x1]
        %1071 = vset.pattern.permute.xlu0 0
        %1072 = vperm.xlu0 %1071, %v1069
        %v1073 = vpop.permute.xlu0 %1072
        %v1074 = vlaneseq
        %v1075 = vshrl.u32 %v1074, 7
        %v1076 = vsub.s32 0, %v1075
        %v1077 = vrot.slane %v1073, %v1076
        %v1079 = vmul.f32 %v1038, %v1077
        %v1080 = vmul.f32 %v1040, %v1077
        %v1081 = vmul.f32 %v1042, %v1077
        %v1082 = vmul.f32 %v1044, %v1077
        %v1083 = vmul.f32 %v1046, %v1077
        %v1084 = vmul.f32 %v1048, %v1077
        %v1085 = vmul.f32 %v1050, %v1077
        %v1086 = vmul.f32 %v1052, %v1077
        %v1087 = vmul.f32 %v1054, %v1077
        %v1088 = vmul.f32 %v1056, %v1077
        %v1089 = vmul.f32 %v1058, %v1077
        %v1090 = vmul.f32 %v1060, %v1077
        %v1091 = vmul.f32 %v1062, %v1077
        %v1092 = vmul.f32 %v1064, %v1077
        %v1093 = vmul.f32 %v1066, %v1077
        %v1094 = vmul.f32 %v1068, %v1077
        %v1095 = vld [vmem:[%s456 + $0x2] ss:$0 sm:$0xff]
        %1112 = vset.pattern.permute.xlu0 0
        %1113 = vperm.xlu0 %1112, %v1079
        %v1114 = vpop.permute.xlu0 %1113
        %1115 = vset.pattern.permute.xlu0 0
        %1116 = vperm.xlu0 %1115, %v1080
        %v1117 = vpop.permute.xlu0 %1116
        %1118 = vset.pattern.permute.xlu0 0
        %1119 = vperm.xlu0 %1118, %v1081
        %v1120 = vpop.permute.xlu0 %1119
        %1121 = vset.pattern.permute.xlu0 0
        %1122 = vperm.xlu0 %1121, %v1082
        %v1123 = vpop.permute.xlu0 %1122
        %1124 = vset.pattern.permute.xlu0 0
        %1125 = vperm.xlu0 %1124, %v1083
        %v1126 = vpop.permute.xlu0 %1125
        %1127 = vset.pattern.permute.xlu0 0
        %1128 = vperm.xlu0 %1127, %v1084
        %v1129 = vpop.permute.xlu0 %1128
        %1130 = vset.pattern.permute.xlu0 0
        %1131 = vperm.xlu0 %1130, %v1085
        %v1132 = vpop.permute.xlu0 %1131
        %1133 = vset.pattern.permute.xlu0 0
        %1134 = vperm.xlu0 %1133, %v1086
        %v1135 = vpop.permute.xlu0 %1134
        %1136 = vset.pattern.permute.xlu0 0
        %1137 = vperm.xlu0 %1136, %v1087
        %v1138 = vpop.permute.xlu0 %1137
        %1139 = vset.pattern.permute.xlu0 0
        %1140 = vperm.xlu0 %1139, %v1088
        %v1141 = vpop.permute.xlu0 %1140
        %1142 = vset.pattern.permute.xlu0 0
        %1143 = vperm.xlu0 %1142, %v1089
        %v1144 = vpop.permute.xlu0 %1143
        %1145 = vset.pattern.permute.xlu0 0
        %1146 = vperm.xlu0 %1145, %v1090
        %v1147 = vpop.permute.xlu0 %1146
        %1148 = vset.pattern.permute.xlu0 0
        %1149 = vperm.xlu0 %1148, %v1091
        %v1150 = vpop.permute.xlu0 %1149
        %1151 = vset.pattern.permute.xlu0 0
        %1152 = vperm.xlu0 %1151, %v1092
        %v1153 = vpop.permute.xlu0 %1152
        %1154 = vset.pattern.permute.xlu0 0
        %1155 = vperm.xlu0 %1154, %v1093
        %v1156 = vpop.permute.xlu0 %1155
        %1157 = vset.pattern.permute.xlu0 0
        %1158 = vperm.xlu0 %1157, %v1094
        %v1159 = vpop.permute.xlu0 %1158
        %v1160 = vlaneseq
        %v1161 = vshrl.u32 %v1160, 7
        %v1162 = vsub.s32 %v523, %v1161
        %v1163 = vrot.slane %v1114, %v1162
        %v1164 = vlaneseq
        %v1165 = vshrl.u32 %v1164, 7
        %v1166 = vsub.s32 %v528, %v1165
        %v1167 = vrot.slane %v1117, %v1166
        %v1168 = vsel %vm533, %v1167, %v1163
        %v1169 = vlaneseq
        %v1170 = vshrl.u32 %v1169, 7
        %v1171 = vsub.s32 %v535, %v1170
        %v1172 = vrot.slane %v1120, %v1171
        %v1173 = vsel %vm540, %v1172, %v1168
        %v1174 = vlaneseq
        %v1175 = vshrl.u32 %v1174, 7
        %v1176 = vsub.s32 %v542, %v1175
        %v1177 = vrot.slane %v1123, %v1176
        %v1178 = vsel %vm547, %v1177, %v1173
        %v1179 = vlaneseq
        %v1180 = vshrl.u32 %v1179, 7
        %v1181 = vsub.s32 %v549, %v1180
        %v1182 = vrot.slane %v1126, %v1181
        %v1183 = vsel %vm554, %v1182, %v1178
        %v1184 = vlaneseq
        %v1185 = vshrl.u32 %v1184, 7
        %v1186 = vsub.s32 %v556, %v1185
        %v1187 = vrot.slane %v1129, %v1186
        %v1188 = vsel %vm561, %v1187, %v1183
        %v1189 = vlaneseq
        %v1190 = vshrl.u32 %v1189, 7
        %v1191 = vsub.s32 %v563, %v1190
        %v1192 = vrot.slane %v1132, %v1191
        %v1193 = vsel %vm568, %v1192, %v1188
        %v1194 = vlaneseq
        %v1195 = vshrl.u32 %v1194, 7
        %v1196 = vsub.s32 %v570, %v1195
        %v1197 = vrot.slane %v1135, %v1196
        %v1198 = vsel %vm575, %v1197, %v1193
        %v1199 = vlaneseq
        %v1200 = vshrl.u32 %v1199, 7
        %v1201 = vsub.s32 %v577, %v1200
        %v1202 = vrot.slane %v1138, %v1201
        %v1203 = vsel %vm582, %v1202, %v1198
        %v1204 = vlaneseq
        %v1205 = vshrl.u32 %v1204, 7
        %v1206 = vsub.s32 %v584, %v1205
        %v1207 = vrot.slane %v1141, %v1206
        %v1208 = vsel %vm589, %v1207, %v1203
        %v1209 = vlaneseq
        %v1210 = vshrl.u32 %v1209, 7
        %v1211 = vsub.s32 %v591, %v1210
        %v1212 = vrot.slane %v1144, %v1211
        %v1213 = vsel %vm596, %v1212, %v1208
        %v1214 = vlaneseq
        %v1215 = vshrl.u32 %v1214, 7
        %v1216 = vsub.s32 %v598, %v1215
        %v1217 = vrot.slane %v1147, %v1216
        %v1218 = vsel %vm603, %v1217, %v1213
        %v1219 = vlaneseq
        %v1220 = vshrl.u32 %v1219, 7
        %v1221 = vsub.s32 %v605, %v1220
        %v1222 = vrot.slane %v1150, %v1221
        %v1223 = vsel %vm610, %v1222, %v1218
        %v1224 = vlaneseq
        %v1225 = vshrl.u32 %v1224, 7
        %v1226 = vsub.s32 %v612, %v1225
        %v1227 = vrot.slane %v1153, %v1226
        %v1228 = vsel %vm617, %v1227, %v1223
        %v1229 = vlaneseq
        %v1230 = vshrl.u32 %v1229, 7
        %v1231 = vsub.s32 %v619, %v1230
        %v1232 = vrot.slane %v1156, %v1231
        %v1233 = vsel %vm624, %v1232, %v1228
        %v1234 = vlaneseq
        %v1235 = vshrl.u32 %v1234, 7
        %v1236 = vsub.s32 %v626, %v1235
        %v1237 = vrot.slane %v1159, %v1236
        %v1238 = vsel %vm631, %v1237, %v1233
        %v1240 = vmax.f32 %v1095, %v1238
        %1241 = vst [vmem:[%s456 + $0x2] sm:$0x1] %v1240
        %v1242 = vld [vmem:[%s292] sm:$0xff]
        %v1243 = vld [vmem:[%s292 + $0x10] sm:$0xff]
        %v1244 = vld [vmem:[%s292 + $0x20] sm:$0xff]
        %v1245 = vld [vmem:[%s292 + $0x30] sm:$0xff]
        %v1246 = vld [vmem:[%s292 + $0x40] sm:$0xff]
        %v1247 = vld [vmem:[%s292 + $0x50] sm:$0xff]
        %v1248 = vld [vmem:[%s292 + $0x60] sm:$0xff]
        %v1249 = vld [vmem:[%s292 + $0x70] sm:$0xff]
        %v1250 = vld [vmem:[%s292 + $0x80] sm:$0xff]
        %v1251 = vld [vmem:[%s292 + $0x90] sm:$0xff]
        %v1252 = vld [vmem:[%s292 + $0xa0] sm:$0xff]
        %v1253 = vld [vmem:[%s292 + $0xb0] sm:$0xff]
        %v1254 = vld [vmem:[%s292 + $0xc0] sm:$0xff]
        %v1255 = vld [vmem:[%s292 + $0xd0] sm:$0xff]
        %v1256 = vld [vmem:[%s292 + $0xe0] sm:$0xff]
        %v1257 = vld [vmem:[%s292 + $0xf0] sm:$0xff]
        %v1258 = vld [vmem:[#allocation2 + $0x3] ss:$0 sm:$0xff]
        %v1259 = vmul.f32 %v1242, %v1258
        %v1260 = vmul.f32 %v1243, %v1258
        %v1261 = vmul.f32 %v1244, %v1258
        %v1262 = vmul.f32 %v1245, %v1258
        %v1263 = vmul.f32 %v1246, %v1258
        %v1264 = vmul.f32 %v1247, %v1258
        %v1265 = vmul.f32 %v1248, %v1258
        %v1266 = vmul.f32 %v1249, %v1258
        %v1267 = vmul.f32 %v1250, %v1258
        %v1268 = vmul.f32 %v1251, %v1258
        %v1269 = vmul.f32 %v1252, %v1258
        %v1270 = vmul.f32 %v1253, %v1258
        %v1271 = vmul.f32 %v1254, %v1258
        %v1272 = vmul.f32 %v1255, %v1258
        %v1273 = vmul.f32 %v1256, %v1258
        %v1274 = vmul.f32 %v1257, %v1258
        %v1275 = vmax.f32 %v1259, 0.0
        %v1276 = vmax.f32 %v1260, 0.0
        %v1277 = vmax.f32 %v1261, 0.0
        %v1278 = vmax.f32 %v1262, 0.0
        %v1279 = vmax.f32 %v1263, 0.0
        %v1280 = vmax.f32 %v1264, 0.0
        %v1281 = vmax.f32 %v1265, 0.0
        %v1282 = vmax.f32 %v1266, 0.0
        %v1283 = vmax.f32 %v1267, 0.0
        %v1284 = vmax.f32 %v1268, 0.0
        %v1285 = vmax.f32 %v1269, 0.0
        %v1286 = vmax.f32 %v1270, 0.0
        %v1287 = vmax.f32 %v1271, 0.0
        %v1288 = vmax.f32 %v1272, 0.0
        %v1289 = vmax.f32 %v1273, 0.0
        %v1290 = vmax.f32 %v1274, 0.0
        %v1291 = vld [vmem:[%s344] sm:$0xff]
        %v1292 = vld [vmem:[%s344 + $0x10] sm:$0xff]
        %v1293 = vld [vmem:[%s344 + $0x20] sm:$0xff]
        %v1294 = vld [vmem:[%s344 + $0x30] sm:$0xff]
        %v1295 = vld [vmem:[%s344 + $0x40] sm:$0xff]
        %v1296 = vld [vmem:[%s344 + $0x50] sm:$0xff]
        %v1297 = vld [vmem:[%s344 + $0x60] sm:$0xff]
        %v1298 = vld [vmem:[%s344 + $0x70] sm:$0xff]
        %v1299 = vld [vmem:[%s344 + $0x80] sm:$0xff]
        %v1300 = vld [vmem:[%s344 + $0x90] sm:$0xff]
        %v1301 = vld [vmem:[%s344 + $0xa0] sm:$0xff]
        %v1302 = vld [vmem:[%s344 + $0xb0] sm:$0xff]
        %v1303 = vld [vmem:[%s344 + $0xc0] sm:$0xff]
        %v1304 = vld [vmem:[%s344 + $0xd0] sm:$0xff]
        %v1305 = vld [vmem:[%s344 + $0xe0] sm:$0xff]
        %v1306 = vld [vmem:[%s344 + $0xf0] sm:$0xff]
        %v1307 = vld [vmem:[%s361 + $0x3] ss:$0 sm:$0xff]
        %v1308 = vmul.f32 %v1291, %v1307
        %v1309 = vmul.f32 %v1292, %v1307
        %v1310 = vmul.f32 %v1293, %v1307
        %v1311 = vmul.f32 %v1294, %v1307
        %v1312 = vmul.f32 %v1295, %v1307
        %v1313 = vmul.f32 %v1296, %v1307
        %v1314 = vmul.f32 %v1297, %v1307
        %v1315 = vmul.f32 %v1298, %v1307
        %v1316 = vmul.f32 %v1299, %v1307
        %v1317 = vmul.f32 %v1300, %v1307
        %v1318 = vmul.f32 %v1301, %v1307
        %v1319 = vmul.f32 %v1302, %v1307
        %v1320 = vmul.f32 %v1303, %v1307
        %v1321 = vmul.f32 %v1304, %v1307
        %v1322 = vmul.f32 %v1305, %v1307
        %v1323 = vmul.f32 %v1306, %v1307
        %v1324 = vmax.f32 %v1275, %v1308
        %v1325 = vmax.f32 %v1276, %v1309
        %v1326 = vmax.f32 %v1277, %v1310
        %v1327 = vmax.f32 %v1278, %v1311
        %v1328 = vmax.f32 %v1279, %v1312
        %v1329 = vmax.f32 %v1280, %v1313
        %v1330 = vmax.f32 %v1281, %v1314
        %v1331 = vmax.f32 %v1282, %v1315
        %v1332 = vmax.f32 %v1283, %v1316
        %v1333 = vmax.f32 %v1284, %v1317
        %v1334 = vmax.f32 %v1285, %v1318
        %v1335 = vmax.f32 %v1286, %v1319
        %v1336 = vmax.f32 %v1287, %v1320
        %v1337 = vmax.f32 %v1288, %v1321
        %v1338 = vmax.f32 %v1289, %v1322
        %v1339 = vmax.f32 %v1290, %v1323
        %1340 = vmax.xlane.f32.xlu0 %v1324
        %v1341 = vpop.xlane.xlu0 %1340
        %1342 = vmax.xlane.f32.xlu0 %v1325
        %v1343 = vpop.xlane.xlu0 %1342
        %1344 = vmax.xlane.f32.xlu0 %v1326
        %v1345 = vpop.xlane.xlu0 %1344
        %1346 = vmax.xlane.f32.xlu0 %v1327
        %v1347 = vpop.xlane.xlu0 %1346
        %1348 = vmax.xlane.f32.xlu0 %v1328
        %v1349 = vpop.xlane.xlu0 %1348
        %1350 = vmax.xlane.f32.xlu0 %v1329
        %v1351 = vpop.xlane.xlu0 %1350
        %1352 = vmax.xlane.f32.xlu0 %v1330
        %v1353 = vpop.xlane.xlu0 %1352
        %1354 = vmax.xlane.f32.xlu0 %v1331
        %v1355 = vpop.xlane.xlu0 %1354
        %1356 = vmax.xlane.f32.xlu0 %v1332
        %v1357 = vpop.xlane.xlu0 %1356
        %1358 = vmax.xlane.f32.xlu0 %v1333
        %v1359 = vpop.xlane.xlu0 %1358
        %1360 = vmax.xlane.f32.xlu0 %v1334
        %v1361 = vpop.xlane.xlu0 %1360
        %1362 = vmax.xlane.f32.xlu0 %v1335
        %v1363 = vpop.xlane.xlu0 %1362
        %1364 = vmax.xlane.f32.xlu0 %v1336
        %v1365 = vpop.xlane.xlu0 %1364
        %1366 = vmax.xlane.f32.xlu0 %v1337
        %v1367 = vpop.xlane.xlu0 %1366
        %1368 = vmax.xlane.f32.xlu0 %v1338
        %v1369 = vpop.xlane.xlu0 %1368
        %1370 = vmax.xlane.f32.xlu0 %v1339
        %v1371 = vpop.xlane.xlu0 %1370
        %v1372 = vld [vmem:[%s200 + $0x3] sm:$0x1]
        %1374 = vset.pattern.permute.xlu0 0
        %1375 = vperm.xlu0 %1374, %v1372
        %v1376 = vpop.permute.xlu0 %1375
        %v1377 = vlaneseq
        %v1378 = vshrl.u32 %v1377, 7
        %v1379 = vsub.s32 0, %v1378
        %v1380 = vrot.slane %v1376, %v1379
        %v1382 = vmul.f32 %v1341, %v1380
        %v1383 = vmul.f32 %v1343, %v1380
        %v1384 = vmul.f32 %v1345, %v1380
        %v1385 = vmul.f32 %v1347, %v1380
        %v1386 = vmul.f32 %v1349, %v1380
        %v1387 = vmul.f32 %v1351, %v1380
        %v1388 = vmul.f32 %v1353, %v1380
        %v1389 = vmul.f32 %v1355, %v1380
        %v1390 = vmul.f32 %v1357, %v1380
        %v1391 = vmul.f32 %v1359, %v1380
        %v1392 = vmul.f32 %v1361, %v1380
        %v1393 = vmul.f32 %v1363, %v1380
        %v1394 = vmul.f32 %v1365, %v1380
        %v1395 = vmul.f32 %v1367, %v1380
        %v1396 = vmul.f32 %v1369, %v1380
        %v1397 = vmul.f32 %v1371, %v1380
        %v1398 = vld [vmem:[%s456 + $0x3] ss:$0 sm:$0xff]
        %1415 = vset.pattern.permute.xlu0 0
        %1416 = vperm.xlu0 %1415, %v1382
        %v1417 = vpop.permute.xlu0 %1416
        %1418 = vset.pattern.permute.xlu0 0
        %1419 = vperm.xlu0 %1418, %v1383
        %v1420 = vpop.permute.xlu0 %1419
        %1421 = vset.pattern.permute.xlu0 0
        %1422 = vperm.xlu0 %1421, %v1384
        %v1423 = vpop.permute.xlu0 %1422
        %1424 = vset.pattern.permute.xlu0 0
        %1425 = vperm.xlu0 %1424, %v1385
        %v1426 = vpop.permute.xlu0 %1425
        %1427 = vset.pattern.permute.xlu0 0
        %1428 = vperm.xlu0 %1427, %v1386
        %v1429 = vpop.permute.xlu0 %1428
        %1430 = vset.pattern.permute.xlu0 0
        %1431 = vperm.xlu0 %1430, %v1387
        %v1432 = vpop.permute.xlu0 %1431
        %1433 = vset.pattern.permute.xlu0 0
        %1434 = vperm.xlu0 %1433, %v1388
        %v1435 = vpop.permute.xlu0 %1434
        %1436 = vset.pattern.permute.xlu0 0
        %1437 = vperm.xlu0 %1436, %v1389
        %v1438 = vpop.permute.xlu0 %1437
        %1439 = vset.pattern.permute.xlu0 0
        %1440 = vperm.xlu0 %1439, %v1390
        %v1441 = vpop.permute.xlu0 %1440
        %1442 = vset.pattern.permute.xlu0 0
        %1443 = vperm.xlu0 %1442, %v1391
        %v1444 = vpop.permute.xlu0 %1443
        %1445 = vset.pattern.permute.xlu0 0
        %1446 = vperm.xlu0 %1445, %v1392
        %v1447 = vpop.permute.xlu0 %1446
        %1448 = vset.pattern.permute.xlu0 0
        %1449 = vperm.xlu0 %1448, %v1393
        %v1450 = vpop.permute.xlu0 %1449
        %1451 = vset.pattern.permute.xlu0 0
        %1452 = vperm.xlu0 %1451, %v1394
        %v1453 = vpop.permute.xlu0 %1452
        %1454 = vset.pattern.permute.xlu0 0
        %1455 = vperm.xlu0 %1454, %v1395
        %v1456 = vpop.permute.xlu0 %1455
        %1457 = vset.pattern.permute.xlu0 0
        %1458 = vperm.xlu0 %1457, %v1396
        %v1459 = vpop.permute.xlu0 %1458
        %1460 = vset.pattern.permute.xlu0 0
        %1461 = vperm.xlu0 %1460, %v1397
        %v1462 = vpop.permute.xlu0 %1461
        %v1463 = vlaneseq
        %v1464 = vshrl.u32 %v1463, 7
        %v1465 = vsub.s32 %v523, %v1464
        %v1466 = vrot.slane %v1417, %v1465
        %v1467 = vlaneseq
        %v1468 = vshrl.u32 %v1467, 7
        %v1469 = vsub.s32 %v528, %v1468
        %v1470 = vrot.slane %v1420, %v1469
        %v1471 = vsel %vm533, %v1470, %v1466
        %v1472 = vlaneseq
        %v1473 = vshrl.u32 %v1472, 7
        %v1474 = vsub.s32 %v535, %v1473
        %v1475 = vrot.slane %v1423, %v1474
        %v1476 = vsel %vm540, %v1475, %v1471
        %v1477 = vlaneseq
        %v1478 = vshrl.u32 %v1477, 7
        %v1479 = vsub.s32 %v542, %v1478
        %v1480 = vrot.slane %v1426, %v1479
        %v1481 = vsel %vm547, %v1480, %v1476
        %v1482 = vlaneseq
        %v1483 = vshrl.u32 %v1482, 7
        %v1484 = vsub.s32 %v549, %v1483
        %v1485 = vrot.slane %v1429, %v1484
        %v1486 = vsel %vm554, %v1485, %v1481
        %v1487 = vlaneseq
        %v1488 = vshrl.u32 %v1487, 7
        %v1489 = vsub.s32 %v556, %v1488
        %v1490 = vrot.slane %v1432, %v1489
        %v1491 = vsel %vm561, %v1490, %v1486
        %v1492 = vlaneseq
        %v1493 = vshrl.u32 %v1492, 7
        %v1494 = vsub.s32 %v563, %v1493
        %v1495 = vrot.slane %v1435, %v1494
        %v1496 = vsel %vm568, %v1495, %v1491
        %v1497 = vlaneseq
        %v1498 = vshrl.u32 %v1497, 7
        %v1499 = vsub.s32 %v570, %v1498
        %v1500 = vrot.slane %v1438, %v1499
        %v1501 = vsel %vm575, %v1500, %v1496
        %v1502 = vlaneseq
        %v1503 = vshrl.u32 %v1502, 7
        %v1504 = vsub.s32 %v577, %v1503
        %v1505 = vrot.slane %v1441, %v1504
        %v1506 = vsel %vm582, %v1505, %v1501
        %v1507 = vlaneseq
        %v1508 = vshrl.u32 %v1507, 7
        %v1509 = vsub.s32 %v584, %v1508
        %v1510 = vrot.slane %v1444, %v1509
        %v1511 = vsel %vm589, %v1510, %v1506
        %v1512 = vlaneseq
        %v1513 = vshrl.u32 %v1512, 7
        %v1514 = vsub.s32 %v591, %v1513
        %v1515 = vrot.slane %v1447, %v1514
        %v1516 = vsel %vm596, %v1515, %v1511
        %v1517 = vlaneseq
        %v1518 = vshrl.u32 %v1517, 7
        %v1519 = vsub.s32 %v598, %v1518
        %v1520 = vrot.slane %v1450, %v1519
        %v1521 = vsel %vm603, %v1520, %v1516
        %v1522 = vlaneseq
        %v1523 = vshrl.u32 %v1522, 7
        %v1524 = vsub.s32 %v605, %v1523
        %v1525 = vrot.slane %v1453, %v1524
        %v1526 = vsel %vm610, %v1525, %v1521
        %v1527 = vlaneseq
        %v1528 = vshrl.u32 %v1527, 7
        %v1529 = vsub.s32 %v612, %v1528
        %v1530 = vrot.slane %v1456, %v1529
        %v1531 = vsel %vm617, %v1530, %v1526
        %v1532 = vlaneseq
        %v1533 = vshrl.u32 %v1532, 7
        %v1534 = vsub.s32 %v619, %v1533
        %v1535 = vrot.slane %v1459, %v1534
        %v1536 = vsel %vm624, %v1535, %v1531
        %v1537 = vlaneseq
        %v1538 = vshrl.u32 %v1537, 7
        %v1539 = vsub.s32 %v626, %v1538
        %v1540 = vrot.slane %v1462, %v1539
        %v1541 = vsel %vm631, %v1540, %v1536
        %v1543 = vmax.f32 %v1398, %v1541
        %1544 = vst [vmem:[%s456 + $0x3] sm:$0x1] %v1543
        %v1545 = vld [vmem:[%s292] sm:$0xff]
        %v1546 = vld [vmem:[%s292 + $0x10] sm:$0xff]
        %v1547 = vld [vmem:[%s292 + $0x20] sm:$0xff]
        %v1548 = vld [vmem:[%s292 + $0x30] sm:$0xff]
        %v1549 = vld [vmem:[%s292 + $0x40] sm:$0xff]
        %v1550 = vld [vmem:[%s292 + $0x50] sm:$0xff]
        %v1551 = vld [vmem:[%s292 + $0x60] sm:$0xff]
        %v1552 = vld [vmem:[%s292 + $0x70] sm:$0xff]
        %v1553 = vld [vmem:[%s292 + $0x80] sm:$0xff]
        %v1554 = vld [vmem:[%s292 + $0x90] sm:$0xff]
        %v1555 = vld [vmem:[%s292 + $0xa0] sm:$0xff]
        %v1556 = vld [vmem:[%s292 + $0xb0] sm:$0xff]
        %v1557 = vld [vmem:[%s292 + $0xc0] sm:$0xff]
        %v1558 = vld [vmem:[%s292 + $0xd0] sm:$0xff]
        %v1559 = vld [vmem:[%s292 + $0xe0] sm:$0xff]
        %v1560 = vld [vmem:[%s292 + $0xf0] sm:$0xff]
        %v1561 = vld [vmem:[#allocation2 + $0x4] ss:$0 sm:$0xff]
        %v1562 = vmul.f32 %v1545, %v1561
        %v1563 = vmul.f32 %v1546, %v1561
        %v1564 = vmul.f32 %v1547, %v1561
        %v1565 = vmul.f32 %v1548, %v1561
        %v1566 = vmul.f32 %v1549, %v1561
        %v1567 = vmul.f32 %v1550, %v1561
        %v1568 = vmul.f32 %v1551, %v1561
        %v1569 = vmul.f32 %v1552, %v1561
        %v1570 = vmul.f32 %v1553, %v1561
        %v1571 = vmul.f32 %v1554, %v1561
        %v1572 = vmul.f32 %v1555, %v1561
        %v1573 = vmul.f32 %v1556, %v1561
        %v1574 = vmul.f32 %v1557, %v1561
        %v1575 = vmul.f32 %v1558, %v1561
        %v1576 = vmul.f32 %v1559, %v1561
        %v1577 = vmul.f32 %v1560, %v1561
        %v1578 = vmax.f32 %v1562, 0.0
        %v1579 = vmax.f32 %v1563, 0.0
        %v1580 = vmax.f32 %v1564, 0.0
        %v1581 = vmax.f32 %v1565, 0.0
        %v1582 = vmax.f32 %v1566, 0.0
        %v1583 = vmax.f32 %v1567, 0.0
        %v1584 = vmax.f32 %v1568, 0.0
        %v1585 = vmax.f32 %v1569, 0.0
        %v1586 = vmax.f32 %v1570, 0.0
        %v1587 = vmax.f32 %v1571, 0.0
        %v1588 = vmax.f32 %v1572, 0.0
        %v1589 = vmax.f32 %v1573, 0.0
        %v1590 = vmax.f32 %v1574, 0.0
        %v1591 = vmax.f32 %v1575, 0.0
        %v1592 = vmax.f32 %v1576, 0.0
        %v1593 = vmax.f32 %v1577, 0.0
        %v1594 = vld [vmem:[%s344] sm:$0xff]
        %v1595 = vld [vmem:[%s344 + $0x10] sm:$0xff]
        %v1596 = vld [vmem:[%s344 + $0x20] sm:$0xff]
        %v1597 = vld [vmem:[%s344 + $0x30] sm:$0xff]
        %v1598 = vld [vmem:[%s344 + $0x40] sm:$0xff]
        %v1599 = vld [vmem:[%s344 + $0x50] sm:$0xff]
        %v1600 = vld [vmem:[%s344 + $0x60] sm:$0xff]
        %v1601 = vld [vmem:[%s344 + $0x70] sm:$0xff]
        %v1602 = vld [vmem:[%s344 + $0x80] sm:$0xff]
        %v1603 = vld [vmem:[%s344 + $0x90] sm:$0xff]
        %v1604 = vld [vmem:[%s344 + $0xa0] sm:$0xff]
        %v1605 = vld [vmem:[%s344 + $0xb0] sm:$0xff]
        %v1606 = vld [vmem:[%s344 + $0xc0] sm:$0xff]
        %v1607 = vld [vmem:[%s344 + $0xd0] sm:$0xff]
        %v1608 = vld [vmem:[%s344 + $0xe0] sm:$0xff]
        %v1609 = vld [vmem:[%s344 + $0xf0] sm:$0xff]
        %v1610 = vld [vmem:[%s361 + $0x4] ss:$0 sm:$0xff]
        %v1611 = vmul.f32 %v1594, %v1610
        %v1612 = vmul.f32 %v1595, %v1610
        %v1613 = vmul.f32 %v1596, %v1610
        %v1614 = vmul.f32 %v1597, %v1610
        %v1615 = vmul.f32 %v1598, %v1610
        %v1616 = vmul.f32 %v1599, %v1610
        %v1617 = vmul.f32 %v1600, %v1610
        %v1618 = vmul.f32 %v1601, %v1610
        %v1619 = vmul.f32 %v1602, %v1610
        %v1620 = vmul.f32 %v1603, %v1610
        %v1621 = vmul.f32 %v1604, %v1610
        %v1622 = vmul.f32 %v1605, %v1610
        %v1623 = vmul.f32 %v1606, %v1610
        %v1624 = vmul.f32 %v1607, %v1610
        %v1625 = vmul.f32 %v1608, %v1610
        %v1626 = vmul.f32 %v1609, %v1610
        %v1627 = vmax.f32 %v1578, %v1611
        %v1628 = vmax.f32 %v1579, %v1612
        %v1629 = vmax.f32 %v1580, %v1613
        %v1630 = vmax.f32 %v1581, %v1614
        %v1631 = vmax.f32 %v1582, %v1615
        %v1632 = vmax.f32 %v1583, %v1616
        %v1633 = vmax.f32 %v1584, %v1617
        %v1634 = vmax.f32 %v1585, %v1618
        %v1635 = vmax.f32 %v1586, %v1619
        %v1636 = vmax.f32 %v1587, %v1620
        %v1637 = vmax.f32 %v1588, %v1621
        %v1638 = vmax.f32 %v1589, %v1622
        %v1639 = vmax.f32 %v1590, %v1623
        %v1640 = vmax.f32 %v1591, %v1624
        %v1641 = vmax.f32 %v1592, %v1625
        %v1642 = vmax.f32 %v1593, %v1626
        %1643 = vmax.xlane.f32.xlu0 %v1627
        %v1644 = vpop.xlane.xlu0 %1643
        %1645 = vmax.xlane.f32.xlu0 %v1628
        %v1646 = vpop.xlane.xlu0 %1645
        %1647 = vmax.xlane.f32.xlu0 %v1629
        %v1648 = vpop.xlane.xlu0 %1647
        %1649 = vmax.xlane.f32.xlu0 %v1630
        %v1650 = vpop.xlane.xlu0 %1649
        %1651 = vmax.xlane.f32.xlu0 %v1631
        %v1652 = vpop.xlane.xlu0 %1651
        %1653 = vmax.xlane.f32.xlu0 %v1632
        %v1654 = vpop.xlane.xlu0 %1653
        %1655 = vmax.xlane.f32.xlu0 %v1633
        %v1656 = vpop.xlane.xlu0 %1655
        %1657 = vmax.xlane.f32.xlu0 %v1634
        %v1658 = vpop.xlane.xlu0 %1657
        %1659 = vmax.xlane.f32.xlu0 %v1635
        %v1660 = vpop.xlane.xlu0 %1659
        %1661 = vmax.xlane.f32.xlu0 %v1636
        %v1662 = vpop.xlane.xlu0 %1661
        %1663 = vmax.xlane.f32.xlu0 %v1637
        %v1664 = vpop.xlane.xlu0 %1663
        %1665 = vmax.xlane.f32.xlu0 %v1638
        %v1666 = vpop.xlane.xlu0 %1665
        %1667 = vmax.xlane.f32.xlu0 %v1639
        %v1668 = vpop.xlane.xlu0 %1667
        %1669 = vmax.xlane.f32.xlu0 %v1640
        %v1670 = vpop.xlane.xlu0 %1669
        %1671 = vmax.xlane.f32.xlu0 %v1641
        %v1672 = vpop.xlane.xlu0 %1671
        %1673 = vmax.xlane.f32.xlu0 %v1642
        %v1674 = vpop.xlane.xlu0 %1673
        %v1675 = vld [vmem:[%s200 + $0x4] sm:$0x1]
        %1677 = vset.pattern.permute.xlu0 0
        %1678 = vperm.xlu0 %1677, %v1675
        %v1679 = vpop.permute.xlu0 %1678
        %v1680 = vlaneseq
        %v1681 = vshrl.u32 %v1680, 7
        %v1682 = vsub.s32 0, %v1681
        %v1683 = vrot.slane %v1679, %v1682
        %v1685 = vmul.f32 %v1644, %v1683
        %v1686 = vmul.f32 %v1646, %v1683
        %v1687 = vmul.f32 %v1648, %v1683
        %v1688 = vmul.f32 %v1650, %v1683
        %v1689 = vmul.f32 %v1652, %v1683
        %v1690 = vmul.f32 %v1654, %v1683
        %v1691 = vmul.f32 %v1656, %v1683
        %v1692 = vmul.f32 %v1658, %v1683
        %v1693 = vmul.f32 %v1660, %v1683
        %v1694 = vmul.f32 %v1662, %v1683
        %v1695 = vmul.f32 %v1664, %v1683
        %v1696 = vmul.f32 %v1666, %v1683
        %v1697 = vmul.f32 %v1668, %v1683
        %v1698 = vmul.f32 %v1670, %v1683
        %v1699 = vmul.f32 %v1672, %v1683
        %v1700 = vmul.f32 %v1674, %v1683
        %v1701 = vld [vmem:[%s456 + $0x4] ss:$0 sm:$0xff]
        %1718 = vset.pattern.permute.xlu0 0
        %1719 = vperm.xlu0 %1718, %v1685
        %v1720 = vpop.permute.xlu0 %1719
        %1721 = vset.pattern.permute.xlu0 0
        %1722 = vperm.xlu0 %1721, %v1686
        %v1723 = vpop.permute.xlu0 %1722
        %1724 = vset.pattern.permute.xlu0 0
        %1725 = vperm.xlu0 %1724, %v1687
        %v1726 = vpop.permute.xlu0 %1725
        %1727 = vset.pattern.permute.xlu0 0
        %1728 = vperm.xlu0 %1727, %v1688
        %v1729 = vpop.permute.xlu0 %1728
        %1730 = vset.pattern.permute.xlu0 0
        %1731 = vperm.xlu0 %1730, %v1689
        %v1732 = vpop.permute.xlu0 %1731
        %1733 = vset.pattern.permute.xlu0 0
        %1734 = vperm.xlu0 %1733, %v1690
        %v1735 = vpop.permute.xlu0 %1734
        %1736 = vset.pattern.permute.xlu0 0
        %1737 = vperm.xlu0 %1736, %v1691
        %v1738 = vpop.permute.xlu0 %1737
        %1739 = vset.pattern.permute.xlu0 0
        %1740 = vperm.xlu0 %1739, %v1692
        %v1741 = vpop.permute.xlu0 %1740
        %1742 = vset.pattern.permute.xlu0 0
        %1743 = vperm.xlu0 %1742, %v1693
        %v1744 = vpop.permute.xlu0 %1743
        %1745 = vset.pattern.permute.xlu0 0
        %1746 = vperm.xlu0 %1745, %v1694
        %v1747 = vpop.permute.xlu0 %1746
        %1748 = vset.pattern.permute.xlu0 0
        %1749 = vperm.xlu0 %1748, %v1695
        %v1750 = vpop.permute.xlu0 %1749
        %1751 = vset.pattern.permute.xlu0 0
        %1752 = vperm.xlu0 %1751, %v1696
        %v1753 = vpop.permute.xlu0 %1752
        %1754 = vset.pattern.permute.xlu0 0
        %1755 = vperm.xlu0 %1754, %v1697
        %v1756 = vpop.permute.xlu0 %1755
        %1757 = vset.pattern.permute.xlu0 0
        %1758 = vperm.xlu0 %1757, %v1698
        %v1759 = vpop.permute.xlu0 %1758
        %1760 = vset.pattern.permute.xlu0 0
        %1761 = vperm.xlu0 %1760, %v1699
        %v1762 = vpop.permute.xlu0 %1761
        %1763 = vset.pattern.permute.xlu0 0
        %1764 = vperm.xlu0 %1763, %v1700
        %v1765 = vpop.permute.xlu0 %1764
        %v1766 = vlaneseq
        %v1767 = vshrl.u32 %v1766, 7
        %v1768 = vsub.s32 %v523, %v1767
        %v1769 = vrot.slane %v1720, %v1768
        %v1770 = vlaneseq
        %v1771 = vshrl.u32 %v1770, 7
        %v1772 = vsub.s32 %v528, %v1771
        %v1773 = vrot.slane %v1723, %v1772
        %v1774 = vsel %vm533, %v1773, %v1769
        %v1775 = vlaneseq
        %v1776 = vshrl.u32 %v1775, 7
        %v1777 = vsub.s32 %v535, %v1776
        %v1778 = vrot.slane %v1726, %v1777
        %v1779 = vsel %vm540, %v1778, %v1774
        %v1780 = vlaneseq
        %v1781 = vshrl.u32 %v1780, 7
        %v1782 = vsub.s32 %v542, %v1781
        %v1783 = vrot.slane %v1729, %v1782
        %v1784 = vsel %vm547, %v1783, %v1779
        %v1785 = vlaneseq
        %v1786 = vshrl.u32 %v1785, 7
        %v1787 = vsub.s32 %v549, %v1786
        %v1788 = vrot.slane %v1732, %v1787
        %v1789 = vsel %vm554, %v1788, %v1784
        %v1790 = vlaneseq
        %v1791 = vshrl.u32 %v1790, 7
        %v1792 = vsub.s32 %v556, %v1791
        %v1793 = vrot.slane %v1735, %v1792
        %v1794 = vsel %vm561, %v1793, %v1789
        %v1795 = vlaneseq
        %v1796 = vshrl.u32 %v1795, 7
        %v1797 = vsub.s32 %v563, %v1796
        %v1798 = vrot.slane %v1738, %v1797
        %v1799 = vsel %vm568, %v1798, %v1794
        %v1800 = vlaneseq
        %v1801 = vshrl.u32 %v1800, 7
        %v1802 = vsub.s32 %v570, %v1801
        %v1803 = vrot.slane %v1741, %v1802
        %v1804 = vsel %vm575, %v1803, %v1799
        %v1805 = vlaneseq
        %v1806 = vshrl.u32 %v1805, 7
        %v1807 = vsub.s32 %v577, %v1806
        %v1808 = vrot.slane %v1744, %v1807
        %v1809 = vsel %vm582, %v1808, %v1804
        %v1810 = vlaneseq
        %v1811 = vshrl.u32 %v1810, 7
        %v1812 = vsub.s32 %v584, %v1811
        %v1813 = vrot.slane %v1747, %v1812
        %v1814 = vsel %vm589, %v1813, %v1809
        %v1815 = vlaneseq
        %v1816 = vshrl.u32 %v1815, 7
        %v1817 = vsub.s32 %v591, %v1816
        %v1818 = vrot.slane %v1750, %v1817
        %v1819 = vsel %vm596, %v1818, %v1814
        %v1820 = vlaneseq
        %v1821 = vshrl.u32 %v1820, 7
        %v1822 = vsub.s32 %v598, %v1821
        %v1823 = vrot.slane %v1753, %v1822
        %v1824 = vsel %vm603, %v1823, %v1819
        %v1825 = vlaneseq
        %v1826 = vshrl.u32 %v1825, 7
        %v1827 = vsub.s32 %v605, %v1826
        %v1828 = vrot.slane %v1756, %v1827
        %v1829 = vsel %vm610, %v1828, %v1824
        %v1830 = vlaneseq
        %v1831 = vshrl.u32 %v1830, 7
        %v1832 = vsub.s32 %v612, %v1831
        %v1833 = vrot.slane %v1759, %v1832
        %v1834 = vsel %vm617, %v1833, %v1829
        %v1835 = vlaneseq
        %v1836 = vshrl.u32 %v1835, 7
        %v1837 = vsub.s32 %v619, %v1836
        %v1838 = vrot.slane %v1762, %v1837
        %v1839 = vsel %vm624, %v1838, %v1834
        %v1840 = vlaneseq
        %v1841 = vshrl.u32 %v1840, 7
        %v1842 = vsub.s32 %v626, %v1841
        %v1843 = vrot.slane %v1765, %v1842
        %v1844 = vsel %vm631, %v1843, %v1839
        %v1846 = vmax.f32 %v1701, %v1844
        %1847 = vst [vmem:[%s456 + $0x4] sm:$0x1] %v1846
        %v1848 = vld [vmem:[%s292] sm:$0xff]
        %v1849 = vld [vmem:[%s292 + $0x10] sm:$0xff]
        %v1850 = vld [vmem:[%s292 + $0x20] sm:$0xff]
        %v1851 = vld [vmem:[%s292 + $0x30] sm:$0xff]
        %v1852 = vld [vmem:[%s292 + $0x40] sm:$0xff]
        %v1853 = vld [vmem:[%s292 + $0x50] sm:$0xff]
        %v1854 = vld [vmem:[%s292 + $0x60] sm:$0xff]
        %v1855 = vld [vmem:[%s292 + $0x70] sm:$0xff]
        %v1856 = vld [vmem:[%s292 + $0x80] sm:$0xff]
        %v1857 = vld [vmem:[%s292 + $0x90] sm:$0xff]
        %v1858 = vld [vmem:[%s292 + $0xa0] sm:$0xff]
        %v1859 = vld [vmem:[%s292 + $0xb0] sm:$0xff]
        %v1860 = vld [vmem:[%s292 + $0xc0] sm:$0xff]
        %v1861 = vld [vmem:[%s292 + $0xd0] sm:$0xff]
        %v1862 = vld [vmem:[%s292 + $0xe0] sm:$0xff]
        %v1863 = vld [vmem:[%s292 + $0xf0] sm:$0xff]
        %v1864 = vld [vmem:[#allocation2 + $0x5] ss:$0 sm:$0xff]
        %v1865 = vmul.f32 %v1848, %v1864
        %v1866 = vmul.f32 %v1849, %v1864
        %v1867 = vmul.f32 %v1850, %v1864
        %v1868 = vmul.f32 %v1851, %v1864
        %v1869 = vmul.f32 %v1852, %v1864
        %v1870 = vmul.f32 %v1853, %v1864
        %v1871 = vmul.f32 %v1854, %v1864
        %v1872 = vmul.f32 %v1855, %v1864
        %v1873 = vmul.f32 %v1856, %v1864
        %v1874 = vmul.f32 %v1857, %v1864
        %v1875 = vmul.f32 %v1858, %v1864
        %v1876 = vmul.f32 %v1859, %v1864
        %v1877 = vmul.f32 %v1860, %v1864
        %v1878 = vmul.f32 %v1861, %v1864
        %v1879 = vmul.f32 %v1862, %v1864
        %v1880 = vmul.f32 %v1863, %v1864
        %v1881 = vmax.f32 %v1865, 0.0
        %v1882 = vmax.f32 %v1866, 0.0
        %v1883 = vmax.f32 %v1867, 0.0
        %v1884 = vmax.f32 %v1868, 0.0
        %v1885 = vmax.f32 %v1869, 0.0
        %v1886 = vmax.f32 %v1870, 0.0
        %v1887 = vmax.f32 %v1871, 0.0
        %v1888 = vmax.f32 %v1872, 0.0
        %v1889 = vmax.f32 %v1873, 0.0
        %v1890 = vmax.f32 %v1874, 0.0
        %v1891 = vmax.f32 %v1875, 0.0
        %v1892 = vmax.f32 %v1876, 0.0
        %v1893 = vmax.f32 %v1877, 0.0
        %v1894 = vmax.f32 %v1878, 0.0
        %v1895 = vmax.f32 %v1879, 0.0
        %v1896 = vmax.f32 %v1880, 0.0
        %v1897 = vld [vmem:[%s344] sm:$0xff]
        %v1898 = vld [vmem:[%s344 + $0x10] sm:$0xff]
        %v1899 = vld [vmem:[%s344 + $0x20] sm:$0xff]
        %v1900 = vld [vmem:[%s344 + $0x30] sm:$0xff]
        %v1901 = vld [vmem:[%s344 + $0x40] sm:$0xff]
        %v1902 = vld [vmem:[%s344 + $0x50] sm:$0xff]
        %v1903 = vld [vmem:[%s344 + $0x60] sm:$0xff]
        %v1904 = vld [vmem:[%s344 + $0x70] sm:$0xff]
        %v1905 = vld [vmem:[%s344 + $0x80] sm:$0xff]
        %v1906 = vld [vmem:[%s344 + $0x90] sm:$0xff]
        %v1907 = vld [vmem:[%s344 + $0xa0] sm:$0xff]
        %v1908 = vld [vmem:[%s344 + $0xb0] sm:$0xff]
        %v1909 = vld [vmem:[%s344 + $0xc0] sm:$0xff]
        %v1910 = vld [vmem:[%s344 + $0xd0] sm:$0xff]
        %v1911 = vld [vmem:[%s344 + $0xe0] sm:$0xff]
        %v1912 = vld [vmem:[%s344 + $0xf0] sm:$0xff]
        %v1913 = vld [vmem:[%s361 + $0x5] ss:$0 sm:$0xff]
        %v1914 = vmul.f32 %v1897, %v1913
        %v1915 = vmul.f32 %v1898, %v1913
        %v1916 = vmul.f32 %v1899, %v1913
        %v1917 = vmul.f32 %v1900, %v1913
        %v1918 = vmul.f32 %v1901, %v1913
        %v1919 = vmul.f32 %v1902, %v1913
        %v1920 = vmul.f32 %v1903, %v1913
        %v1921 = vmul.f32 %v1904, %v1913
        %v1922 = vmul.f32 %v1905, %v1913
        %v1923 = vmul.f32 %v1906, %v1913
        %v1924 = vmul.f32 %v1907, %v1913
        %v1925 = vmul.f32 %v1908, %v1913
        %v1926 = vmul.f32 %v1909, %v1913
        %v1927 = vmul.f32 %v1910, %v1913
        %v1928 = vmul.f32 %v1911, %v1913
        %v1929 = vmul.f32 %v1912, %v1913
        %v1930 = vmax.f32 %v1881, %v1914
        %v1931 = vmax.f32 %v1882, %v1915
        %v1932 = vmax.f32 %v1883, %v1916
        %v1933 = vmax.f32 %v1884, %v1917
        %v1934 = vmax.f32 %v1885, %v1918
        %v1935 = vmax.f32 %v1886, %v1919
        %v1936 = vmax.f32 %v1887, %v1920
        %v1937 = vmax.f32 %v1888, %v1921
        %v1938 = vmax.f32 %v1889, %v1922
        %v1939 = vmax.f32 %v1890, %v1923
        %v1940 = vmax.f32 %v1891, %v1924
        %v1941 = vmax.f32 %v1892, %v1925
        %v1942 = vmax.f32 %v1893, %v1926
        %v1943 = vmax.f32 %v1894, %v1927
        %v1944 = vmax.f32 %v1895, %v1928
        %v1945 = vmax.f32 %v1896, %v1929
        %1946 = vmax.xlane.f32.xlu0 %v1930
        %v1947 = vpop.xlane.xlu0 %1946
        %1948 = vmax.xlane.f32.xlu0 %v1931
        %v1949 = vpop.xlane.xlu0 %1948
        %1950 = vmax.xlane.f32.xlu0 %v1932
        %v1951 = vpop.xlane.xlu0 %1950
        %1952 = vmax.xlane.f32.xlu0 %v1933
        %v1953 = vpop.xlane.xlu0 %1952
        %1954 = vmax.xlane.f32.xlu0 %v1934
        %v1955 = vpop.xlane.xlu0 %1954
        %1956 = vmax.xlane.f32.xlu0 %v1935
        %v1957 = vpop.xlane.xlu0 %1956
        %1958 = vmax.xlane.f32.xlu0 %v1936
        %v1959 = vpop.xlane.xlu0 %1958
        %1960 = vmax.xlane.f32.xlu0 %v1937
        %v1961 = vpop.xlane.xlu0 %1960
        %1962 = vmax.xlane.f32.xlu0 %v1938
        %v1963 = vpop.xlane.xlu0 %1962
        %1964 = vmax.xlane.f32.xlu0 %v1939
        %v1965 = vpop.xlane.xlu0 %1964
        %1966 = vmax.xlane.f32.xlu0 %v1940
        %v1967 = vpop.xlane.xlu0 %1966
        %1968 = vmax.xlane.f32.xlu0 %v1941
        %v1969 = vpop.xlane.xlu0 %1968
        %1970 = vmax.xlane.f32.xlu0 %v1942
        %v1971 = vpop.xlane.xlu0 %1970
        %1972 = vmax.xlane.f32.xlu0 %v1943
        %v1973 = vpop.xlane.xlu0 %1972
        %1974 = vmax.xlane.f32.xlu0 %v1944
        %v1975 = vpop.xlane.xlu0 %1974
        %1976 = vmax.xlane.f32.xlu0 %v1945
        %v1977 = vpop.xlane.xlu0 %1976
        %v1978 = vld [vmem:[%s200 + $0x5] sm:$0x1]
        %1980 = vset.pattern.permute.xlu0 0
        %1981 = vperm.xlu0 %1980, %v1978
        %v1982 = vpop.permute.xlu0 %1981
        %v1983 = vlaneseq
        %v1984 = vshrl.u32 %v1983, 7
        %v1985 = vsub.s32 0, %v1984
        %v1986 = vrot.slane %v1982, %v1985
        %v1988 = vmul.f32 %v1947, %v1986
        %v1989 = vmul.f32 %v1949, %v1986
        %v1990 = vmul.f32 %v1951, %v1986
        %v1991 = vmul.f32 %v1953, %v1986
        %v1992 = vmul.f32 %v1955, %v1986
        %v1993 = vmul.f32 %v1957, %v1986
        %v1994 = vmul.f32 %v1959, %v1986
        %v1995 = vmul.f32 %v1961, %v1986
        %v1996 = vmul.f32 %v1963, %v1986
        %v1997 = vmul.f32 %v1965, %v1986
        %v1998 = vmul.f32 %v1967, %v1986
        %v1999 = vmul.f32 %v1969, %v1986
        %v2000 = vmul.f32 %v1971, %v1986
        %v2001 = vmul.f32 %v1973, %v1986
        %v2002 = vmul.f32 %v1975, %v1986
        %v2003 = vmul.f32 %v1977, %v1986
        %v2004 = vld [vmem:[%s456 + $0x5] ss:$0 sm:$0xff]
        %2021 = vset.pattern.permute.xlu0 0
        %2022 = vperm.xlu0 %2021, %v1988
        %v2023 = vpop.permute.xlu0 %2022
        %2024 = vset.pattern.permute.xlu0 0
        %2025 = vperm.xlu0 %2024, %v1989
        %v2026 = vpop.permute.xlu0 %2025
        %2027 = vset.pattern.permute.xlu0 0
        %2028 = vperm.xlu0 %2027, %v1990
        %v2029 = vpop.permute.xlu0 %2028
        %2030 = vset.pattern.permute.xlu0 0
        %2031 = vperm.xlu0 %2030, %v1991
        %v2032 = vpop.permute.xlu0 %2031
        %2033 = vset.pattern.permute.xlu0 0
        %2034 = vperm.xlu0 %2033, %v1992
        %v2035 = vpop.permute.xlu0 %2034
        %2036 = vset.pattern.permute.xlu0 0
        %2037 = vperm.xlu0 %2036, %v1993
        %v2038 = vpop.permute.xlu0 %2037
        %2039 = vset.pattern.permute.xlu0 0
        %2040 = vperm.xlu0 %2039, %v1994
        %v2041 = vpop.permute.xlu0 %2040
        %2042 = vset.pattern.permute.xlu0 0
        %2043 = vperm.xlu0 %2042, %v1995
        %v2044 = vpop.permute.xlu0 %2043
        %2045 = vset.pattern.permute.xlu0 0
        %2046 = vperm.xlu0 %2045, %v1996
        %v2047 = vpop.permute.xlu0 %2046
        %2048 = vset.pattern.permute.xlu0 0
        %2049 = vperm.xlu0 %2048, %v1997
        %v2050 = vpop.permute.xlu0 %2049
        %2051 = vset.pattern.permute.xlu0 0
        %2052 = vperm.xlu0 %2051, %v1998
        %v2053 = vpop.permute.xlu0 %2052
        %2054 = vset.pattern.permute.xlu0 0
        %2055 = vperm.xlu0 %2054, %v1999
        %v2056 = vpop.permute.xlu0 %2055
        %2057 = vset.pattern.permute.xlu0 0
        %2058 = vperm.xlu0 %2057, %v2000
        %v2059 = vpop.permute.xlu0 %2058
        %2060 = vset.pattern.permute.xlu0 0
        %2061 = vperm.xlu0 %2060, %v2001
        %v2062 = vpop.permute.xlu0 %2061
        %2063 = vset.pattern.permute.xlu0 0
        %2064 = vperm.xlu0 %2063, %v2002
        %v2065 = vpop.permute.xlu0 %2064
        %2066 = vset.pattern.permute.xlu0 0
        %2067 = vperm.xlu0 %2066, %v2003
        %v2068 = vpop.permute.xlu0 %2067
        %v2069 = vlaneseq
        %v2070 = vshrl.u32 %v2069, 7
        %v2071 = vsub.s32 %v523, %v2070
        %v2072 = vrot.slane %v2023, %v2071
        %v2073 = vlaneseq
        %v2074 = vshrl.u32 %v2073, 7
        %v2075 = vsub.s32 %v528, %v2074
        %v2076 = vrot.slane %v2026, %v2075
        %v2077 = vsel %vm533, %v2076, %v2072
        %v2078 = vlaneseq
        %v2079 = vshrl.u32 %v2078, 7
        %v2080 = vsub.s32 %v535, %v2079
        %v2081 = vrot.slane %v2029, %v2080
        %v2082 = vsel %vm540, %v2081, %v2077
        %v2083 = vlaneseq
        %v2084 = vshrl.u32 %v2083, 7
        %v2085 = vsub.s32 %v542, %v2084
        %v2086 = vrot.slane %v2032, %v2085
        %v2087 = vsel %vm547, %v2086, %v2082
        %v2088 = vlaneseq
        %v2089 = vshrl.u32 %v2088, 7
        %v2090 = vsub.s32 %v549, %v2089
        %v2091 = vrot.slane %v2035, %v2090
        %v2092 = vsel %vm554, %v2091, %v2087
        %v2093 = vlaneseq
        %v2094 = vshrl.u32 %v2093, 7
        %v2095 = vsub.s32 %v556, %v2094
        %v2096 = vrot.slane %v2038, %v2095
        %v2097 = vsel %vm561, %v2096, %v2092
        %v2098 = vlaneseq
        %v2099 = vshrl.u32 %v2098, 7
        %v2100 = vsub.s32 %v563, %v2099
        %v2101 = vrot.slane %v2041, %v2100
        %v2102 = vsel %vm568, %v2101, %v2097
        %v2103 = vlaneseq
        %v2104 = vshrl.u32 %v2103, 7
        %v2105 = vsub.s32 %v570, %v2104
        %v2106 = vrot.slane %v2044, %v2105
        %v2107 = vsel %vm575, %v2106, %v2102
        %v2108 = vlaneseq
        %v2109 = vshrl.u32 %v2108, 7
        %v2110 = vsub.s32 %v577, %v2109
        %v2111 = vrot.slane %v2047, %v2110
        %v2112 = vsel %vm582, %v2111, %v2107
        %v2113 = vlaneseq
        %v2114 = vshrl.u32 %v2113, 7
        %v2115 = vsub.s32 %v584, %v2114
        %v2116 = vrot.slane %v2050, %v2115
        %v2117 = vsel %vm589, %v2116, %v2112
        %v2118 = vlaneseq
        %v2119 = vshrl.u32 %v2118, 7
        %v2120 = vsub.s32 %v591, %v2119
        %v2121 = vrot.slane %v2053, %v2120
        %v2122 = vsel %vm596, %v2121, %v2117
        %v2123 = vlaneseq
        %v2124 = vshrl.u32 %v2123, 7
        %v2125 = vsub.s32 %v598, %v2124
        %v2126 = vrot.slane %v2056, %v2125
        %v2127 = vsel %vm603, %v2126, %v2122
        %v2128 = vlaneseq
        %v2129 = vshrl.u32 %v2128, 7
        %v2130 = vsub.s32 %v605, %v2129
        %v2131 = vrot.slane %v2059, %v2130
        %v2132 = vsel %vm610, %v2131, %v2127
        %v2133 = vlaneseq
        %v2134 = vshrl.u32 %v2133, 7
        %v2135 = vsub.s32 %v612, %v2134
        %v2136 = vrot.slane %v2062, %v2135
        %v2137 = vsel %vm617, %v2136, %v2132
        %v2138 = vlaneseq
        %v2139 = vshrl.u32 %v2138, 7
        %v2140 = vsub.s32 %v619, %v2139
        %v2141 = vrot.slane %v2065, %v2140
        %v2142 = vsel %vm624, %v2141, %v2137
        %v2143 = vlaneseq
        %v2144 = vshrl.u32 %v2143, 7
        %v2145 = vsub.s32 %v626, %v2144
        %v2146 = vrot.slane %v2068, %v2145
        %v2147 = vsel %vm631, %v2146, %v2142
        %v2149 = vmax.f32 %v2004, %v2147
        %2150 = vst [vmem:[%s456 + $0x5] sm:$0x1] %v2149
        %v2151 = vld [vmem:[%s292] sm:$0xff]
        %v2152 = vld [vmem:[%s292 + $0x10] sm:$0xff]
        %v2153 = vld [vmem:[%s292 + $0x20] sm:$0xff]
        %v2154 = vld [vmem:[%s292 + $0x30] sm:$0xff]
        %v2155 = vld [vmem:[%s292 + $0x40] sm:$0xff]
        %v2156 = vld [vmem:[%s292 + $0x50] sm:$0xff]
        %v2157 = vld [vmem:[%s292 + $0x60] sm:$0xff]
        %v2158 = vld [vmem:[%s292 + $0x70] sm:$0xff]
        %v2159 = vld [vmem:[%s292 + $0x80] sm:$0xff]
        %v2160 = vld [vmem:[%s292 + $0x90] sm:$0xff]
        %v2161 = vld [vmem:[%s292 + $0xa0] sm:$0xff]
        %v2162 = vld [vmem:[%s292 + $0xb0] sm:$0xff]
        %v2163 = vld [vmem:[%s292 + $0xc0] sm:$0xff]
        %v2164 = vld [vmem:[%s292 + $0xd0] sm:$0xff]
        %v2165 = vld [vmem:[%s292 + $0xe0] sm:$0xff]
        %v2166 = vld [vmem:[%s292 + $0xf0] sm:$0xff]
        %v2167 = vld [vmem:[#allocation2 + $0x6] ss:$0 sm:$0xff]
        %v2168 = vmul.f32 %v2151, %v2167
        %v2169 = vmul.f32 %v2152, %v2167
        %v2170 = vmul.f32 %v2153, %v2167
        %v2171 = vmul.f32 %v2154, %v2167
        %v2172 = vmul.f32 %v2155, %v2167
        %v2173 = vmul.f32 %v2156, %v2167
        %v2174 = vmul.f32 %v2157, %v2167
        %v2175 = vmul.f32 %v2158, %v2167
        %v2176 = vmul.f32 %v2159, %v2167
        %v2177 = vmul.f32 %v2160, %v2167
        %v2178 = vmul.f32 %v2161, %v2167
        %v2179 = vmul.f32 %v2162, %v2167
        %v2180 = vmul.f32 %v2163, %v2167
        %v2181 = vmul.f32 %v2164, %v2167
        %v2182 = vmul.f32 %v2165, %v2167
        %v2183 = vmul.f32 %v2166, %v2167
        %v2184 = vmax.f32 %v2168, 0.0
        %v2185 = vmax.f32 %v2169, 0.0
        %v2186 = vmax.f32 %v2170, 0.0
        %v2187 = vmax.f32 %v2171, 0.0
        %v2188 = vmax.f32 %v2172, 0.0
        %v2189 = vmax.f32 %v2173, 0.0
        %v2190 = vmax.f32 %v2174, 0.0
        %v2191 = vmax.f32 %v2175, 0.0
        %v2192 = vmax.f32 %v2176, 0.0
        %v2193 = vmax.f32 %v2177, 0.0
        %v2194 = vmax.f32 %v2178, 0.0
        %v2195 = vmax.f32 %v2179, 0.0
        %v2196 = vmax.f32 %v2180, 0.0
        %v2197 = vmax.f32 %v2181, 0.0
        %v2198 = vmax.f32 %v2182, 0.0
        %v2199 = vmax.f32 %v2183, 0.0
        %v2200 = vld [vmem:[%s344] sm:$0xff]
        %v2201 = vld [vmem:[%s344 + $0x10] sm:$0xff]
        %v2202 = vld [vmem:[%s344 + $0x20] sm:$0xff]
        %v2203 = vld [vmem:[%s344 + $0x30] sm:$0xff]
        %v2204 = vld [vmem:[%s344 + $0x40] sm:$0xff]
        %v2205 = vld [vmem:[%s344 + $0x50] sm:$0xff]
        %v2206 = vld [vmem:[%s344 + $0x60] sm:$0xff]
        %v2207 = vld [vmem:[%s344 + $0x70] sm:$0xff]
        %v2208 = vld [vmem:[%s344 + $0x80] sm:$0xff]
        %v2209 = vld [vmem:[%s344 + $0x90] sm:$0xff]
        %v2210 = vld [vmem:[%s344 + $0xa0] sm:$0xff]
        %v2211 = vld [vmem:[%s344 + $0xb0] sm:$0xff]
        %v2212 = vld [vmem:[%s344 + $0xc0] sm:$0xff]
        %v2213 = vld [vmem:[%s344 + $0xd0] sm:$0xff]
        %v2214 = vld [vmem:[%s344 + $0xe0] sm:$0xff]
        %v2215 = vld [vmem:[%s344 + $0xf0] sm:$0xff]
        %v2216 = vld [vmem:[%s361 + $0x6] ss:$0 sm:$0xff]
        %v2217 = vmul.f32 %v2200, %v2216
        %v2218 = vmul.f32 %v2201, %v2216
        %v2219 = vmul.f32 %v2202, %v2216
        %v2220 = vmul.f32 %v2203, %v2216
        %v2221 = vmul.f32 %v2204, %v2216
        %v2222 = vmul.f32 %v2205, %v2216
        %v2223 = vmul.f32 %v2206, %v2216
        %v2224 = vmul.f32 %v2207, %v2216
        %v2225 = vmul.f32 %v2208, %v2216
        %v2226 = vmul.f32 %v2209, %v2216
        %v2227 = vmul.f32 %v2210, %v2216
        %v2228 = vmul.f32 %v2211, %v2216
        %v2229 = vmul.f32 %v2212, %v2216
        %v2230 = vmul.f32 %v2213, %v2216
        %v2231 = vmul.f32 %v2214, %v2216
        %v2232 = vmul.f32 %v2215, %v2216
        %v2233 = vmax.f32 %v2184, %v2217
        %v2234 = vmax.f32 %v2185, %v2218
        %v2235 = vmax.f32 %v2186, %v2219
        %v2236 = vmax.f32 %v2187, %v2220
        %v2237 = vmax.f32 %v2188, %v2221
        %v2238 = vmax.f32 %v2189, %v2222
        %v2239 = vmax.f32 %v2190, %v2223
        %v2240 = vmax.f32 %v2191, %v2224
        %v2241 = vmax.f32 %v2192, %v2225
        %v2242 = vmax.f32 %v2193, %v2226
        %v2243 = vmax.f32 %v2194, %v2227
        %v2244 = vmax.f32 %v2195, %v2228
        %v2245 = vmax.f32 %v2196, %v2229
        %v2246 = vmax.f32 %v2197, %v2230
        %v2247 = vmax.f32 %v2198, %v2231
        %v2248 = vmax.f32 %v2199, %v2232
        %2249 = vmax.xlane.f32.xlu0 %v2233
        %v2250 = vpop.xlane.xlu0 %2249
        %2251 = vmax.xlane.f32.xlu0 %v2234
        %v2252 = vpop.xlane.xlu0 %2251
        %2253 = vmax.xlane.f32.xlu0 %v2235
        %v2254 = vpop.xlane.xlu0 %2253
        %2255 = vmax.xlane.f32.xlu0 %v2236
        %v2256 = vpop.xlane.xlu0 %2255
        %2257 = vmax.xlane.f32.xlu0 %v2237
        %v2258 = vpop.xlane.xlu0 %2257
        %2259 = vmax.xlane.f32.xlu0 %v2238
        %v2260 = vpop.xlane.xlu0 %2259
        %2261 = vmax.xlane.f32.xlu0 %v2239
        %v2262 = vpop.xlane.xlu0 %2261
        %2263 = vmax.xlane.f32.xlu0 %v2240
        %v2264 = vpop.xlane.xlu0 %2263
        %2265 = vmax.xlane.f32.xlu0 %v2241
        %v2266 = vpop.xlane.xlu0 %2265
        %2267 = vmax.xlane.f32.xlu0 %v2242
        %v2268 = vpop.xlane.xlu0 %2267
        %2269 = vmax.xlane.f32.xlu0 %v2243
        %v2270 = vpop.xlane.xlu0 %2269
        %2271 = vmax.xlane.f32.xlu0 %v2244
        %v2272 = vpop.xlane.xlu0 %2271
        %2273 = vmax.xlane.f32.xlu0 %v2245
        %v2274 = vpop.xlane.xlu0 %2273
        %2275 = vmax.xlane.f32.xlu0 %v2246
        %v2276 = vpop.xlane.xlu0 %2275
        %2277 = vmax.xlane.f32.xlu0 %v2247
        %v2278 = vpop.xlane.xlu0 %2277
        %2279 = vmax.xlane.f32.xlu0 %v2248
        %v2280 = vpop.xlane.xlu0 %2279
        %v2281 = vld [vmem:[%s200 + $0x6] sm:$0x1]
        %2283 = vset.pattern.permute.xlu0 0
        %2284 = vperm.xlu0 %2283, %v2281
        %v2285 = vpop.permute.xlu0 %2284
        %v2286 = vlaneseq
        %v2287 = vshrl.u32 %v2286, 7
        %v2288 = vsub.s32 0, %v2287
        %v2289 = vrot.slane %v2285, %v2288
        %v2291 = vmul.f32 %v2250, %v2289
        %v2292 = vmul.f32 %v2252, %v2289
        %v2293 = vmul.f32 %v2254, %v2289
        %v2294 = vmul.f32 %v2256, %v2289
        %v2295 = vmul.f32 %v2258, %v2289
        %v2296 = vmul.f32 %v2260, %v2289
        %v2297 = vmul.f32 %v2262, %v2289
        %v2298 = vmul.f32 %v2264, %v2289
        %v2299 = vmul.f32 %v2266, %v2289
        %v2300 = vmul.f32 %v2268, %v2289
        %v2301 = vmul.f32 %v2270, %v2289
        %v2302 = vmul.f32 %v2272, %v2289
        %v2303 = vmul.f32 %v2274, %v2289
        %v2304 = vmul.f32 %v2276, %v2289
        %v2305 = vmul.f32 %v2278, %v2289
        %v2306 = vmul.f32 %v2280, %v2289
        %v2307 = vld [vmem:[%s456 + $0x6] ss:$0 sm:$0xff]
        %2324 = vset.pattern.permute.xlu0 0
        %2325 = vperm.xlu0 %2324, %v2291
        %v2326 = vpop.permute.xlu0 %2325
        %2327 = vset.pattern.permute.xlu0 0
        %2328 = vperm.xlu0 %2327, %v2292
        %v2329 = vpop.permute.xlu0 %2328
        %2330 = vset.pattern.permute.xlu0 0
        %2331 = vperm.xlu0 %2330, %v2293
        %v2332 = vpop.permute.xlu0 %2331
        %2333 = vset.pattern.permute.xlu0 0
        %2334 = vperm.xlu0 %2333, %v2294
        %v2335 = vpop.permute.xlu0 %2334
        %2336 = vset.pattern.permute.xlu0 0
        %2337 = vperm.xlu0 %2336, %v2295
        %v2338 = vpop.permute.xlu0 %2337
        %2339 = vset.pattern.permute.xlu0 0
        %2340 = vperm.xlu0 %2339, %v2296
        %v2341 = vpop.permute.xlu0 %2340
        %2342 = vset.pattern.permute.xlu0 0
        %2343 = vperm.xlu0 %2342, %v2297
        %v2344 = vpop.permute.xlu0 %2343
        %2345 = vset.pattern.permute.xlu0 0
        %2346 = vperm.xlu0 %2345, %v2298
        %v2347 = vpop.permute.xlu0 %2346
        %2348 = vset.pattern.permute.xlu0 0
        %2349 = vperm.xlu0 %2348, %v2299
        %v2350 = vpop.permute.xlu0 %2349
        %2351 = vset.pattern.permute.xlu0 0
        %2352 = vperm.xlu0 %2351, %v2300
        %v2353 = vpop.permute.xlu0 %2352
        %2354 = vset.pattern.permute.xlu0 0
        %2355 = vperm.xlu0 %2354, %v2301
        %v2356 = vpop.permute.xlu0 %2355
        %2357 = vset.pattern.permute.xlu0 0
        %2358 = vperm.xlu0 %2357, %v2302
        %v2359 = vpop.permute.xlu0 %2358
        %2360 = vset.pattern.permute.xlu0 0
        %2361 = vperm.xlu0 %2360, %v2303
        %v2362 = vpop.permute.xlu0 %2361
        %2363 = vset.pattern.permute.xlu0 0
        %2364 = vperm.xlu0 %2363, %v2304
        %v2365 = vpop.permute.xlu0 %2364
        %2366 = vset.pattern.permute.xlu0 0
        %2367 = vperm.xlu0 %2366, %v2305
        %v2368 = vpop.permute.xlu0 %2367
        %2369 = vset.pattern.permute.xlu0 0
        %2370 = vperm.xlu0 %2369, %v2306
        %v2371 = vpop.permute.xlu0 %2370
        %v2372 = vlaneseq
        %v2373 = vshrl.u32 %v2372, 7
        %v2374 = vsub.s32 %v523, %v2373
        %v2375 = vrot.slane %v2326, %v2374
        %v2376 = vlaneseq
        %v2377 = vshrl.u32 %v2376, 7
        %v2378 = vsub.s32 %v528, %v2377
        %v2379 = vrot.slane %v2329, %v2378
        %v2380 = vsel %vm533, %v2379, %v2375
        %v2381 = vlaneseq
        %v2382 = vshrl.u32 %v2381, 7
        %v2383 = vsub.s32 %v535, %v2382
        %v2384 = vrot.slane %v2332, %v2383
        %v2385 = vsel %vm540, %v2384, %v2380
        %v2386 = vlaneseq
        %v2387 = vshrl.u32 %v2386, 7
        %v2388 = vsub.s32 %v542, %v2387
        %v2389 = vrot.slane %v2335, %v2388
        %v2390 = vsel %vm547, %v2389, %v2385
        %v2391 = vlaneseq
        %v2392 = vshrl.u32 %v2391, 7
        %v2393 = vsub.s32 %v549, %v2392
        %v2394 = vrot.slane %v2338, %v2393
        %v2395 = vsel %vm554, %v2394, %v2390
        %v2396 = vlaneseq
        %v2397 = vshrl.u32 %v2396, 7
        %v2398 = vsub.s32 %v556, %v2397
        %v2399 = vrot.slane %v2341, %v2398
        %v2400 = vsel %vm561, %v2399, %v2395
        %v2401 = vlaneseq
        %v2402 = vshrl.u32 %v2401, 7
        %v2403 = vsub.s32 %v563, %v2402
        %v2404 = vrot.slane %v2344, %v2403
        %v2405 = vsel %vm568, %v2404, %v2400
        %v2406 = vlaneseq
        %v2407 = vshrl.u32 %v2406, 7
        %v2408 = vsub.s32 %v570, %v2407
        %v2409 = vrot.slane %v2347, %v2408
        %v2410 = vsel %vm575, %v2409, %v2405
        %v2411 = vlaneseq
        %v2412 = vshrl.u32 %v2411, 7
        %v2413 = vsub.s32 %v577, %v2412
        %v2414 = vrot.slane %v2350, %v2413
        %v2415 = vsel %vm582, %v2414, %v2410
        %v2416 = vlaneseq
        %v2417 = vshrl.u32 %v2416, 7
        %v2418 = vsub.s32 %v584, %v2417
        %v2419 = vrot.slane %v2353, %v2418
        %v2420 = vsel %vm589, %v2419, %v2415
        %v2421 = vlaneseq
        %v2422 = vshrl.u32 %v2421, 7
        %v2423 = vsub.s32 %v591, %v2422
        %v2424 = vrot.slane %v2356, %v2423
        %v2425 = vsel %vm596, %v2424, %v2420
        %v2426 = vlaneseq
        %v2427 = vshrl.u32 %v2426, 7
        %v2428 = vsub.s32 %v598, %v2427
        %v2429 = vrot.slane %v2359, %v2428
        %v2430 = vsel %vm603, %v2429, %v2425
        %v2431 = vlaneseq
        %v2432 = vshrl.u32 %v2431, 7
        %v2433 = vsub.s32 %v605, %v2432
        %v2434 = vrot.slane %v2362, %v2433
        %v2435 = vsel %vm610, %v2434, %v2430
        %v2436 = vlaneseq
        %v2437 = vshrl.u32 %v2436, 7
        %v2438 = vsub.s32 %v612, %v2437
        %v2439 = vrot.slane %v2365, %v2438
        %v2440 = vsel %vm617, %v2439, %v2435
        %v2441 = vlaneseq
        %v2442 = vshrl.u32 %v2441, 7
        %v2443 = vsub.s32 %v619, %v2442
        %v2444 = vrot.slane %v2368, %v2443
        %v2445 = vsel %vm624, %v2444, %v2440
        %v2446 = vlaneseq
        %v2447 = vshrl.u32 %v2446, 7
        %v2448 = vsub.s32 %v626, %v2447
        %v2449 = vrot.slane %v2371, %v2448
        %v2450 = vsel %vm631, %v2449, %v2445
        %v2452 = vmax.f32 %v2307, %v2450
        %2453 = vst [vmem:[%s456 + $0x6] sm:$0x1] %v2452
        %v2454 = vld [vmem:[%s292] sm:$0xff]
        %v2455 = vld [vmem:[%s292 + $0x10] sm:$0xff]
        %v2456 = vld [vmem:[%s292 + $0x20] sm:$0xff]
        %v2457 = vld [vmem:[%s292 + $0x30] sm:$0xff]
        %v2458 = vld [vmem:[%s292 + $0x40] sm:$0xff]
        %v2459 = vld [vmem:[%s292 + $0x50] sm:$0xff]
        %v2460 = vld [vmem:[%s292 + $0x60] sm:$0xff]
        %v2461 = vld [vmem:[%s292 + $0x70] sm:$0xff]
        %v2462 = vld [vmem:[%s292 + $0x80] sm:$0xff]
        %v2463 = vld [vmem:[%s292 + $0x90] sm:$0xff]
        %v2464 = vld [vmem:[%s292 + $0xa0] sm:$0xff]
        %v2465 = vld [vmem:[%s292 + $0xb0] sm:$0xff]
        %v2466 = vld [vmem:[%s292 + $0xc0] sm:$0xff]
        %v2467 = vld [vmem:[%s292 + $0xd0] sm:$0xff]
        %v2468 = vld [vmem:[%s292 + $0xe0] sm:$0xff]
        %v2469 = vld [vmem:[%s292 + $0xf0] sm:$0xff]
        %v2470 = vld [vmem:[#allocation2 + $0x7] ss:$0 sm:$0xff]
        %v2471 = vmul.f32 %v2454, %v2470
        %v2472 = vmul.f32 %v2455, %v2470
        %v2473 = vmul.f32 %v2456, %v2470
        %v2474 = vmul.f32 %v2457, %v2470
        %v2475 = vmul.f32 %v2458, %v2470
        %v2476 = vmul.f32 %v2459, %v2470
        %v2477 = vmul.f32 %v2460, %v2470
        %v2478 = vmul.f32 %v2461, %v2470
        %v2479 = vmul.f32 %v2462, %v2470
        %v2480 = vmul.f32 %v2463, %v2470
        %v2481 = vmul.f32 %v2464, %v2470
        %v2482 = vmul.f32 %v2465, %v2470
        %v2483 = vmul.f32 %v2466, %v2470
        %v2484 = vmul.f32 %v2467, %v2470
        %v2485 = vmul.f32 %v2468, %v2470
        %v2486 = vmul.f32 %v2469, %v2470
        %v2487 = vmax.f32 %v2471, 0.0
        %v2488 = vmax.f32 %v2472, 0.0
        %v2489 = vmax.f32 %v2473, 0.0
        %v2490 = vmax.f32 %v2474, 0.0
        %v2491 = vmax.f32 %v2475, 0.0
        %v2492 = vmax.f32 %v2476, 0.0
        %v2493 = vmax.f32 %v2477, 0.0
        %v2494 = vmax.f32 %v2478, 0.0
        %v2495 = vmax.f32 %v2479, 0.0
        %v2496 = vmax.f32 %v2480, 0.0
        %v2497 = vmax.f32 %v2481, 0.0
        %v2498 = vmax.f32 %v2482, 0.0
        %v2499 = vmax.f32 %v2483, 0.0
        %v2500 = vmax.f32 %v2484, 0.0
        %v2501 = vmax.f32 %v2485, 0.0
        %v2502 = vmax.f32 %v2486, 0.0
        %v2503 = vld [vmem:[%s344] sm:$0xff]
        %v2504 = vld [vmem:[%s344 + $0x10] sm:$0xff]
        %v2505 = vld [vmem:[%s344 + $0x20] sm:$0xff]
        %v2506 = vld [vmem:[%s344 + $0x30] sm:$0xff]
        %v2507 = vld [vmem:[%s344 + $0x40] sm:$0xff]
        %v2508 = vld [vmem:[%s344 + $0x50] sm:$0xff]
        %v2509 = vld [vmem:[%s344 + $0x60] sm:$0xff]
        %v2510 = vld [vmem:[%s344 + $0x70] sm:$0xff]
        %v2511 = vld [vmem:[%s344 + $0x80] sm:$0xff]
        %v2512 = vld [vmem:[%s344 + $0x90] sm:$0xff]
        %v2513 = vld [vmem:[%s344 + $0xa0] sm:$0xff]
        %v2514 = vld [vmem:[%s344 + $0xb0] sm:$0xff]
        %v2515 = vld [vmem:[%s344 + $0xc0] sm:$0xff]
        %v2516 = vld [vmem:[%s344 + $0xd0] sm:$0xff]
        %v2517 = vld [vmem:[%s344 + $0xe0] sm:$0xff]
        %v2518 = vld [vmem:[%s344 + $0xf0] sm:$0xff]
        %v2519 = vld [vmem:[%s361 + $0x7] ss:$0 sm:$0xff]
        %v2520 = vmul.f32 %v2503, %v2519
        %v2521 = vmul.f32 %v2504, %v2519
        %v2522 = vmul.f32 %v2505, %v2519
        %v2523 = vmul.f32 %v2506, %v2519
        %v2524 = vmul.f32 %v2507, %v2519
        %v2525 = vmul.f32 %v2508, %v2519
        %v2526 = vmul.f32 %v2509, %v2519
        %v2527 = vmul.f32 %v2510, %v2519
        %v2528 = vmul.f32 %v2511, %v2519
        %v2529 = vmul.f32 %v2512, %v2519
        %v2530 = vmul.f32 %v2513, %v2519
        %v2531 = vmul.f32 %v2514, %v2519
        %v2532 = vmul.f32 %v2515, %v2519
        %v2533 = vmul.f32 %v2516, %v2519
        %v2534 = vmul.f32 %v2517, %v2519
        %v2535 = vmul.f32 %v2518, %v2519
        %v2536 = vmax.f32 %v2487, %v2520
        %v2537 = vmax.f32 %v2488, %v2521
        %v2538 = vmax.f32 %v2489, %v2522
        %v2539 = vmax.f32 %v2490, %v2523
        %v2540 = vmax.f32 %v2491, %v2524
        %v2541 = vmax.f32 %v2492, %v2525
        %v2542 = vmax.f32 %v2493, %v2526
        %v2543 = vmax.f32 %v2494, %v2527
        %v2544 = vmax.f32 %v2495, %v2528
        %v2545 = vmax.f32 %v2496, %v2529
        %v2546 = vmax.f32 %v2497, %v2530
        %v2547 = vmax.f32 %v2498, %v2531
        %v2548 = vmax.f32 %v2499, %v2532
        %v2549 = vmax.f32 %v2500, %v2533
        %v2550 = vmax.f32 %v2501, %v2534
        %v2551 = vmax.f32 %v2502, %v2535
        %2552 = vmax.xlane.f32.xlu0 %v2536
        %v2553 = vpop.xlane.xlu0 %2552
        %2554 = vmax.xlane.f32.xlu0 %v2537
        %v2555 = vpop.xlane.xlu0 %2554
        %2556 = vmax.xlane.f32.xlu0 %v2538
        %v2557 = vpop.xlane.xlu0 %2556
        %2558 = vmax.xlane.f32.xlu0 %v2539
        %v2559 = vpop.xlane.xlu0 %2558
        %2560 = vmax.xlane.f32.xlu0 %v2540
        %v2561 = vpop.xlane.xlu0 %2560
        %2562 = vmax.xlane.f32.xlu0 %v2541
        %v2563 = vpop.xlane.xlu0 %2562
        %2564 = vmax.xlane.f32.xlu0 %v2542
        %v2565 = vpop.xlane.xlu0 %2564
        %2566 = vmax.xlane.f32.xlu0 %v2543
        %v2567 = vpop.xlane.xlu0 %2566
        %2568 = vmax.xlane.f32.xlu0 %v2544
        %v2569 = vpop.xlane.xlu0 %2568
        %2570 = vmax.xlane.f32.xlu0 %v2545
        %v2571 = vpop.xlane.xlu0 %2570
        %2572 = vmax.xlane.f32.xlu0 %v2546
        %v2573 = vpop.xlane.xlu0 %2572
        %2574 = vmax.xlane.f32.xlu0 %v2547
        %v2575 = vpop.xlane.xlu0 %2574
        %2576 = vmax.xlane.f32.xlu0 %v2548
        %v2577 = vpop.xlane.xlu0 %2576
        %2578 = vmax.xlane.f32.xlu0 %v2549
        %v2579 = vpop.xlane.xlu0 %2578
        %2580 = vmax.xlane.f32.xlu0 %v2550
        %v2581 = vpop.xlane.xlu0 %2580
        %2582 = vmax.xlane.f32.xlu0 %v2551
        %v2583 = vpop.xlane.xlu0 %2582
        %v2584 = vld [vmem:[%s200 + $0x7] sm:$0x1]
        %2586 = vset.pattern.permute.xlu0 0
        %2587 = vperm.xlu0 %2586, %v2584
        %v2588 = vpop.permute.xlu0 %2587
        %v2589 = vlaneseq
        %v2590 = vshrl.u32 %v2589, 7
        %v2591 = vsub.s32 0, %v2590
        %v2592 = vrot.slane %v2588, %v2591
        %v2594 = vmul.f32 %v2553, %v2592
        %v2595 = vmul.f32 %v2555, %v2592
        %v2596 = vmul.f32 %v2557, %v2592
        %v2597 = vmul.f32 %v2559, %v2592
        %v2598 = vmul.f32 %v2561, %v2592
        %v2599 = vmul.f32 %v2563, %v2592
        %v2600 = vmul.f32 %v2565, %v2592
        %v2601 = vmul.f32 %v2567, %v2592
        %v2602 = vmul.f32 %v2569, %v2592
        %v2603 = vmul.f32 %v2571, %v2592
        %v2604 = vmul.f32 %v2573, %v2592
        %v2605 = vmul.f32 %v2575, %v2592
        %v2606 = vmul.f32 %v2577, %v2592
        %v2607 = vmul.f32 %v2579, %v2592
        %v2608 = vmul.f32 %v2581, %v2592
        %v2609 = vmul.f32 %v2583, %v2592
        %v2610 = vld [vmem:[%s456 + $0x7] ss:$0 sm:$0xff]
        %2627 = vset.pattern.permute.xlu0 0
        %2628 = vperm.xlu0 %2627, %v2594
        %v2629 = vpop.permute.xlu0 %2628
        %2630 = vset.pattern.permute.xlu0 0
        %2631 = vperm.xlu0 %2630, %v2595
        %v2632 = vpop.permute.xlu0 %2631
        %2633 = vset.pattern.permute.xlu0 0
        %2634 = vperm.xlu0 %2633, %v2596
        %v2635 = vpop.permute.xlu0 %2634
        %2636 = vset.pattern.permute.xlu0 0
        %2637 = vperm.xlu0 %2636, %v2597
        %v2638 = vpop.permute.xlu0 %2637
        %2639 = vset.pattern.permute.xlu0 0
        %2640 = vperm.xlu0 %2639, %v2598
        %v2641 = vpop.permute.xlu0 %2640
        %2642 = vset.pattern.permute.xlu0 0
        %2643 = vperm.xlu0 %2642, %v2599
        %v2644 = vpop.permute.xlu0 %2643
        %2645 = vset.pattern.permute.xlu0 0
        %2646 = vperm.xlu0 %2645, %v2600
        %v2647 = vpop.permute.xlu0 %2646
        %2648 = vset.pattern.permute.xlu0 0
        %2649 = vperm.xlu0 %2648, %v2601
        %v2650 = vpop.permute.xlu0 %2649
        %2651 = vset.pattern.permute.xlu0 0
        %2652 = vperm.xlu0 %2651, %v2602
        %v2653 = vpop.permute.xlu0 %2652
        %2654 = vset.pattern.permute.xlu0 0
        %2655 = vperm.xlu0 %2654, %v2603
        %v2656 = vpop.permute.xlu0 %2655
        %2657 = vset.pattern.permute.xlu0 0
        %2658 = vperm.xlu0 %2657, %v2604
        %v2659 = vpop.permute.xlu0 %2658
        %2660 = vset.pattern.permute.xlu0 0
        %2661 = vperm.xlu0 %2660, %v2605
        %v2662 = vpop.permute.xlu0 %2661
        %2663 = vset.pattern.permute.xlu0 0
        %2664 = vperm.xlu0 %2663, %v2606
        %v2665 = vpop.permute.xlu0 %2664
        %2666 = vset.pattern.permute.xlu0 0
        %2667 = vperm.xlu0 %2666, %v2607
        %v2668 = vpop.permute.xlu0 %2667
        %2669 = vset.pattern.permute.xlu0 0
        %2670 = vperm.xlu0 %2669, %v2608
        %v2671 = vpop.permute.xlu0 %2670
        %2672 = vset.pattern.permute.xlu0 0
        %2673 = vperm.xlu0 %2672, %v2609
        %v2674 = vpop.permute.xlu0 %2673
        %v2675 = vlaneseq
        %v2676 = vshrl.u32 %v2675, 7
        %v2677 = vsub.s32 %v523, %v2676
        %v2678 = vrot.slane %v2629, %v2677
        %v2679 = vlaneseq
        %v2680 = vshrl.u32 %v2679, 7
        %v2681 = vsub.s32 %v528, %v2680
        %v2682 = vrot.slane %v2632, %v2681
        %v2683 = vsel %vm533, %v2682, %v2678
        %v2684 = vlaneseq
        %v2685 = vshrl.u32 %v2684, 7
        %v2686 = vsub.s32 %v535, %v2685
        %v2687 = vrot.slane %v2635, %v2686
        %v2688 = vsel %vm540, %v2687, %v2683
        %v2689 = vlaneseq
        %v2690 = vshrl.u32 %v2689, 7
        %v2691 = vsub.s32 %v542, %v2690
        %v2692 = vrot.slane %v2638, %v2691
        %v2693 = vsel %vm547, %v2692, %v2688
        %v2694 = vlaneseq
        %v2695 = vshrl.u32 %v2694, 7
        %v2696 = vsub.s32 %v549, %v2695
        %v2697 = vrot.slane %v2641, %v2696
        %v2698 = vsel %vm554, %v2697, %v2693
        %v2699 = vlaneseq
        %v2700 = vshrl.u32 %v2699, 7
        %v2701 = vsub.s32 %v556, %v2700
        %v2702 = vrot.slane %v2644, %v2701
        %v2703 = vsel %vm561, %v2702, %v2698
        %v2704 = vlaneseq
        %v2705 = vshrl.u32 %v2704, 7
        %v2706 = vsub.s32 %v563, %v2705
        %v2707 = vrot.slane %v2647, %v2706
        %v2708 = vsel %vm568, %v2707, %v2703
        %v2709 = vlaneseq
        %v2710 = vshrl.u32 %v2709, 7
        %v2711 = vsub.s32 %v570, %v2710
        %v2712 = vrot.slane %v2650, %v2711
        %v2713 = vsel %vm575, %v2712, %v2708
        %v2714 = vlaneseq
        %v2715 = vshrl.u32 %v2714, 7
        %v2716 = vsub.s32 %v577, %v2715
        %v2717 = vrot.slane %v2653, %v2716
        %v2718 = vsel %vm582, %v2717, %v2713
        %v2719 = vlaneseq
        %v2720 = vshrl.u32 %v2719, 7
        %v2721 = vsub.s32 %v584, %v2720
        %v2722 = vrot.slane %v2656, %v2721
        %v2723 = vsel %vm589, %v2722, %v2718
        %v2724 = vlaneseq
        %v2725 = vshrl.u32 %v2724, 7
        %v2726 = vsub.s32 %v591, %v2725
        %v2727 = vrot.slane %v2659, %v2726
        %v2728 = vsel %vm596, %v2727, %v2723
        %v2729 = vlaneseq
        %v2730 = vshrl.u32 %v2729, 7
        %v2731 = vsub.s32 %v598, %v2730
        %v2732 = vrot.slane %v2662, %v2731
        %v2733 = vsel %vm603, %v2732, %v2728
        %v2734 = vlaneseq
        %v2735 = vshrl.u32 %v2734, 7
        %v2736 = vsub.s32 %v605, %v2735
        %v2737 = vrot.slane %v2665, %v2736
        %v2738 = vsel %vm610, %v2737, %v2733
        %v2739 = vlaneseq
        %v2740 = vshrl.u32 %v2739, 7
        %v2741 = vsub.s32 %v612, %v2740
        %v2742 = vrot.slane %v2668, %v2741
        %v2743 = vsel %vm617, %v2742, %v2738
        %v2744 = vlaneseq
        %v2745 = vshrl.u32 %v2744, 7
        %v2746 = vsub.s32 %v619, %v2745
        %v2747 = vrot.slane %v2671, %v2746
        %v2748 = vsel %vm624, %v2747, %v2743
        %v2749 = vlaneseq
        %v2750 = vshrl.u32 %v2749, 7
        %v2751 = vsub.s32 %v626, %v2750
        %v2752 = vrot.slane %v2674, %v2751
        %v2753 = vsel %vm631, %v2752, %v2748
        %v2755 = vmax.f32 %v2610, %v2753
        %2756 = vst [vmem:[%s456 + $0x7] sm:$0x1] %v2755
        %p2757 = scmp.eq.s32.totalorder %s21, 1
        %p2758 = scmp.eq.s32.totalorder %s22, 1
        %p2759 = scmp.eq.s32.totalorder %s23, 2
        %p2760 = pnand %p2758, %p2759
        %p2761 = pneg %p2760
        %p2762 = pnand %p2757, %p2761
        %p2763 = pneg %p2762
        // Predicated region
        $region58: #{tpu_custom_call.1} parent=31 // pred_check
          _
        $region59: #{tpu_custom_call.1} parent=31 // pred_check_branch
          %2765 = sbr.rel (%p2762) target = $region61
        $region60: #{tpu_custom_call.1} parent=31 // pred_region
          %v2766 = vld [vmem:[#allocation4] sm:$0xff]
          %v2767 = vld [vmem:[#allocation4 + $0x8] sm:$0xff]
          %v2768 = vand.u32 2147483647, %v2766
          %v2769 = vand.u32 2147483647, %v2767
          %v2770 = vadd.f32 %v2768, %v2769
          %2771 = vadd.xlane.f32.xlu0 %v2770
          %v2772 = vpop.xlane.xlu0 %2771
          %v2773 = vmax.f32 %v2772, 1e-06
          %v2774 = vrcp.pop %v2773
          %v2775 = vmul.f32 %v2766, %v2774
          %v2776 = vmul.f32 %v2767, %v2774
          %2777 = vst [vmem:[#allocation4] sm:$0xff] %v2775
          %2778 = vst [vmem:[#allocation4 + $0x8] sm:$0xff] %v2776
        $region61: #{tpu_custom_call.1} parent=31 // pred_fallthru
          _
        // Predicated region
        $region62: #{tpu_custom_call.1} parent=31 // pred_check
          %p2779 = pneg %p123
        $region63: #{tpu_custom_call.1} parent=31 // pred_check_branch
          %2781 = sbr.rel (%p2779) target = $region65
        $region64: #{tpu_custom_call.1} parent=31 // pred_region
          %s2783 = ssub.s32 256, 256
          %2784 = vsyncadd [#allocation5], %s2783
          %s2786 = sshll.u32 [#allocation4], 4
          %s2787 = int_to_ptr.vmem [resolvable:$true] %s2786
          %2789 = dma.vmem_to_hbm [thread:$0]  %s2787, 256, %s4, [#allocation5]
        $region65: #{tpu_custom_call.1} parent=31 // pred_fallthru
          _
        // Predicated region
        $region66: #{tpu_custom_call.1} parent=31 // pred_check
          %p2790 = pneg %p123
        $region67: #{tpu_custom_call.1} parent=31 // pred_check_branch
          %2792 = sbr.rel (%p2790) target = $region69
        $region68: #{tpu_custom_call.1} parent=31 // pred_region
          %2793 = dma.done [#allocation5], 256
        $region69: #{tpu_custom_call.1} parent=31 // pred_fallthru
          _
      $region32: #{tpu_custom_call.1} parent=5 // pred_fallthru
        _
      %p2794 = scmp.le.s32.totalorder 2, %s11
      // Predicated region
      $region70: #{tpu_custom_call.1} parent=5 // pred_check
        %p2795 = pneg %p2794
      $region71: #{tpu_custom_call.1} parent=5 // pred_check_branch
        %2797 = sbr.rel (%p2795) target = $region73
      $region72: #{tpu_custom_call.1} parent=5 // pred_region
        %s2798 = ssub.s32 %s11, 2
      $region73: #{tpu_custom_call.1} parent=5 // pred_fallthru
        _
    $region6: #{tpu_custom_call.1} parent=1 // loop_footer
      %s15 = sadd.s32 1, %s11
    $region7: #{tpu_custom_call.1} parent=1 // loop_footer_branch
      %10 = sbr.rel target = $region3
    $region8: #{tpu_custom_call.1} parent=1 // loop_exit
      _
    %2799 = vsyncpa [#allocation5], 1
    %s2800 = scalar_lea.sflag [#allocation5], 1
    %2801 = vsyncpa %s2800, 1

</llo_original>
